<compile_context>
chip_gen: v7x
topology: tpu7x:2x2x1
jax: 0.10.0
libtpu: 0.0.40
codegen_flags: <defaults>
</compile_context>

<pallas_src>
import jax
import jax.numpy as jnp
from jax.experimental import pallas as pl
from jax.experimental.pallas import tpu as pltpu

# ----- synthetic mini-BERT config (shrunk, DNABERT-style) -----
B = 2          # batch
S = 8          # sequence length
H = 32         # hidden size
NH = 2         # attention heads
DH = H // NH   # head dim
I = 64         # FFN intermediate size
V = 30         # vocab size
P = 16         # max position embeddings
NLAYERS = 2
LN_EPS = 1e-12
DROPOUT_P = 0.3


def _vmem():
    return pl.BlockSpec(memory_space=pltpu.MemorySpace.VMEM)


def _layernorm(x, g, b):
    mu = jnp.mean(x, axis=-1, keepdims=True)
    var = jnp.mean((x - mu) ** 2, axis=-1, keepdims=True)
    return (x - mu) * jax.lax.rsqrt(var + LN_EPS) * g + b


def _gelu(x):
    # TODO(synk): HF BERT default is exact erf-GELU; tanh approximation used here
    # (lax.erf has no guaranteed Mosaic lowering at these tiny shapes).
    c = 0.7978845608028654  # sqrt(2/pi)
    return 0.5 * x * (1.0 + jnp.tanh(c * (x + 0.044715 * x * x * x)))


# ---------------- single fused Pallas kernel ----------------

def fused_bert_kernel(emb_ref, amask_ref, dmask_ref,
                      emb_ln_g_ref, emb_ln_b_ref,
                      wqkv_ref, bqkv_ref, wo_ref, bo_ref,
                      ln1g_ref, ln1b_ref,
                      wi_ref, bi_ref, wo2_ref, bo2_ref,
                      ln2g_ref, ln2b_ref,
                      pool_w_ref, pool_b_ref,
                      out_ref):
    # embeddings LayerNorm
    h = _layernorm(emb_ref[...], emb_ln_g_ref[...], emb_ln_b_ref[...])   # (B*S, H)
    amask = amask_ref[...]                                               # (B, S)
    scale = 1.0 / (DH ** 0.5)

    # static unroll over layers; all stacked weights are VMEM-resident
    for l in range(NLAYERS):
        # fused QKV projection: one (B*S, H) @ (H, 3H) MXU push
        qkv = (jnp.dot(h, wqkv_ref[l], preferred_element_type=jnp.float32)
               + bqkv_ref[l])                                            # (B*S, 3H)
        q = qkv[:, 0:H]
        k = qkv[:, H:2 * H]
        v = qkv[:, 2 * H:3 * H]

        # attention: context stays in registers (no VMEM scratch, no masked stores)
        batch_ctx = []
        for b in range(B):
            rows = slice(b * S, (b + 1) * S)
            head_ctx = []
            for n in range(NH):
                cols = slice(n * DH, (n + 1) * DH)
                qb = q[rows, cols]                                       # (S, DH)
                kb = k[rows, cols]
                vb = v[rows, cols]
                # contract last dims directly -> no K^T relayout
                s = jax.lax.dot_general(
                    qb, kb, (((1,), (1,)), ((), ())),
                    preferred_element_type=jnp.float32) * scale          # (S, S)
                s = s + amask[b:b + 1, :]                                # additive mask
                m = jnp.max(s, axis=-1, keepdims=True)
                e = jnp.exp(s - m)
                p = e / jnp.sum(e, axis=-1, keepdims=True)
                head_ctx.append(
                    jnp.dot(p, vb, preferred_element_type=jnp.float32))  # (S, DH)
            batch_ctx.append(jnp.concatenate(head_ctx, axis=-1))         # (S, H)
        ctx = jnp.concatenate(batch_ctx, axis=0)                         # (B*S, H)

        attn = (jnp.dot(ctx, wo_ref[l], preferred_element_type=jnp.float32)
                + bo_ref[l])
        x1 = _layernorm(h + attn, ln1g_ref[l], ln1b_ref[l])

        ff = _gelu(jnp.dot(x1, wi_ref[l], preferred_element_type=jnp.float32)
                   + bi_ref[l])
        ff = (jnp.dot(ff, wo2_ref[l], preferred_element_type=jnp.float32)
              + bo2_ref[l])
        h = _layernorm(x1 + ff, ln2g_ref[l], ln2b_ref[l])

    # pooler: dense + tanh on the [CLS] rows, then (pre-scaled) dropout mask
    cls = jnp.concatenate([h[b * S:b * S + 1, :] for b in range(B)], axis=0)  # (B, H)
    pooled = jnp.tanh(
        jnp.dot(cls, pool_w_ref[...], preferred_element_type=jnp.float32)
        + pool_b_ref[...])
    out_ref[...] = pooled * dmask_ref[...]


# ---------------- wrapper ----------------

def feature_extractor_forward(params, input_ids, attention_mask, dropout_key,
                              training=True):
    # Embedding gathers + add are plain-JAX glue; everything else is one kernel.
    word = params["word_emb"][input_ids]                   # (B, S, H)
    pos = params["pos_emb"][:S][None, :, :]                # (1, S, H)
    typ = params["type_emb"][0][None, None, :]             # (1, 1, H)
    emb = (word + pos + typ).reshape(B * S, H).astype(jnp.float32)

    amask = (1.0 - attention_mask.astype(jnp.float32)) * -1e9   # (B, S) additive

    # nn.Dropout(p=0.3): training-mode inverted dropout, mask sampled host-side.
    if training:
        keep = jax.random.bernoulli(dropout_key, 1.0 - DROPOUT_P, (B, H))
        dmask = keep.astype(jnp.float32) * (1.0 / (1.0 - DROPOUT_P))
    else:
        dmask = jnp.ones((B, H), jnp.float32)

    args = (emb, amask, dmask,
            params["emb_ln_g"], params["emb_ln_b"],
            params["wqkv"], params["bqkv"], params["wo"], params["bo"],
            params["ln1g"], params["ln1b"],
            params["wi"], params["bi"], params["wo2"], params["bo2"],
            params["ln2g"], params["ln2b"],
            params["pool_w"], params["pool_b"])

    return pl.pallas_call(
        fused_bert_kernel,
        out_shape=jax.ShapeDtypeStruct((B, H), jnp.float32),
        in_specs=[_vmem() for _ in args],
        out_specs=_vmem(),
    )(*args)


# ---------------- deterministic parameter init ----------------

def init_params(key):
    def dense(k, fin, fout):
        kw, kb = jax.random.split(k)
        w = jax.random.normal(kw, (fin, fout), jnp.float32) * 0.02
        b = jax.random.normal(kb, (1, fout), jnp.float32) * 0.02
        return w, b

    keys = jax.random.split(key, 4 + NLAYERS)
    params = {
        "word_emb": jax.random.normal(keys[0], (V, H), jnp.float32) * 0.02,
        "pos_emb": jax.random.normal(keys[1], (P, H), jnp.float32) * 0.02,
        "type_emb": jax.random.normal(keys[2], (2, H), jnp.float32) * 0.02,
        "emb_ln_g": jnp.ones((1, H), jnp.float32),
        "emb_ln_b": jnp.zeros((1, H), jnp.float32),
    }

    stacks = {name: [] for name in
              ("wqkv", "bqkv", "wo", "bo", "ln1g", "ln1b",
               "wi", "bi", "wo2", "bo2", "ln2g", "ln2b")}
    for li in range(NLAYERS):
        lk = jax.random.split(keys[3 + li], 6)
        wq, bq = dense(lk[0], H, H)
        wk, bk = dense(lk[1], H, H)
        wv, bv = dense(lk[2], H, H)
        wo, bo = dense(lk[3], H, H)
        wi, bi = dense(lk[4], H, I)
        wo2, bo2 = dense(lk[5], I, H)
        stacks["wqkv"].append(jnp.concatenate([wq, wk, wv], axis=1))  # (H, 3H)
        stacks["bqkv"].append(jnp.concatenate([bq, bk, bv], axis=1))  # (1, 3H)
        stacks["wo"].append(wo);  stacks["bo"].append(bo)
        stacks["wi"].append(wi);  stacks["bi"].append(bi)
        stacks["wo2"].append(wo2); stacks["bo2"].append(bo2)
        stacks["ln1g"].append(jnp.ones((1, H), jnp.float32))
        stacks["ln1b"].append(jnp.zeros((1, H), jnp.float32))
        stacks["ln2g"].append(jnp.ones((1, H), jnp.float32))
        stacks["ln2b"].append(jnp.zeros((1, H), jnp.float32))
    for name, vals in stacks.items():
        params[name] = jnp.stack(vals)   # leading NLAYERS axis

    pw, pb = dense(keys[3 + NLAYERS], H, H)
    params["pool_w"] = pw
    params["pool_b"] = pb
    return params


if __name__ == "__main__":
    key = jax.random.PRNGKey(0)
    pkey, ikey, dkey = jax.random.split(key, 3)

    params = init_params(pkey)

    input_ids = jax.random.randint(ikey, (B, S), 0, V, dtype=jnp.int32)
    attention_mask = jnp.ones((B, S), jnp.int32).at[1, S - 2:].set(0)  # ragged 2nd seq

    out = feature_extractor_forward(params, input_ids, attention_mask, dkey,
                                    training=True)
    out = jax.block_until_ready(out)

    assert out.shape == (B, H) and out.dtype == jnp.float32
    assert bool(jnp.all(jnp.isfinite(out)))
    print("KERNEL_OK")
</pallas_src>

<mosaic_0001>
module attributes {stable_mosaic.version = 11 : i64} {
  func.func @fused_bert_kernel(%arg0: memref<16x32xf32, #tpu.memory_space<vmem>>, %arg1: memref<2x8xf32, #tpu.memory_space<vmem>>, %arg2: memref<2x32xf32, #tpu.memory_space<vmem>>, %arg3: memref<1x32xf32, #tpu.memory_space<vmem>>, %arg4: memref<1x32xf32, #tpu.memory_space<vmem>>, %arg5: memref<2x32x96xf32, #tpu.memory_space<vmem>>, %arg6: memref<2x1x96xf32, #tpu.memory_space<vmem>>, %arg7: memref<2x32x32xf32, #tpu.memory_space<vmem>>, %arg8: memref<2x1x32xf32, #tpu.memory_space<vmem>>, %arg9: memref<2x1x32xf32, #tpu.memory_space<vmem>>, %arg10: memref<2x1x32xf32, #tpu.memory_space<vmem>>, %arg11: memref<2x32x64xf32, #tpu.memory_space<vmem>>, %arg12: memref<2x1x64xf32, #tpu.memory_space<vmem>>, %arg13: memref<2x64x32xf32, #tpu.memory_space<vmem>>, %arg14: memref<2x1x32xf32, #tpu.memory_space<vmem>>, %arg15: memref<2x1x32xf32, #tpu.memory_space<vmem>>, %arg16: memref<2x1x32xf32, #tpu.memory_space<vmem>>, %arg17: memref<32x32xf32, #tpu.memory_space<vmem>>, %arg18: memref<1x32xf32, #tpu.memory_space<vmem>>, %arg19: memref<2x32xf32, #tpu.memory_space<vmem>>) attributes {dimension_semantics = [], scalar_prefetch = 0 : i64, scratch_operands = 0 : i64, tpu.core_type = #tpu.core_type<tc>} {
    %c0 = arith.constant 0 : index
    %c0_0 = arith.constant 0 : index
    %0 = vector.load %arg0[%c0, %c0_0] : memref<16x32xf32, #tpu.memory_space<vmem>>, vector<16x32xf32>
    %c0_1 = arith.constant 0 : index
    %c0_2 = arith.constant 0 : index
    %1 = vector.load %arg3[%c0_1, %c0_2] : memref<1x32xf32, #tpu.memory_space<vmem>>, vector<1x32xf32>
    %c0_3 = arith.constant 0 : index
    %c0_4 = arith.constant 0 : index
    %2 = vector.load %arg4[%c0_3, %c0_4] : memref<1x32xf32, #tpu.memory_space<vmem>>, vector<1x32xf32>
    %cst = arith.constant dense<0.000000e+00> : vector<16xf32>
    %3 = vector.multi_reduction <add>, %0, %cst [1] : vector<16x32xf32> to vector<16xf32>
    %4 = vector.shape_cast %3 : vector<16xf32> to vector<16x1xf32>
    %cst_5 = arith.constant 3.200000e+01 : f32
    %5 = vector.broadcast %cst_5 : f32 to vector<16x1xf32>
    %6 = arith.divf %4, %5 : vector<16x1xf32>
    %7 = vector.broadcast %6 : vector<16x1xf32> to vector<16x32xf32>
    %8 = arith.subf %0, %7 : vector<16x32xf32>
    %9 = arith.mulf %8, %8 : vector<16x32xf32>
    %cst_6 = arith.constant dense<0.000000e+00> : vector<16xf32>
    %10 = vector.multi_reduction <add>, %9, %cst_6 [1] : vector<16x32xf32> to vector<16xf32>
    %11 = vector.shape_cast %10 : vector<16xf32> to vector<16x1xf32>
    %cst_7 = arith.constant 3.200000e+01 : f32
    %12 = vector.broadcast %cst_7 : f32 to vector<16x1xf32>
    %13 = arith.divf %11, %12 : vector<16x1xf32>
    %14 = vector.broadcast %6 : vector<16x1xf32> to vector<16x32xf32>
    %15 = arith.subf %0, %14 : vector<16x32xf32>
    %cst_8 = arith.constant 9.99999996E-13 : f32
    %16 = vector.broadcast %cst_8 : f32 to vector<16x1xf32>
    %17 = arith.addf %13, %16 : vector<16x1xf32>
    %18 = math.rsqrt %17 : vector<16x1xf32>
    %19 = vector.broadcast %18 : vector<16x1xf32> to vector<16x32xf32>
    %20 = arith.mulf %15, %19 : vector<16x32xf32>
    %21 = vector.broadcast %1 : vector<1x32xf32> to vector<16x32xf32>
    %22 = arith.mulf %20, %21 : vector<16x32xf32>
    %23 = vector.broadcast %2 : vector<1x32xf32> to vector<16x32xf32>
    %24 = arith.addf %22, %23 : vector<16x32xf32>
    %c0_9 = arith.constant 0 : index
    %c0_10 = arith.constant 0 : index
    %25 = vector.load %arg1[%c0_9, %c0_10] : memref<2x8xf32, #tpu.memory_space<vmem>>, vector<2x8xf32>
    %c0_11 = arith.constant 0 : index
    %c0_12 = arith.constant 0 : index
    %c0_13 = arith.constant 0 : index
    %26 = vector.load %arg5[%c0_11, %c0_12, %c0_13] : memref<2x32x96xf32, #tpu.memory_space<vmem>>, vector<1x32x96xf32>
    %27 = vector.shape_cast %26 : vector<1x32x96xf32> to vector<32x96xf32>
    %cst_14 = arith.constant dense<0.000000e+00> : vector<16x96xf32>
    %28 = tpu.matmul %24, %27, %cst_14 {dimension_numbers = #tpu.dot_dimension_numbers<[1], [0], [0], [1], [0, 0, 1, 1], [], []>} : vector<16x32xf32>, vector<32x96xf32>, vector<16x96xf32> -> vector<16x96xf32>
    %c0_15 = arith.constant 0 : index
    %c0_16 = arith.constant 0 : index
    %c0_17 = arith.constant 0 : index
    %29 = vector.load %arg6[%c0_15, %c0_16, %c0_17] : memref<2x1x96xf32, #tpu.memory_space<vmem>>, vector<1x1x96xf32>
    %30 = vector.shape_cast %29 : vector<1x1x96xf32> to vector<1x96xf32>
    %31 = vector.broadcast %30 : vector<1x96xf32> to vector<16x96xf32>
    %32 = arith.addf %28, %31 : vector<16x96xf32>
    %33 = vector.extract_strided_slice %32 {offsets = [0, 0], sizes = [16, 32], strides = [1, 1]} : vector<16x96xf32> to vector<16x32xf32>
    %34 = vector.extract_strided_slice %32 {offsets = [0, 32], sizes = [16, 32], strides = [1, 1]} : vector<16x96xf32> to vector<16x32xf32>
    %35 = vector.extract_strided_slice %32 {offsets = [0, 64], sizes = [16, 32], strides = [1, 1]} : vector<16x96xf32> to vector<16x32xf32>
    %36 = vector.extract_strided_slice %33 {offsets = [0, 0], sizes = [8, 16], strides = [1, 1]} : vector<16x32xf32> to vector<8x16xf32>
    %37 = vector.extract_strided_slice %34 {offsets = [0, 0], sizes = [8, 16], strides = [1, 1]} : vector<16x32xf32> to vector<8x16xf32>
    %38 = vector.extract_strided_slice %35 {offsets = [0, 0], sizes = [8, 16], strides = [1, 1]} : vector<16x32xf32> to vector<8x16xf32>
    %cst_18 = arith.constant dense<0.000000e+00> : vector<8x8xf32>
    %39 = tpu.matmul %36, %37, %cst_18 {dimension_numbers = #tpu.dot_dimension_numbers<[1], [1], [0], [0], [0, 0, 1, 0], [], []>} : vector<8x16xf32>, vector<8x16xf32>, vector<8x8xf32> -> vector<8x8xf32>
    %cst_19 = arith.constant 2.500000e-01 : f32
    %40 = vector.broadcast %cst_19 : f32 to vector<8x8xf32>
    %41 = arith.mulf %39, %40 : vector<8x8xf32>
    %42 = vector.extract_strided_slice %25 {offsets = [0, 0], sizes = [1, 8], strides = [1, 1]} : vector<2x8xf32> to vector<1x8xf32>
    %43 = vector.broadcast %42 : vector<1x8xf32> to vector<8x8xf32>
    %44 = arith.addf %41, %43 : vector<8x8xf32>
    %cst_20 = arith.constant dense<0xFF800000> : vector<8xf32>
    %45 = vector.multi_reduction <maximumf>, %44, %cst_20 [1] : vector<8x8xf32> to vector<8xf32>
    %46 = vector.shape_cast %45 : vector<8xf32> to vector<8x1xf32>
    %47 = vector.broadcast %46 : vector<8x1xf32> to vector<8x8xf32>
    %48 = arith.subf %44, %47 : vector<8x8xf32>
    %49 = math.exp %48 : vector<8x8xf32>
    %cst_21 = arith.constant dense<0.000000e+00> : vector<8xf32>
    %50 = vector.multi_reduction <add>, %49, %cst_21 [1] : vector<8x8xf32> to vector<8xf32>
    %51 = vector.shape_cast %50 : vector<8xf32> to vector<8x1xf32>
    %52 = vector.broadcast %51 : vector<8x1xf32> to vector<8x8xf32>
    %53 = arith.divf %49, %52 : vector<8x8xf32>
    %cst_22 = arith.constant dense<0.000000e+00> : vector<8x16xf32>
    %54 = tpu.matmul %53, %38, %cst_22 {dimension_numbers = #tpu.dot_dimension_numbers<[1], [0], [0], [1], [0, 0, 1, 1], [], []>} : vector<8x8xf32>, vector<8x16xf32>, vector<8x16xf32> -> vector<8x16xf32>
    %55 = vector.extract_strided_slice %33 {offsets = [0, 16], sizes = [8, 16], strides = [1, 1]} : vector<16x32xf32> to vector<8x16xf32>
    %56 = vector.extract_strided_slice %34 {offsets = [0, 16], sizes = [8, 16], strides = [1, 1]} : vector<16x32xf32> to vector<8x16xf32>
    %57 = vector.extract_strided_slice %35 {offsets = [0, 16], sizes = [8, 16], strides = [1, 1]} : vector<16x32xf32> to vector<8x16xf32>
    %cst_23 = arith.constant dense<0.000000e+00> : vector<8x8xf32>
    %58 = tpu.matmul %55, %56, %cst_23 {dimension_numbers = #tpu.dot_dimension_numbers<[1], [1], [0], [0], [0, 0, 1, 0], [], []>} : vector<8x16xf32>, vector<8x16xf32>, vector<8x8xf32> -> vector<8x8xf32>
    %cst_24 = arith.constant 2.500000e-01 : f32
    %59 = vector.broadcast %cst_24 : f32 to vector<8x8xf32>
    %60 = arith.mulf %58, %59 : vector<8x8xf32>
    %61 = vector.extract_strided_slice %25 {offsets = [0, 0], sizes = [1, 8], strides = [1, 1]} : vector<2x8xf32> to vector<1x8xf32>
    %62 = vector.broadcast %61 : vector<1x8xf32> to vector<8x8xf32>
    %63 = arith.addf %60, %62 : vector<8x8xf32>
    %cst_25 = arith.constant dense<0xFF800000> : vector<8xf32>
    %64 = vector.multi_reduction <maximumf>, %63, %cst_25 [1] : vector<8x8xf32> to vector<8xf32>
    %65 = vector.shape_cast %64 : vector<8xf32> to vector<8x1xf32>
    %66 = vector.broadcast %65 : vector<8x1xf32> to vector<8x8xf32>
    %67 = arith.subf %63, %66 : vector<8x8xf32>
    %68 = math.exp %67 : vector<8x8xf32>
    %cst_26 = arith.constant dense<0.000000e+00> : vector<8xf32>
    %69 = vector.multi_reduction <add>, %68, %cst_26 [1] : vector<8x8xf32> to vector<8xf32>
    %70 = vector.shape_cast %69 : vector<8xf32> to vector<8x1xf32>
    %71 = vector.broadcast %70 : vector<8x1xf32> to vector<8x8xf32>
    %72 = arith.divf %68, %71 : vector<8x8xf32>
    %cst_27 = arith.constant dense<0.000000e+00> : vector<8x16xf32>
    %73 = tpu.matmul %72, %57, %cst_27 {dimension_numbers = #tpu.dot_dimension_numbers<[1], [0], [0], [1], [0, 0, 1, 1], [], []>} : vector<8x8xf32>, vector<8x16xf32>, vector<8x16xf32> -> vector<8x16xf32>
    %74 = tpu.concatenate %54, %73 in 1 : vector<8x16xf32>, vector<8x16xf32> -> vector<8x32xf32>
    %75 = vector.extract_strided_slice %33 {offsets = [8, 0], sizes = [8, 16], strides = [1, 1]} : vector<16x32xf32> to vector<8x16xf32>
    %76 = vector.extract_strided_slice %34 {offsets = [8, 0], sizes = [8, 16], strides = [1, 1]} : vector<16x32xf32> to vector<8x16xf32>
    %77 = vector.extract_strided_slice %35 {offsets = [8, 0], sizes = [8, 16], strides = [1, 1]} : vector<16x32xf32> to vector<8x16xf32>
    %cst_28 = arith.constant dense<0.000000e+00> : vector<8x8xf32>
    %78 = tpu.matmul %75, %76, %cst_28 {dimension_numbers = #tpu.dot_dimension_numbers<[1], [1], [0], [0], [0, 0, 1, 0], [], []>} : vector<8x16xf32>, vector<8x16xf32>, vector<8x8xf32> -> vector<8x8xf32>
    %cst_29 = arith.constant 2.500000e-01 : f32
    %79 = vector.broadcast %cst_29 : f32 to vector<8x8xf32>
    %80 = arith.mulf %78, %79 : vector<8x8xf32>
    %81 = vector.extract_strided_slice %25 {offsets = [1, 0], sizes = [1, 8], strides = [1, 1]} : vector<2x8xf32> to vector<1x8xf32>
    %82 = vector.broadcast %81 : vector<1x8xf32> to vector<8x8xf32>
    %83 = arith.addf %80, %82 : vector<8x8xf32>
    %cst_30 = arith.constant dense<0xFF800000> : vector<8xf32>
    %84 = vector.multi_reduction <maximumf>, %83, %cst_30 [1] : vector<8x8xf32> to vector<8xf32>
    %85 = vector.shape_cast %84 : vector<8xf32> to vector<8x1xf32>
    %86 = vector.broadcast %85 : vector<8x1xf32> to vector<8x8xf32>
    %87 = arith.subf %83, %86 : vector<8x8xf32>
    %88 = math.exp %87 : vector<8x8xf32>
    %cst_31 = arith.constant dense<0.000000e+00> : vector<8xf32>
    %89 = vector.multi_reduction <add>, %88, %cst_31 [1] : vector<8x8xf32> to vector<8xf32>
    %90 = vector.shape_cast %89 : vector<8xf32> to vector<8x1xf32>
    %91 = vector.broadcast %90 : vector<8x1xf32> to vector<8x8xf32>
    %92 = arith.divf %88, %91 : vector<8x8xf32>
    %cst_32 = arith.constant dense<0.000000e+00> : vector<8x16xf32>
    %93 = tpu.matmul %92, %77, %cst_32 {dimension_numbers = #tpu.dot_dimension_numbers<[1], [0], [0], [1], [0, 0, 1, 1], [], []>} : vector<8x8xf32>, vector<8x16xf32>, vector<8x16xf32> -> vector<8x16xf32>
    %94 = vector.extract_strided_slice %33 {offsets = [8, 16], sizes = [8, 16], strides = [1, 1]} : vector<16x32xf32> to vector<8x16xf32>
    %95 = vector.extract_strided_slice %34 {offsets = [8, 16], sizes = [8, 16], strides = [1, 1]} : vector<16x32xf32> to vector<8x16xf32>
    %96 = vector.extract_strided_slice %35 {offsets = [8, 16], sizes = [8, 16], strides = [1, 1]} : vector<16x32xf32> to vector<8x16xf32>
    %cst_33 = arith.constant dense<0.000000e+00> : vector<8x8xf32>
    %97 = tpu.matmul %94, %95, %cst_33 {dimension_numbers = #tpu.dot_dimension_numbers<[1], [1], [0], [0], [0, 0, 1, 0], [], []>} : vector<8x16xf32>, vector<8x16xf32>, vector<8x8xf32> -> vector<8x8xf32>
    %cst_34 = arith.constant 2.500000e-01 : f32
    %98 = vector.broadcast %cst_34 : f32 to vector<8x8xf32>
    %99 = arith.mulf %97, %98 : vector<8x8xf32>
    %100 = vector.extract_strided_slice %25 {offsets = [1, 0], sizes = [1, 8], strides = [1, 1]} : vector<2x8xf32> to vector<1x8xf32>
    %101 = vector.broadcast %100 : vector<1x8xf32> to vector<8x8xf32>
    %102 = arith.addf %99, %101 : vector<8x8xf32>
    %cst_35 = arith.constant dense<0xFF800000> : vector<8xf32>
    %103 = vector.multi_reduction <maximumf>, %102, %cst_35 [1] : vector<8x8xf32> to vector<8xf32>
    %104 = vector.shape_cast %103 : vector<8xf32> to vector<8x1xf32>
    %105 = vector.broadcast %104 : vector<8x1xf32> to vector<8x8xf32>
    %106 = arith.subf %102, %105 : vector<8x8xf32>
    %107 = math.exp %106 : vector<8x8xf32>
    %cst_36 = arith.constant dense<0.000000e+00> : vector<8xf32>
    %108 = vector.multi_reduction <add>, %107, %cst_36 [1] : vector<8x8xf32> to vector<8xf32>
    %109 = vector.shape_cast %108 : vector<8xf32> to vector<8x1xf32>
    %110 = vector.broadcast %109 : vector<8x1xf32> to vector<8x8xf32>
    %111 = arith.divf %107, %110 : vector<8x8xf32>
    %cst_37 = arith.constant dense<0.000000e+00> : vector<8x16xf32>
    %112 = tpu.matmul %111, %96, %cst_37 {dimension_numbers = #tpu.dot_dimension_numbers<[1], [0], [0], [1], [0, 0, 1, 1], [], []>} : vector<8x8xf32>, vector<8x16xf32>, vector<8x16xf32> -> vector<8x16xf32>
    %113 = tpu.concatenate %93, %112 in 1 : vector<8x16xf32>, vector<8x16xf32> -> vector<8x32xf32>
    %114 = tpu.concatenate %74, %113 in 0 : vector<8x32xf32>, vector<8x32xf32> -> vector<16x32xf32>
    %c0_38 = arith.constant 0 : index
    %c0_39 = arith.constant 0 : index
    %c0_40 = arith.constant 0 : index
    %115 = vector.load %arg7[%c0_38, %c0_39, %c0_40] : memref<2x32x32xf32, #tpu.memory_space<vmem>>, vector<1x32x32xf32>
    %116 = vector.shape_cast %115 : vector<1x32x32xf32> to vector<32x32xf32>
    %cst_41 = arith.constant dense<0.000000e+00> : vector<16x32xf32>
    %117 = tpu.matmul %114, %116, %cst_41 {dimension_numbers = #tpu.dot_dimension_numbers<[1], [0], [0], [1], [0, 0, 1, 1], [], []>} : vector<16x32xf32>, vector<32x32xf32>, vector<16x32xf32> -> vector<16x32xf32>
    %c0_42 = arith.constant 0 : index
    %c0_43 = arith.constant 0 : index
    %c0_44 = arith.constant 0 : index
    %118 = vector.load %arg8[%c0_42, %c0_43, %c0_44] : memref<2x1x32xf32, #tpu.memory_space<vmem>>, vector<1x1x32xf32>
    %119 = vector.shape_cast %118 : vector<1x1x32xf32> to vector<1x32xf32>
    %120 = vector.broadcast %119 : vector<1x32xf32> to vector<16x32xf32>
    %121 = arith.addf %117, %120 : vector<16x32xf32>
    %122 = arith.addf %24, %121 : vector<16x32xf32>
    %c0_45 = arith.constant 0 : index
    %c0_46 = arith.constant 0 : index
    %c0_47 = arith.constant 0 : index
    %123 = vector.load %arg9[%c0_45, %c0_46, %c0_47] : memref<2x1x32xf32, #tpu.memory_space<vmem>>, vector<1x1x32xf32>
    %124 = vector.shape_cast %123 : vector<1x1x32xf32> to vector<1x32xf32>
    %c0_48 = arith.constant 0 : index
    %c0_49 = arith.constant 0 : index
    %c0_50 = arith.constant 0 : index
    %125 = vector.load %arg10[%c0_48, %c0_49, %c0_50] : memref<2x1x32xf32, #tpu.memory_space<vmem>>, vector<1x1x32xf32>
    %126 = vector.shape_cast %125 : vector<1x1x32xf32> to vector<1x32xf32>
    %cst_51 = arith.constant dense<0.000000e+00> : vector<16xf32>
    %127 = vector.multi_reduction <add>, %122, %cst_51 [1] : vector<16x32xf32> to vector<16xf32>
    %128 = vector.shape_cast %127 : vector<16xf32> to vector<16x1xf32>
    %cst_52 = arith.constant 3.200000e+01 : f32
    %129 = vector.broadcast %cst_52 : f32 to vector<16x1xf32>
    %130 = arith.divf %128, %129 : vector<16x1xf32>
    %131 = vector.broadcast %130 : vector<16x1xf32> to vector<16x32xf32>
    %132 = arith.subf %122, %131 : vector<16x32xf32>
    %133 = arith.mulf %132, %132 : vector<16x32xf32>
    %cst_53 = arith.constant dense<0.000000e+00> : vector<16xf32>
    %134 = vector.multi_reduction <add>, %133, %cst_53 [1] : vector<16x32xf32> to vector<16xf32>
    %135 = vector.shape_cast %134 : vector<16xf32> to vector<16x1xf32>
    %cst_54 = arith.constant 3.200000e+01 : f32
    %136 = vector.broadcast %cst_54 : f32 to vector<16x1xf32>
    %137 = arith.divf %135, %136 : vector<16x1xf32>
    %138 = vector.broadcast %130 : vector<16x1xf32> to vector<16x32xf32>
    %139 = arith.subf %122, %138 : vector<16x32xf32>
    %cst_55 = arith.constant 9.99999996E-13 : f32
    %140 = vector.broadcast %cst_55 : f32 to vector<16x1xf32>
    %141 = arith.addf %137, %140 : vector<16x1xf32>
    %142 = math.rsqrt %141 : vector<16x1xf32>
    %143 = vector.broadcast %142 : vector<16x1xf32> to vector<16x32xf32>
    %144 = arith.mulf %139, %143 : vector<16x32xf32>
    %145 = vector.broadcast %124 : vector<1x32xf32> to vector<16x32xf32>
    %146 = arith.mulf %144, %145 : vector<16x32xf32>
    %147 = vector.broadcast %126 : vector<1x32xf32> to vector<16x32xf32>
    %148 = arith.addf %146, %147 : vector<16x32xf32>
    %c0_56 = arith.constant 0 : index
    %c0_57 = arith.constant 0 : index
    %c0_58 = arith.constant 0 : index
    %149 = vector.load %arg11[%c0_56, %c0_57, %c0_58] : memref<2x32x64xf32, #tpu.memory_space<vmem>>, vector<1x32x64xf32>
    %150 = vector.shape_cast %149 : vector<1x32x64xf32> to vector<32x64xf32>
    %cst_59 = arith.constant dense<0.000000e+00> : vector<16x64xf32>
    %151 = tpu.matmul %148, %150, %cst_59 {dimension_numbers = #tpu.dot_dimension_numbers<[1], [0], [0], [1], [0, 0, 1, 1], [], []>} : vector<16x32xf32>, vector<32x64xf32>, vector<16x64xf32> -> vector<16x64xf32>
    %c0_60 = arith.constant 0 : index
    %c0_61 = arith.constant 0 : index
    %c0_62 = arith.constant 0 : index
    %152 = vector.load %arg12[%c0_60, %c0_61, %c0_62] : memref<2x1x64xf32, #tpu.memory_space<vmem>>, vector<1x1x64xf32>
    %153 = vector.shape_cast %152 : vector<1x1x64xf32> to vector<1x64xf32>
    %154 = vector.broadcast %153 : vector<1x64xf32> to vector<16x64xf32>
    %155 = arith.addf %151, %154 : vector<16x64xf32>
    %cst_63 = arith.constant 5.000000e-01 : f32
    %156 = vector.broadcast %cst_63 : f32 to vector<16x64xf32>
    %157 = arith.mulf %156, %155 : vector<16x64xf32>
    %cst_64 = arith.constant 4.471500e-02 : f32
    %158 = vector.broadcast %cst_64 : f32 to vector<16x64xf32>
    %159 = arith.mulf %158, %155 : vector<16x64xf32>
    %160 = arith.mulf %159, %155 : vector<16x64xf32>
    %161 = arith.mulf %160, %155 : vector<16x64xf32>
    %162 = arith.addf %155, %161 : vector<16x64xf32>
    %cst_65 = arith.constant 0.797884583 : f32
    %163 = vector.broadcast %cst_65 : f32 to vector<16x64xf32>
    %164 = arith.mulf %163, %162 : vector<16x64xf32>
    %165 = math.tanh %164 : vector<16x64xf32>
    %cst_66 = arith.constant 1.000000e+00 : f32
    %166 = vector.broadcast %cst_66 : f32 to vector<16x64xf32>
    %167 = arith.addf %166, %165 : vector<16x64xf32>
    %168 = arith.mulf %157, %167 : vector<16x64xf32>
    %c0_67 = arith.constant 0 : index
    %c0_68 = arith.constant 0 : index
    %c0_69 = arith.constant 0 : index
    %169 = vector.load %arg13[%c0_67, %c0_68, %c0_69] : memref<2x64x32xf32, #tpu.memory_space<vmem>>, vector<1x64x32xf32>
    %170 = vector.shape_cast %169 : vector<1x64x32xf32> to vector<64x32xf32>
    %cst_70 = arith.constant dense<0.000000e+00> : vector<16x32xf32>
    %171 = tpu.matmul %168, %170, %cst_70 {dimension_numbers = #tpu.dot_dimension_numbers<[1], [0], [0], [1], [0, 0, 1, 1], [], []>} : vector<16x64xf32>, vector<64x32xf32>, vector<16x32xf32> -> vector<16x32xf32>
    %c0_71 = arith.constant 0 : index
    %c0_72 = arith.constant 0 : index
    %c0_73 = arith.constant 0 : index
    %172 = vector.load %arg14[%c0_71, %c0_72, %c0_73] : memref<2x1x32xf32, #tpu.memory_space<vmem>>, vector<1x1x32xf32>
    %173 = vector.shape_cast %172 : vector<1x1x32xf32> to vector<1x32xf32>
    %174 = vector.broadcast %173 : vector<1x32xf32> to vector<16x32xf32>
    %175 = arith.addf %171, %174 : vector<16x32xf32>
    %176 = arith.addf %148, %175 : vector<16x32xf32>
    %c0_74 = arith.constant 0 : index
    %c0_75 = arith.constant 0 : index
    %c0_76 = arith.constant 0 : index
    %177 = vector.load %arg15[%c0_74, %c0_75, %c0_76] : memref<2x1x32xf32, #tpu.memory_space<vmem>>, vector<1x1x32xf32>
    %178 = vector.shape_cast %177 : vector<1x1x32xf32> to vector<1x32xf32>
    %c0_77 = arith.constant 0 : index
    %c0_78 = arith.constant 0 : index
    %c0_79 = arith.constant 0 : index
    %179 = vector.load %arg16[%c0_77, %c0_78, %c0_79] : memref<2x1x32xf32, #tpu.memory_space<vmem>>, vector<1x1x32xf32>
    %180 = vector.shape_cast %179 : vector<1x1x32xf32> to vector<1x32xf32>
    %cst_80 = arith.constant dense<0.000000e+00> : vector<16xf32>
    %181 = vector.multi_reduction <add>, %176, %cst_80 [1] : vector<16x32xf32> to vector<16xf32>
    %182 = vector.shape_cast %181 : vector<16xf32> to vector<16x1xf32>
    %cst_81 = arith.constant 3.200000e+01 : f32
    %183 = vector.broadcast %cst_81 : f32 to vector<16x1xf32>
    %184 = arith.divf %182, %183 : vector<16x1xf32>
    %185 = vector.broadcast %184 : vector<16x1xf32> to vector<16x32xf32>
    %186 = arith.subf %176, %185 : vector<16x32xf32>
    %187 = arith.mulf %186, %186 : vector<16x32xf32>
    %cst_82 = arith.constant dense<0.000000e+00> : vector<16xf32>
    %188 = vector.multi_reduction <add>, %187, %cst_82 [1] : vector<16x32xf32> to vector<16xf32>
    %189 = vector.shape_cast %188 : vector<16xf32> to vector<16x1xf32>
    %cst_83 = arith.constant 3.200000e+01 : f32
    %190 = vector.broadcast %cst_83 : f32 to vector<16x1xf32>
    %191 = arith.divf %189, %190 : vector<16x1xf32>
    %192 = vector.broadcast %184 : vector<16x1xf32> to vector<16x32xf32>
    %193 = arith.subf %176, %192 : vector<16x32xf32>
    %cst_84 = arith.constant 9.99999996E-13 : f32
    %194 = vector.broadcast %cst_84 : f32 to vector<16x1xf32>
    %195 = arith.addf %191, %194 : vector<16x1xf32>
    %196 = math.rsqrt %195 : vector<16x1xf32>
    %197 = vector.broadcast %196 : vector<16x1xf32> to vector<16x32xf32>
    %198 = arith.mulf %193, %197 : vector<16x32xf32>
    %199 = vector.broadcast %178 : vector<1x32xf32> to vector<16x32xf32>
    %200 = arith.mulf %198, %199 : vector<16x32xf32>
    %201 = vector.broadcast %180 : vector<1x32xf32> to vector<16x32xf32>
    %202 = arith.addf %200, %201 : vector<16x32xf32>
    %c1 = arith.constant 1 : index
    %c0_85 = arith.constant 0 : index
    %c0_86 = arith.constant 0 : index
    %203 = vector.load %arg5[%c1, %c0_85, %c0_86] : memref<2x32x96xf32, #tpu.memory_space<vmem>>, vector<1x32x96xf32>
    %204 = vector.shape_cast %203 : vector<1x32x96xf32> to vector<32x96xf32>
    %cst_87 = arith.constant dense<0.000000e+00> : vector<16x96xf32>
    %205 = tpu.matmul %202, %204, %cst_87 {dimension_numbers = #tpu.dot_dimension_numbers<[1], [0], [0], [1], [0, 0, 1, 1], [], []>} : vector<16x32xf32>, vector<32x96xf32>, vector<16x96xf32> -> vector<16x96xf32>
    %c1_88 = arith.constant 1 : index
    %c0_89 = arith.constant 0 : index
    %c0_90 = arith.constant 0 : index
    %206 = vector.load %arg6[%c1_88, %c0_89, %c0_90] : memref<2x1x96xf32, #tpu.memory_space<vmem>>, vector<1x1x96xf32>
    %207 = vector.shape_cast %206 : vector<1x1x96xf32> to vector<1x96xf32>
    %208 = vector.broadcast %207 : vector<1x96xf32> to vector<16x96xf32>
    %209 = arith.addf %205, %208 : vector<16x96xf32>
    %210 = vector.extract_strided_slice %209 {offsets = [0, 0], sizes = [16, 32], strides = [1, 1]} : vector<16x96xf32> to vector<16x32xf32>
    %211 = vector.extract_strided_slice %209 {offsets = [0, 32], sizes = [16, 32], strides = [1, 1]} : vector<16x96xf32> to vector<16x32xf32>
    %212 = vector.extract_strided_slice %209 {offsets = [0, 64], sizes = [16, 32], strides = [1, 1]} : vector<16x96xf32> to vector<16x32xf32>
    %213 = vector.extract_strided_slice %210 {offsets = [0, 0], sizes = [8, 16], strides = [1, 1]} : vector<16x32xf32> to vector<8x16xf32>
    %214 = vector.extract_strided_slice %211 {offsets = [0, 0], sizes = [8, 16], strides = [1, 1]} : vector<16x32xf32> to vector<8x16xf32>
    %215 = vector.extract_strided_slice %212 {offsets = [0, 0], sizes = [8, 16], strides = [1, 1]} : vector<16x32xf32> to vector<8x16xf32>
    %cst_91 = arith.constant dense<0.000000e+00> : vector<8x8xf32>
    %216 = tpu.matmul %213, %214, %cst_91 {dimension_numbers = #tpu.dot_dimension_numbers<[1], [1], [0], [0], [0, 0, 1, 0], [], []>} : vector<8x16xf32>, vector<8x16xf32>, vector<8x8xf32> -> vector<8x8xf32>
    %cst_92 = arith.constant 2.500000e-01 : f32
    %217 = vector.broadcast %cst_92 : f32 to vector<8x8xf32>
    %218 = arith.mulf %216, %217 : vector<8x8xf32>
    %219 = vector.extract_strided_slice %25 {offsets = [0, 0], sizes = [1, 8], strides = [1, 1]} : vector<2x8xf32> to vector<1x8xf32>
    %220 = vector.broadcast %219 : vector<1x8xf32> to vector<8x8xf32>
    %221 = arith.addf %218, %220 : vector<8x8xf32>
    %cst_93 = arith.constant dense<0xFF800000> : vector<8xf32>
    %222 = vector.multi_reduction <maximumf>, %221, %cst_93 [1] : vector<8x8xf32> to vector<8xf32>
    %223 = vector.shape_cast %222 : vector<8xf32> to vector<8x1xf32>
    %224 = vector.broadcast %223 : vector<8x1xf32> to vector<8x8xf32>
    %225 = arith.subf %221, %224 : vector<8x8xf32>
    %226 = math.exp %225 : vector<8x8xf32>
    %cst_94 = arith.constant dense<0.000000e+00> : vector<8xf32>
    %227 = vector.multi_reduction <add>, %226, %cst_94 [1] : vector<8x8xf32> to vector<8xf32>
    %228 = vector.shape_cast %227 : vector<8xf32> to vector<8x1xf32>
    %229 = vector.broadcast %228 : vector<8x1xf32> to vector<8x8xf32>
    %230 = arith.divf %226, %229 : vector<8x8xf32>
    %cst_95 = arith.constant dense<0.000000e+00> : vector<8x16xf32>
    %231 = tpu.matmul %230, %215, %cst_95 {dimension_numbers = #tpu.dot_dimension_numbers<[1], [0], [0], [1], [0, 0, 1, 1], [], []>} : vector<8x8xf32>, vector<8x16xf32>, vector<8x16xf32> -> vector<8x16xf32>
    %232 = vector.extract_strided_slice %210 {offsets = [0, 16], sizes = [8, 16], strides = [1, 1]} : vector<16x32xf32> to vector<8x16xf32>
    %233 = vector.extract_strided_slice %211 {offsets = [0, 16], sizes = [8, 16], strides = [1, 1]} : vector<16x32xf32> to vector<8x16xf32>
    %234 = vector.extract_strided_slice %212 {offsets = [0, 16], sizes = [8, 16], strides = [1, 1]} : vector<16x32xf32> to vector<8x16xf32>
    %cst_96 = arith.constant dense<0.000000e+00> : vector<8x8xf32>
    %235 = tpu.matmul %232, %233, %cst_96 {dimension_numbers = #tpu.dot_dimension_numbers<[1], [1], [0], [0], [0, 0, 1, 0], [], []>} : vector<8x16xf32>, vector<8x16xf32>, vector<8x8xf32> -> vector<8x8xf32>
    %cst_97 = arith.constant 2.500000e-01 : f32
    %236 = vector.broadcast %cst_97 : f32 to vector<8x8xf32>
    %237 = arith.mulf %235, %236 : vector<8x8xf32>
    %238 = vector.extract_strided_slice %25 {offsets = [0, 0], sizes = [1, 8], strides = [1, 1]} : vector<2x8xf32> to vector<1x8xf32>
    %239 = vector.broadcast %238 : vector<1x8xf32> to vector<8x8xf32>
    %240 = arith.addf %237, %239 : vector<8x8xf32>
    %cst_98 = arith.constant dense<0xFF800000> : vector<8xf32>
    %241 = vector.multi_reduction <maximumf>, %240, %cst_98 [1] : vector<8x8xf32> to vector<8xf32>
    %242 = vector.shape_cast %241 : vector<8xf32> to vector<8x1xf32>
    %243 = vector.broadcast %242 : vector<8x1xf32> to vector<8x8xf32>
    %244 = arith.subf %240, %243 : vector<8x8xf32>
    %245 = math.exp %244 : vector<8x8xf32>
    %cst_99 = arith.constant dense<0.000000e+00> : vector<8xf32>
    %246 = vector.multi_reduction <add>, %245, %cst_99 [1] : vector<8x8xf32> to vector<8xf32>
    %247 = vector.shape_cast %246 : vector<8xf32> to vector<8x1xf32>
    %248 = vector.broadcast %247 : vector<8x1xf32> to vector<8x8xf32>
    %249 = arith.divf %245, %248 : vector<8x8xf32>
    %cst_100 = arith.constant dense<0.000000e+00> : vector<8x16xf32>
    %250 = tpu.matmul %249, %234, %cst_100 {dimension_numbers = #tpu.dot_dimension_numbers<[1], [0], [0], [1], [0, 0, 1, 1], [], []>} : vector<8x8xf32>, vector<8x16xf32>, vector<8x16xf32> -> vector<8x16xf32>
    %251 = tpu.concatenate %231, %250 in 1 : vector<8x16xf32>, vector<8x16xf32> -> vector<8x32xf32>
    %252 = vector.extract_strided_slice %210 {offsets = [8, 0], sizes = [8, 16], strides = [1, 1]} : vector<16x32xf32> to vector<8x16xf32>
    %253 = vector.extract_strided_slice %211 {offsets = [8, 0], sizes = [8, 16], strides = [1, 1]} : vector<16x32xf32> to vector<8x16xf32>
    %254 = vector.extract_strided_slice %212 {offsets = [8, 0], sizes = [8, 16], strides = [1, 1]} : vector<16x32xf32> to vector<8x16xf32>
    %cst_101 = arith.constant dense<0.000000e+00> : vector<8x8xf32>
    %255 = tpu.matmul %252, %253, %cst_101 {dimension_numbers = #tpu.dot_dimension_numbers<[1], [1], [0], [0], [0, 0, 1, 0], [], []>} : vector<8x16xf32>, vector<8x16xf32>, vector<8x8xf32> -> vector<8x8xf32>
    %cst_102 = arith.constant 2.500000e-01 : f32
    %256 = vector.broadcast %cst_102 : f32 to vector<8x8xf32>
    %257 = arith.mulf %255, %256 : vector<8x8xf32>
    %258 = vector.extract_strided_slice %25 {offsets = [1, 0], sizes = [1, 8], strides = [1, 1]} : vector<2x8xf32> to vector<1x8xf32>
    %259 = vector.broadcast %258 : vector<1x8xf32> to vector<8x8xf32>
    %260 = arith.addf %257, %259 : vector<8x8xf32>
    %cst_103 = arith.constant dense<0xFF800000> : vector<8xf32>
    %261 = vector.multi_reduction <maximumf>, %260, %cst_103 [1] : vector<8x8xf32> to vector<8xf32>
    %262 = vector.shape_cast %261 : vector<8xf32> to vector<8x1xf32>
    %263 = vector.broadcast %262 : vector<8x1xf32> to vector<8x8xf32>
    %264 = arith.subf %260, %263 : vector<8x8xf32>
    %265 = math.exp %264 : vector<8x8xf32>
    %cst_104 = arith.constant dense<0.000000e+00> : vector<8xf32>
    %266 = vector.multi_reduction <add>, %265, %cst_104 [1] : vector<8x8xf32> to vector<8xf32>
    %267 = vector.shape_cast %266 : vector<8xf32> to vector<8x1xf32>
    %268 = vector.broadcast %267 : vector<8x1xf32> to vector<8x8xf32>
    %269 = arith.divf %265, %268 : vector<8x8xf32>
    %cst_105 = arith.constant dense<0.000000e+00> : vector<8x16xf32>
    %270 = tpu.matmul %269, %254, %cst_105 {dimension_numbers = #tpu.dot_dimension_numbers<[1], [0], [0], [1], [0, 0, 1, 1], [], []>} : vector<8x8xf32>, vector<8x16xf32>, vector<8x16xf32> -> vector<8x16xf32>
    %271 = vector.extract_strided_slice %210 {offsets = [8, 16], sizes = [8, 16], strides = [1, 1]} : vector<16x32xf32> to vector<8x16xf32>
    %272 = vector.extract_strided_slice %211 {offsets = [8, 16], sizes = [8, 16], strides = [1, 1]} : vector<16x32xf32> to vector<8x16xf32>
    %273 = vector.extract_strided_slice %212 {offsets = [8, 16], sizes = [8, 16], strides = [1, 1]} : vector<16x32xf32> to vector<8x16xf32>
    %cst_106 = arith.constant dense<0.000000e+00> : vector<8x8xf32>
    %274 = tpu.matmul %271, %272, %cst_106 {dimension_numbers = #tpu.dot_dimension_numbers<[1], [1], [0], [0], [0, 0, 1, 0], [], []>} : vector<8x16xf32>, vector<8x16xf32>, vector<8x8xf32> -> vector<8x8xf32>
    %cst_107 = arith.constant 2.500000e-01 : f32
    %275 = vector.broadcast %cst_107 : f32 to vector<8x8xf32>
    %276 = arith.mulf %274, %275 : vector<8x8xf32>
    %277 = vector.extract_strided_slice %25 {offsets = [1, 0], sizes = [1, 8], strides = [1, 1]} : vector<2x8xf32> to vector<1x8xf32>
    %278 = vector.broadcast %277 : vector<1x8xf32> to vector<8x8xf32>
    %279 = arith.addf %276, %278 : vector<8x8xf32>
    %cst_108 = arith.constant dense<0xFF800000> : vector<8xf32>
    %280 = vector.multi_reduction <maximumf>, %279, %cst_108 [1] : vector<8x8xf32> to vector<8xf32>
    %281 = vector.shape_cast %280 : vector<8xf32> to vector<8x1xf32>
    %282 = vector.broadcast %281 : vector<8x1xf32> to vector<8x8xf32>
    %283 = arith.subf %279, %282 : vector<8x8xf32>
    %284 = math.exp %283 : vector<8x8xf32>
    %cst_109 = arith.constant dense<0.000000e+00> : vector<8xf32>
    %285 = vector.multi_reduction <add>, %284, %cst_109 [1] : vector<8x8xf32> to vector<8xf32>
    %286 = vector.shape_cast %285 : vector<8xf32> to vector<8x1xf32>
    %287 = vector.broadcast %286 : vector<8x1xf32> to vector<8x8xf32>
    %288 = arith.divf %284, %287 : vector<8x8xf32>
    %cst_110 = arith.constant dense<0.000000e+00> : vector<8x16xf32>
    %289 = tpu.matmul %288, %273, %cst_110 {dimension_numbers = #tpu.dot_dimension_numbers<[1], [0], [0], [1], [0, 0, 1, 1], [], []>} : vector<8x8xf32>, vector<8x16xf32>, vector<8x16xf32> -> vector<8x16xf32>
    %290 = tpu.concatenate %270, %289 in 1 : vector<8x16xf32>, vector<8x16xf32> -> vector<8x32xf32>
    %291 = tpu.concatenate %251, %290 in 0 : vector<8x32xf32>, vector<8x32xf32> -> vector<16x32xf32>
    %c1_111 = arith.constant 1 : index
    %c0_112 = arith.constant 0 : index
    %c0_113 = arith.constant 0 : index
    %292 = vector.load %arg7[%c1_111, %c0_112, %c0_113] : memref<2x32x32xf32, #tpu.memory_space<vmem>>, vector<1x32x32xf32>
    %293 = vector.shape_cast %292 : vector<1x32x32xf32> to vector<32x32xf32>
    %cst_114 = arith.constant dense<0.000000e+00> : vector<16x32xf32>
    %294 = tpu.matmul %291, %293, %cst_114 {dimension_numbers = #tpu.dot_dimension_numbers<[1], [0], [0], [1], [0, 0, 1, 1], [], []>} : vector<16x32xf32>, vector<32x32xf32>, vector<16x32xf32> -> vector<16x32xf32>
    %c1_115 = arith.constant 1 : index
    %c0_116 = arith.constant 0 : index
    %c0_117 = arith.constant 0 : index
    %295 = vector.load %arg8[%c1_115, %c0_116, %c0_117] : memref<2x1x32xf32, #tpu.memory_space<vmem>>, vector<1x1x32xf32>
    %296 = vector.shape_cast %295 : vector<1x1x32xf32> to vector<1x32xf32>
    %297 = vector.broadcast %296 : vector<1x32xf32> to vector<16x32xf32>
    %298 = arith.addf %294, %297 : vector<16x32xf32>
    %299 = arith.addf %202, %298 : vector<16x32xf32>
    %c1_118 = arith.constant 1 : index
    %c0_119 = arith.constant 0 : index
    %c0_120 = arith.constant 0 : index
    %300 = vector.load %arg9[%c1_118, %c0_119, %c0_120] : memref<2x1x32xf32, #tpu.memory_space<vmem>>, vector<1x1x32xf32>
    %301 = vector.shape_cast %300 : vector<1x1x32xf32> to vector<1x32xf32>
    %c1_121 = arith.constant 1 : index
    %c0_122 = arith.constant 0 : index
    %c0_123 = arith.constant 0 : index
    %302 = vector.load %arg10[%c1_121, %c0_122, %c0_123] : memref<2x1x32xf32, #tpu.memory_space<vmem>>, vector<1x1x32xf32>
    %303 = vector.shape_cast %302 : vector<1x1x32xf32> to vector<1x32xf32>
    %cst_124 = arith.constant dense<0.000000e+00> : vector<16xf32>
    %304 = vector.multi_reduction <add>, %299, %cst_124 [1] : vector<16x32xf32> to vector<16xf32>
    %305 = vector.shape_cast %304 : vector<16xf32> to vector<16x1xf32>
    %cst_125 = arith.constant 3.200000e+01 : f32
    %306 = vector.broadcast %cst_125 : f32 to vector<16x1xf32>
    %307 = arith.divf %305, %306 : vector<16x1xf32>
    %308 = vector.broadcast %307 : vector<16x1xf32> to vector<16x32xf32>
    %309 = arith.subf %299, %308 : vector<16x32xf32>
    %310 = arith.mulf %309, %309 : vector<16x32xf32>
    %cst_126 = arith.constant dense<0.000000e+00> : vector<16xf32>
    %311 = vector.multi_reduction <add>, %310, %cst_126 [1] : vector<16x32xf32> to vector<16xf32>
    %312 = vector.shape_cast %311 : vector<16xf32> to vector<16x1xf32>
    %cst_127 = arith.constant 3.200000e+01 : f32
    %313 = vector.broadcast %cst_127 : f32 to vector<16x1xf32>
    %314 = arith.divf %312, %313 : vector<16x1xf32>
    %315 = vector.broadcast %307 : vector<16x1xf32> to vector<16x32xf32>
    %316 = arith.subf %299, %315 : vector<16x32xf32>
    %cst_128 = arith.constant 9.99999996E-13 : f32
    %317 = vector.broadcast %cst_128 : f32 to vector<16x1xf32>
    %318 = arith.addf %314, %317 : vector<16x1xf32>
    %319 = math.rsqrt %318 : vector<16x1xf32>
    %320 = vector.broadcast %319 : vector<16x1xf32> to vector<16x32xf32>
    %321 = arith.mulf %316, %320 : vector<16x32xf32>
    %322 = vector.broadcast %301 : vector<1x32xf32> to vector<16x32xf32>
    %323 = arith.mulf %321, %322 : vector<16x32xf32>
    %324 = vector.broadcast %303 : vector<1x32xf32> to vector<16x32xf32>
    %325 = arith.addf %323, %324 : vector<16x32xf32>
    %c1_129 = arith.constant 1 : index
    %c0_130 = arith.constant 0 : index
    %c0_131 = arith.constant 0 : index
    %326 = vector.load %arg11[%c1_129, %c0_130, %c0_131] : memref<2x32x64xf32, #tpu.memory_space<vmem>>, vector<1x32x64xf32>
    %327 = vector.shape_cast %326 : vector<1x32x64xf32> to vector<32x64xf32>
    %cst_132 = arith.constant dense<0.000000e+00> : vector<16x64xf32>
    %328 = tpu.matmul %325, %327, %cst_132 {dimension_numbers = #tpu.dot_dimension_numbers<[1], [0], [0], [1], [0, 0, 1, 1], [], []>} : vector<16x32xf32>, vector<32x64xf32>, vector<16x64xf32> -> vector<16x64xf32>
    %c1_133 = arith.constant 1 : index
    %c0_134 = arith.constant 0 : index
    %c0_135 = arith.constant 0 : index
    %329 = vector.load %arg12[%c1_133, %c0_134, %c0_135] : memref<2x1x64xf32, #tpu.memory_space<vmem>>, vector<1x1x64xf32>
    %330 = vector.shape_cast %329 : vector<1x1x64xf32> to vector<1x64xf32>
    %331 = vector.broadcast %330 : vector<1x64xf32> to vector<16x64xf32>
    %332 = arith.addf %328, %331 : vector<16x64xf32>
    %cst_136 = arith.constant 5.000000e-01 : f32
    %333 = vector.broadcast %cst_136 : f32 to vector<16x64xf32>
    %334 = arith.mulf %333, %332 : vector<16x64xf32>
    %cst_137 = arith.constant 4.471500e-02 : f32
    %335 = vector.broadcast %cst_137 : f32 to vector<16x64xf32>
    %336 = arith.mulf %335, %332 : vector<16x64xf32>
    %337 = arith.mulf %336, %332 : vector<16x64xf32>
    %338 = arith.mulf %337, %332 : vector<16x64xf32>
    %339 = arith.addf %332, %338 : vector<16x64xf32>
    %cst_138 = arith.constant 0.797884583 : f32
    %340 = vector.broadcast %cst_138 : f32 to vector<16x64xf32>
    %341 = arith.mulf %340, %339 : vector<16x64xf32>
    %342 = math.tanh %341 : vector<16x64xf32>
    %cst_139 = arith.constant 1.000000e+00 : f32
    %343 = vector.broadcast %cst_139 : f32 to vector<16x64xf32>
    %344 = arith.addf %343, %342 : vector<16x64xf32>
    %345 = arith.mulf %334, %344 : vector<16x64xf32>
    %c1_140 = arith.constant 1 : index
    %c0_141 = arith.constant 0 : index
    %c0_142 = arith.constant 0 : index
    %346 = vector.load %arg13[%c1_140, %c0_141, %c0_142] : memref<2x64x32xf32, #tpu.memory_space<vmem>>, vector<1x64x32xf32>
    %347 = vector.shape_cast %346 : vector<1x64x32xf32> to vector<64x32xf32>
    %cst_143 = arith.constant dense<0.000000e+00> : vector<16x32xf32>
    %348 = tpu.matmul %345, %347, %cst_143 {dimension_numbers = #tpu.dot_dimension_numbers<[1], [0], [0], [1], [0, 0, 1, 1], [], []>} : vector<16x64xf32>, vector<64x32xf32>, vector<16x32xf32> -> vector<16x32xf32>
    %c1_144 = arith.constant 1 : index
    %c0_145 = arith.constant 0 : index
    %c0_146 = arith.constant 0 : index
    %349 = vector.load %arg14[%c1_144, %c0_145, %c0_146] : memref<2x1x32xf32, #tpu.memory_space<vmem>>, vector<1x1x32xf32>
    %350 = vector.shape_cast %349 : vector<1x1x32xf32> to vector<1x32xf32>
    %351 = vector.broadcast %350 : vector<1x32xf32> to vector<16x32xf32>
    %352 = arith.addf %348, %351 : vector<16x32xf32>
    %353 = arith.addf %325, %352 : vector<16x32xf32>
    %c1_147 = arith.constant 1 : index
    %c0_148 = arith.constant 0 : index
    %c0_149 = arith.constant 0 : index
    %354 = vector.load %arg15[%c1_147, %c0_148, %c0_149] : memref<2x1x32xf32, #tpu.memory_space<vmem>>, vector<1x1x32xf32>
    %355 = vector.shape_cast %354 : vector<1x1x32xf32> to vector<1x32xf32>
    %c1_150 = arith.constant 1 : index
    %c0_151 = arith.constant 0 : index
    %c0_152 = arith.constant 0 : index
    %356 = vector.load %arg16[%c1_150, %c0_151, %c0_152] : memref<2x1x32xf32, #tpu.memory_space<vmem>>, vector<1x1x32xf32>
    %357 = vector.shape_cast %356 : vector<1x1x32xf32> to vector<1x32xf32>
    %cst_153 = arith.constant dense<0.000000e+00> : vector<16xf32>
    %358 = vector.multi_reduction <add>, %353, %cst_153 [1] : vector<16x32xf32> to vector<16xf32>
    %359 = vector.shape_cast %358 : vector<16xf32> to vector<16x1xf32>
    %cst_154 = arith.constant 3.200000e+01 : f32
    %360 = vector.broadcast %cst_154 : f32 to vector<16x1xf32>
    %361 = arith.divf %359, %360 : vector<16x1xf32>
    %362 = vector.broadcast %361 : vector<16x1xf32> to vector<16x32xf32>
    %363 = arith.subf %353, %362 : vector<16x32xf32>
    %364 = arith.mulf %363, %363 : vector<16x32xf32>
    %cst_155 = arith.constant dense<0.000000e+00> : vector<16xf32>
    %365 = vector.multi_reduction <add>, %364, %cst_155 [1] : vector<16x32xf32> to vector<16xf32>
    %366 = vector.shape_cast %365 : vector<16xf32> to vector<16x1xf32>
    %cst_156 = arith.constant 3.200000e+01 : f32
    %367 = vector.broadcast %cst_156 : f32 to vector<16x1xf32>
    %368 = arith.divf %366, %367 : vector<16x1xf32>
    %369 = vector.broadcast %361 : vector<16x1xf32> to vector<16x32xf32>
    %370 = arith.subf %353, %369 : vector<16x32xf32>
    %cst_157 = arith.constant 9.99999996E-13 : f32
    %371 = vector.broadcast %cst_157 : f32 to vector<16x1xf32>
    %372 = arith.addf %368, %371 : vector<16x1xf32>
    %373 = math.rsqrt %372 : vector<16x1xf32>
    %374 = vector.broadcast %373 : vector<16x1xf32> to vector<16x32xf32>
    %375 = arith.mulf %370, %374 : vector<16x32xf32>
    %376 = vector.broadcast %355 : vector<1x32xf32> to vector<16x32xf32>
    %377 = arith.mulf %375, %376 : vector<16x32xf32>
    %378 = vector.broadcast %357 : vector<1x32xf32> to vector<16x32xf32>
    %379 = arith.addf %377, %378 : vector<16x32xf32>
    %380 = vector.extract_strided_slice %379 {offsets = [0, 0], sizes = [1, 32], strides = [1, 1]} : vector<16x32xf32> to vector<1x32xf32>
    %381 = vector.extract_strided_slice %379 {offsets = [8, 0], sizes = [1, 32], strides = [1, 1]} : vector<16x32xf32> to vector<1x32xf32>
    %382 = tpu.concatenate %380, %381 in 0 : vector<1x32xf32>, vector<1x32xf32> -> vector<2x32xf32>
    %c0_158 = arith.constant 0 : index
    %c0_159 = arith.constant 0 : index
    %383 = vector.load %arg17[%c0_158, %c0_159] : memref<32x32xf32, #tpu.memory_space<vmem>>, vector<32x32xf32>
    %cst_160 = arith.constant dense<0.000000e+00> : vector<2x32xf32>
    %384 = tpu.matmul %382, %383, %cst_160 {dimension_numbers = #tpu.dot_dimension_numbers<[1], [0], [0], [1], [0, 0, 1, 1], [], []>} : vector<2x32xf32>, vector<32x32xf32>, vector<2x32xf32> -> vector<2x32xf32>
    %c0_161 = arith.constant 0 : index
    %c0_162 = arith.constant 0 : index
    %385 = vector.load %arg18[%c0_161, %c0_162] : memref<1x32xf32, #tpu.memory_space<vmem>>, vector<1x32xf32>
    %386 = vector.broadcast %385 : vector<1x32xf32> to vector<2x32xf32>
    %387 = arith.addf %384, %386 : vector<2x32xf32>
    %388 = math.tanh %387 : vector<2x32xf32>
    %c0_163 = arith.constant 0 : index
    %c0_164 = arith.constant 0 : index
    %389 = vector.load %arg2[%c0_163, %c0_164] : memref<2x32xf32, #tpu.memory_space<vmem>>, vector<2x32xf32>
    %390 = arith.mulf %388, %389 : vector<2x32xf32>
    %c0_165 = arith.constant 0 : index
    %c0_166 = arith.constant 0 : index
    %391 = vector.load %arg19[%c0_165, %c0_166] : memref<2x32xf32, #tpu.memory_space<vmem>>, vector<2x32xf32>
    tpu.vector_store %arg19[%c0_165, %c0_166], %390 {strides = array<i32>} : memref<2x32xf32, #tpu.memory_space<vmem>>, vector<2x32xf32>,
    return
  }
}

</mosaic_0001>

<llo_original>
// kernel: tpu_custom_call.1
$region0: #{tpu_custom_call.1}
  #allocation0 [shape = 'u32[]', space=smem, size = 0x4, offset = 0x4, fixed_abs, tag = 'smem constant byte address 0x4 - core index']
  #allocation1 [shape = 'u32[144,128]{1,0:T(1,128)}', space=vmem, size = 0x12000, scoped, tag = 'internal scratch']
  %s0 = inlined_call_operand.hbm [shape: f32[16,32], index: 0, kind: input, shape index: {}]
  %s1 = inlined_call_operand.vmem [shape: f32[2,8], index: 1, kind: input, shape index: {}]
  %s2 = inlined_call_operand.hbm [shape: f32[2,32], index: 2, kind: input, shape index: {}]
  %s3 = inlined_call_operand.hbm [shape: f32[1,32], index: 3, kind: input, shape index: {}]
  %s4 = inlined_call_operand.hbm [shape: f32[1,32], index: 4, kind: input, shape index: {}]
  %s5 = inlined_call_operand.vmem [shape: f32[2,32,96], index: 5, kind: input, shape index: {}]
  %s6 = inlined_call_operand.hbm [shape: f32[2,1,96], index: 6, kind: input, shape index: {}]
  %s7 = inlined_call_operand.vmem [shape: f32[2,32,32], index: 7, kind: input, shape index: {}]
  %s8 = inlined_call_operand.hbm [shape: f32[2,1,32], index: 8, kind: input, shape index: {}]
  %s9 = inlined_call_operand.hbm [shape: f32[2,1,32], index: 9, kind: input, shape index: {}]
  %s10 = inlined_call_operand.vmem [shape: f32[2,1,32], index: 10, kind: input, shape index: {}]
  %s11 = inlined_call_operand.vmem [shape: f32[2,32,64], index: 11, kind: input, shape index: {}]
  %s12 = inlined_call_operand.vmem [shape: f32[2,1,64], index: 12, kind: input, shape index: {}]
  %s13 = inlined_call_operand.vmem [shape: f32[2,64,32], index: 13, kind: input, shape index: {}]
  %s14 = inlined_call_operand.vmem [shape: f32[2,1,32], index: 14, kind: input, shape index: {}]
  %s15 = inlined_call_operand.vmem [shape: f32[2,1,32], index: 15, kind: input, shape index: {}]
  %s16 = inlined_call_operand.vmem [shape: f32[2,1,32], index: 16, kind: input, shape index: {}]
  %s17 = inlined_call_operand.vmem [shape: f32[32,32], index: 17, kind: input, shape index: {}]
  %s18 = inlined_call_operand.vmem [shape: f32[1,32], index: 18, kind: input, shape index: {}]
  %s19 = inlined_call_operand.hbm [shape: f32[2,32], index: 19, kind: output, shape index: {}]
  %s20 = sld [smem:[#allocation0]]
  $region114: #{tpu_custom_call.1} parent=0
    _
  %s22 = ssub.s32 1, %s20
  %s23 = scalar_select 0, %s22, %s20
  $region1: #{tpu_custom_call.1} parent=0
    #allocation2 [shape = 'u8[8192]{0}', space=vmem, size = 0x2000, scoped, tag = 'input window, operand 0, single buffered']
    #allocation3 [shape = 's32[1]{0}', space=sflag, size = 0x4, scoped, tag = 'scoped memory for tpu_custom_call.1']
    #allocation4 [shape = 's32[1]{0}', space=sflag, size = 0x4, scoped, tag = 'scoped memory for tpu_custom_call.1']
    #allocation5 [shape = 'u8[1024]{0}', space=vmem, size = 0x400, scoped, tag = 'input window, operand 2, single buffered']
    #allocation6 [shape = 's32[1]{0}', space=sflag, size = 0x4, scoped, tag = 'scoped memory for tpu_custom_call.1']
    #allocation7 [shape = 'u8[512]{0}', space=vmem, size = 0x400, scoped, tag = 'input window, operand 3, single buffered']
    #allocation8 [shape = 'u8[512]{0}', space=vmem, size = 0x400, scoped, tag = 'input window, operand 4, single buffered']
    #allocation9 [shape = 's32[1]{0}', space=sflag, size = 0x4, scoped, tag = 'scoped memory for tpu_custom_call.1']
    #allocation10 [shape = 'u8[1024]{0}', space=vmem, size = 0x400, scoped, tag = 'input window, operand 6, single buffered']
    #allocation11 [shape = 'u8[1024]{0}', space=vmem, size = 0x400, scoped, tag = 'input window, operand 8, single buffered']
    #allocation12 [shape = 's32[1]{0}', space=sflag, size = 0x4, scoped, tag = 'scoped memory for tpu_custom_call.1']
    #allocation13 [shape = 'u8[1024]{0}', space=vmem, size = 0x400, scoped, tag = 'input window, operand 9, single buffered']
    #allocation14 [shape = 'u8[1024]{0}', space=vmem, size = 0x400, scoped, tag = 'output window, operand 0, single buffered']
    %24 = vsyncpa [#allocation3], 0
    %25 = vsyncpa [#allocation6], 0
    %26 = vsyncpa [#allocation9], 0
    %27 = vsyncpa [#allocation12], 0
    %28 = vsyncpa [#allocation4], 0
    // Predicated region
    $region2: #{tpu_custom_call.1} parent=1 // pred_check
      _
    $region3: #{tpu_custom_call.1} parent=1 // pred_check_branch
      %30 = sbr.rel (0) target = $region5
    $region4: #{tpu_custom_call.1} parent=1 // pred_region
      %s32 = ssub.s32 256, 256
      %33 = vsyncadd [#allocation3], %s32
      %s34 = sshll.u32 [#allocation2], 4
      %s35 = int_to_ptr.vmem [resolvable:$true] %s34
      %40 = dma.hbm_to_vmem [thread:$0]  %s0, 256, %s35, [#allocation3], 128, 128, 8
    $region5: #{tpu_custom_call.1} parent=1 // pred_fallthru
      _
    // Predicated region
    $region6: #{tpu_custom_call.1} parent=1 // pred_check
      _
    $region7: #{tpu_custom_call.1} parent=1 // pred_check_branch
      %42 = sbr.rel (0) target = $region9
    $region8: #{tpu_custom_call.1} parent=1 // pred_region
      _
    $region9: #{tpu_custom_call.1} parent=1 // pred_fallthru
      _
    // Predicated region
    $region10: #{tpu_custom_call.1} parent=1 // pred_check
      _
    $region11: #{tpu_custom_call.1} parent=1 // pred_check_branch
      %44 = sbr.rel (0) target = $region13
    $region12: #{tpu_custom_call.1} parent=1 // pred_region
      %s46 = ssub.s32 32, 32
      %47 = vsyncadd [#allocation6], %s46
      %s49 = sshll.u32 [#allocation5], 4
      %s50 = int_to_ptr.vmem [resolvable:$true] %s49
      %52 = dma.hbm_to_vmem [thread:$0]  %s2, 32, %s50, [#allocation6]
    $region13: #{tpu_custom_call.1} parent=1 // pred_fallthru
      _
    // Predicated region
    $region14: #{tpu_custom_call.1} parent=1 // pred_check
      _
    $region15: #{tpu_custom_call.1} parent=1 // pred_check_branch
      %54 = sbr.rel (0) target = $region17
    $region16: #{tpu_custom_call.1} parent=1 // pred_region
      %s56 = ssub.s32 16, 16
      %57 = vsyncadd [#allocation6], %s56
      %s59 = sshll.u32 [#allocation7], 4
      %s60 = int_to_ptr.vmem [resolvable:$true] %s59
      %62 = dma.hbm_to_vmem [thread:$0]  %s3, 16, %s60, [#allocation6]
    $region17: #{tpu_custom_call.1} parent=1 // pred_fallthru
      _
    // Predicated region
    $region18: #{tpu_custom_call.1} parent=1 // pred_check
      _
    $region19: #{tpu_custom_call.1} parent=1 // pred_check_branch
      %64 = sbr.rel (0) target = $region21
    $region20: #{tpu_custom_call.1} parent=1 // pred_region
      %s66 = ssub.s32 16, 16
      %67 = vsyncadd [#allocation9], %s66
      %s69 = sshll.u32 [#allocation8], 4
      %s70 = int_to_ptr.vmem [resolvable:$true] %s69
      %72 = dma.hbm_to_vmem [thread:$0]  %s4, 16, %s70, [#allocation9]
    $region21: #{tpu_custom_call.1} parent=1 // pred_fallthru
      _
    // Predicated region
    $region22: #{tpu_custom_call.1} parent=1 // pred_check
      _
    $region23: #{tpu_custom_call.1} parent=1 // pred_check_branch
      %74 = sbr.rel (0) target = $region25
    $region24: #{tpu_custom_call.1} parent=1 // pred_region
      _
    $region25: #{tpu_custom_call.1} parent=1 // pred_fallthru
      _
    // Predicated region
    $region26: #{tpu_custom_call.1} parent=1 // pred_check
      _
    $region27: #{tpu_custom_call.1} parent=1 // pred_check_branch
      %76 = sbr.rel (0) target = $region29
    $region28: #{tpu_custom_call.1} parent=1 // pred_region
      %s78 = ssub.s32 32, 32
      %79 = vsyncadd [#allocation9], %s78
      %s80 = sshll.u32 [#allocation10], 4
      %s81 = int_to_ptr.vmem [resolvable:$true] %s80
      %86 = dma.hbm_to_vmem [thread:$0]  %s6, 32, %s81, [#allocation9], 16, 16, 1
    $region29: #{tpu_custom_call.1} parent=1 // pred_fallthru
      _
    // Predicated region
    $region30: #{tpu_custom_call.1} parent=1 // pred_check
      _
    $region31: #{tpu_custom_call.1} parent=1 // pred_check_branch
      %88 = sbr.rel (0) target = $region33
    $region32: #{tpu_custom_call.1} parent=1 // pred_region
      _
    $region33: #{tpu_custom_call.1} parent=1 // pred_fallthru
      _
    // Predicated region
    $region34: #{tpu_custom_call.1} parent=1 // pred_check
      _
    $region35: #{tpu_custom_call.1} parent=1 // pred_check_branch
      %90 = sbr.rel (0) target = $region37
    $region36: #{tpu_custom_call.1} parent=1 // pred_region
      %s92 = ssub.s32 32, 32
      %93 = vsyncadd [#allocation12], %s92
      %s94 = sshll.u32 [#allocation11], 4
      %s95 = int_to_ptr.vmem [resolvable:$true] %s94
      %100 = dma.hbm_to_vmem [thread:$0]  %s8, 32, %s95, [#allocation12], 16, 16, 1
    $region37: #{tpu_custom_call.1} parent=1 // pred_fallthru
      _
    // Predicated region
    $region38: #{tpu_custom_call.1} parent=1 // pred_check
      _
    $region39: #{tpu_custom_call.1} parent=1 // pred_check_branch
      %102 = sbr.rel (0) target = $region41
    $region40: #{tpu_custom_call.1} parent=1 // pred_region
      %s104 = ssub.s32 32, 32
      %105 = vsyncadd [#allocation12], %s104
      %s106 = sshll.u32 [#allocation13], 4
      %s107 = int_to_ptr.vmem [resolvable:$true] %s106
      %112 = dma.hbm_to_vmem [thread:$0]  %s9, 32, %s107, [#allocation12], 16, 16, 1
    $region41: #{tpu_custom_call.1} parent=1 // pred_fallthru
      _
    // Predicated region
    $region42: #{tpu_custom_call.1} parent=1 // pred_check
      _
    $region43: #{tpu_custom_call.1} parent=1 // pred_check_branch
      %114 = sbr.rel (0) target = $region45
    $region44: #{tpu_custom_call.1} parent=1 // pred_region
      _
    $region45: #{tpu_custom_call.1} parent=1 // pred_fallthru
      _
    // Predicated region
    $region46: #{tpu_custom_call.1} parent=1 // pred_check
      _
    $region47: #{tpu_custom_call.1} parent=1 // pred_check_branch
      %116 = sbr.rel (0) target = $region49
    $region48: #{tpu_custom_call.1} parent=1 // pred_region
      _
    $region49: #{tpu_custom_call.1} parent=1 // pred_fallthru
      _
    // Predicated region
    $region50: #{tpu_custom_call.1} parent=1 // pred_check
      _
    $region51: #{tpu_custom_call.1} parent=1 // pred_check_branch
      %118 = sbr.rel (0) target = $region53
    $region52: #{tpu_custom_call.1} parent=1 // pred_region
      _
    $region53: #{tpu_custom_call.1} parent=1 // pred_fallthru
      _
    // Predicated region
    $region54: #{tpu_custom_call.1} parent=1 // pred_check
      _
    $region55: #{tpu_custom_call.1} parent=1 // pred_check_branch
      %120 = sbr.rel (0) target = $region57
    $region56: #{tpu_custom_call.1} parent=1 // pred_region
      _
    $region57: #{tpu_custom_call.1} parent=1 // pred_fallthru
      _
    // Predicated region
    $region58: #{tpu_custom_call.1} parent=1 // pred_check
      _
    $region59: #{tpu_custom_call.1} parent=1 // pred_check_branch
      %122 = sbr.rel (0) target = $region61
    $region60: #{tpu_custom_call.1} parent=1 // pred_region
      _
    $region61: #{tpu_custom_call.1} parent=1 // pred_fallthru
      _
    // Predicated region
    $region62: #{tpu_custom_call.1} parent=1 // pred_check
      _
    $region63: #{tpu_custom_call.1} parent=1 // pred_check_branch
      %124 = sbr.rel (0) target = $region65
    $region64: #{tpu_custom_call.1} parent=1 // pred_region
      _
    $region65: #{tpu_custom_call.1} parent=1 // pred_fallthru
      _
    // Predicated region
    $region66: #{tpu_custom_call.1} parent=1 // pred_check
      _
    $region67: #{tpu_custom_call.1} parent=1 // pred_check_branch
      %126 = sbr.rel (0) target = $region69
    $region68: #{tpu_custom_call.1} parent=1 // pred_region
      _
    $region69: #{tpu_custom_call.1} parent=1 // pred_fallthru
      _
    // Predicated region
    $region70: #{tpu_custom_call.1} parent=1 // pred_check
      _
    $region71: #{tpu_custom_call.1} parent=1 // pred_check_branch
      %128 = sbr.rel (0) target = $region73
    $region72: #{tpu_custom_call.1} parent=1 // pred_region
      _
    $region73: #{tpu_custom_call.1} parent=1 // pred_fallthru
      _
    // Predicated region
    $region74: #{tpu_custom_call.1} parent=1 // pred_check
      _
    $region75: #{tpu_custom_call.1} parent=1 // pred_check_branch
      %130 = sbr.rel (0) target = $region77
    $region76: #{tpu_custom_call.1} parent=1 // pred_region
      _
    $region77: #{tpu_custom_call.1} parent=1 // pred_fallthru
      _
    // Predicated region
    $region78: #{tpu_custom_call.1} parent=1 // pred_check
      _
    $region79: #{tpu_custom_call.1} parent=1 // pred_check_branch
      %132 = sbr.rel (0) target = $region81
    $region80: #{tpu_custom_call.1} parent=1 // pred_region
      %133 = dma.done [#allocation3], 256
    $region81: #{tpu_custom_call.1} parent=1 // pred_fallthru
      _
    // Predicated region
    $region82: #{tpu_custom_call.1} parent=1 // pred_check
      _
    $region83: #{tpu_custom_call.1} parent=1 // pred_check_branch
      %135 = sbr.rel (0) target = $region85
    $region84: #{tpu_custom_call.1} parent=1 // pred_region
      %136 = dma.done [#allocation6], 32
    $region85: #{tpu_custom_call.1} parent=1 // pred_fallthru
      _
    // Predicated region
    $region86: #{tpu_custom_call.1} parent=1 // pred_check
      _
    $region87: #{tpu_custom_call.1} parent=1 // pred_check_branch
      %138 = sbr.rel (0) target = $region89
    $region88: #{tpu_custom_call.1} parent=1 // pred_region
      %139 = dma.done [#allocation6], 16
    $region89: #{tpu_custom_call.1} parent=1 // pred_fallthru
      _
    // Predicated region
    $region90: #{tpu_custom_call.1} parent=1 // pred_check
      _
    $region91: #{tpu_custom_call.1} parent=1 // pred_check_branch
      %141 = sbr.rel (0) target = $region93
    $region92: #{tpu_custom_call.1} parent=1 // pred_region
      %142 = dma.done [#allocation9], 16
    $region93: #{tpu_custom_call.1} parent=1 // pred_fallthru
      _
    // Predicated region
    $region94: #{tpu_custom_call.1} parent=1 // pred_check
      _
    $region95: #{tpu_custom_call.1} parent=1 // pred_check_branch
      %144 = sbr.rel (0) target = $region97
    $region96: #{tpu_custom_call.1} parent=1 // pred_region
      %145 = dma.done [#allocation9], 32
    $region97: #{tpu_custom_call.1} parent=1 // pred_fallthru
      _
    // Predicated region
    $region98: #{tpu_custom_call.1} parent=1 // pred_check
      _
    $region99: #{tpu_custom_call.1} parent=1 // pred_check_branch
      %147 = sbr.rel (0) target = $region101
    $region100: #{tpu_custom_call.1} parent=1 // pred_region
      %148 = dma.done [#allocation12], 32
    $region101: #{tpu_custom_call.1} parent=1 // pred_fallthru
      _
    // Predicated region
    $region102: #{tpu_custom_call.1} parent=1 // pred_check
      _
    $region103: #{tpu_custom_call.1} parent=1 // pred_check_branch
      %150 = sbr.rel (0) target = $region105
    $region104: #{tpu_custom_call.1} parent=1 // pred_region
      %151 = dma.done [#allocation12], 32
    $region105: #{tpu_custom_call.1} parent=1 // pred_fallthru
      _
    %v152 = vld [vmem:[#allocation2] sm:$0xff]
    %v153 = vld [vmem:[#allocation2 + $0x8] sm:$0xff]
    %v154 = vld [vmem:[#allocation7] sm:$0x1]
    %v155 = vld [vmem:[#allocation8] sm:$0x1]
    %vm156 = vcmask 261120
    %v157 = vsel %vm156, %v152, 0.0
    %158 = vadd.xlane.f32.xlu0 %v157
    %v159 = vpop.xlane.xlu0 %158
    %v160 = vsel %vm156, %v153, 0.0
    %161 = vadd.xlane.f32.xlu0 %v160
    %v162 = vpop.xlane.xlu0 %161
    %v163 = vrcp.pop 32.0
    %v164 = vmul.f32 %v159, %v163
    %v165 = vmul.f32 %v162, %v163
    %v166 = vsub.f32 %v152, %v164
    %v167 = vsub.f32 %v153, %v165
    %v168 = vmul.f32 %v166, %v166
    %v169 = vmul.f32 %v167, %v167
    %v170 = vsel %vm156, %v168, 0.0
    %171 = vadd.xlane.f32.xlu0 %v170
    %v172 = vpop.xlane.xlu0 %171
    %v173 = vsel %vm156, %v169, 0.0
    %174 = vadd.xlane.f32.xlu0 %v173
    %v175 = vpop.xlane.xlu0 %174
    %v176 = vmul.f32 %v172, %v163
    %v177 = vmul.f32 %v175, %v163
    %v178 = vadd.f32 %v176, 1e-12
    %v179 = vadd.f32 %v177, 1e-12
    %v180 = vrsqrt.pop %v178
    %v181 = vrsqrt.pop %v179
    %v182 = vmul.f32 %v166, %v180
    %v183 = vmul.f32 %v167, %v181
    %v185 = vlaneseq
    %v186 = vshrl.u32 %v185, 7
    %v187 = vsub.s32 0, %v186
    %v188 = vrot.slane %v154, %v187
    %v190 = vmul.f32 %v182, %v188
    %v191 = vmul.f32 %v183, %v188
    %v193 = vlaneseq
    %v194 = vshrl.u32 %v193, 7
    %v195 = vsub.s32 0, %v194
    %v196 = vrot.slane %v155, %v195
    %v198 = vadd.f32 %v190, %v196
    %v199 = vadd.f32 %v191, %v196
    %v200 = vld [vmem:[%s1] sm:$0x3]
    %v201 = vld [vmem:[%s5] sm:$0xff]
    %v202 = vld [vmem:[%s5 + $0x8] sm:$0xff]
    %v203 = vld [vmem:[%s5 + $0x10] sm:$0xff]
    %v204 = vld [vmem:[%s5 + $0x18] sm:$0xff]
    %v205 = vld [vmem:[#allocation10] sm:$0x1]
    %v207 = vlaneseq
    %v208 = vshrl.u32 %v207, 7
    %v209 = vsub.s32 0, %v208
    %v210 = vrot.slane %v205, %v209
    %v213 = vsel %vm156, %v198, 0
    %v216 = vsel %vm156, %v199, 0
    %218 = vmatprep.subr.mxu0 0.0
    %219 = vmatpush1.msra.mxu0 %v201
    %220 = vmatprep.subr.mxu0 0.0
    %221 = vmatpush1.msra.mxu0 %v202
    %222 = vmatprep.subr.mxu0 0.0
    %223 = vmatpush1.msra.mxu0 %v203
    %224 = vmatprep.subr.mxu0 0.0
    %225 = vmatpush1.msra.mxu0 %v204
    %226 = vmatprep.subr.mxu0 0.0
    %227 = vmatpush1.msra.mxu0 0.0
    %228 = vmatprep.subr.mxu0 0.0
    %229 = vmatpush1.msra.mxu0 0.0
    %230 = vmatprep.subr.mxu0 0.0
    %231 = vmatpush1.msra.mxu0 0.0
    %232 = vmatprep.subr.mxu0 0.0
    %233 = vmatpush1.msra.mxu0 0.0
    %234 = vmatprep.subr.mxu0 0.0
    %235 = vmatpush1.msra.mxu0 0.0
    %236 = vmatprep.subr.mxu0 0.0
    %237 = vmatpush1.msra.mxu0 0.0
    %238 = vmatprep.subr.mxu0 0.0
    %239 = vmatpush1.msra.mxu0 0.0
    %240 = vmatprep.subr.mxu0 0.0
    %241 = vmatpush1.msra.mxu0 0.0
    %242 = vmatprep.subr.mxu0 0.0
    %243 = vmatpush1.msra.mxu0 0.0
    %244 = vmatprep.subr.mxu0 0.0
    %245 = vmatpush1.msra.mxu0 0.0
    %246 = vmatprep.subr.mxu0 0.0
    %247 = vmatpush1.msra.mxu0 0.0
    %248 = vmatprep.subr.mxu0 0.0
    %249 = vmatpush1.msra.mxu0 0.0
    %250 = vmatprep.subr.mxu0 0.0
    %251 = vmatpush1.msra.mxu0 0.0
    %252 = vmatprep.subr.mxu0 0.0
    %253 = vmatpush1.msra.mxu0 0.0
    %254 = vmatprep.subr.mxu0 0.0
    %255 = vmatpush1.msra.mxu0 0.0
    %256 = vmatprep.subr.mxu0 0.0
    %257 = vmatpush1.msra.mxu0 0.0
    %258 = vmatprep.subr.mxu0 0.0
    %259 = vmatpush1.msra.mxu0 0.0
    %260 = vmatprep.subr.mxu0 0.0
    %261 = vmatpush1.msra.mxu0 0.0
    %262 = vmatprep.subr.mxu0 0.0
    %263 = vmatpush1.msra.mxu0 0.0
    %264 = vmatprep.subr.mxu0 0.0
    %265 = vmatpush1.msra.mxu0 0.0
    %266 = vmatprep.subr.mxu0 0.0
    %267 = vmatpush1.msra.mxu0 0.0
    %268 = vmatprep.subr.mxu0 0.0
    %269 = vmatpush1.msra.mxu0 0.0
    %270 = vmatprep.subr.mxu0 0.0
    %271 = vmatpush1.msra.mxu0 0.0
    %272 = vmatprep.subr.mxu0 0.0
    %273 = vmatpush1.msra.mxu0 0.0
    %274 = vmatprep.subr.mxu0 0.0
    %275 = vmatpush1.msra.mxu0 0.0
    %276 = vmatprep.subr.mxu0 0.0
    %277 = vmatpush1.msra.mxu0 0.0
    %278 = vmatprep.subr.mxu0 0.0
    %279 = vmatpush1.msra.mxu0 0.0
    %280 = vmatprep.subr.mxu0 0.0
    %281 = vmatpush1.msra.mxu0 0.0
    %282 = vmatprep.mubr.f32.mxu0 0.0
    %283 = vmatmul.mubr.f32.gmra.mrb[0].mxu0 %v213
    %v284 = vpop.f32.mrb[0].mxu0
    %v285 = vadd.f32 %v210, %v284
    %v286 = vpop.f32.mrb[0].mxu0
    %287 = vmatprep.mubr.f32.mxu0 0.0
    %288 = vmatmul.mubr.f32.gmra.mrb[0].mxu0 %v216
    %v289 = vpop.f32.mrb[0].mxu0
    %v290 = vadd.f32 %v210, %v289
    %v291 = vpop.f32.mrb[0].mxu0
    %292 = vdwg.mxu0
    %294 = vrot.lane.b32.xlu0 %v285, 96
    %v295 = vpop.permute.xlu0 %294
    %vm296 = vcmask 130048
    %v297 = vsel %vm296, %v285, 0
    %v299 = vsel %vm296, %v295, 0
    %301 = vmatprep.subr.mxu0 0.0
    %302 = vmatpush1.xpose.msra.mxu0 %v299
    %303 = vmatprep.subr.mxu0 0.0
    %304 = vmatpush1.xpose.msra.mxu0 0.0
    %305 = vmatprep.subr.mxu0 0.0
    %306 = vmatpush1.xpose.msra.mxu0 0.0
    %307 = vmatprep.subr.mxu0 0.0
    %308 = vmatpush1.xpose.msra.mxu0 0.0
    %309 = vmatprep.subr.mxu0 0.0
    %310 = vmatpush1.xpose.msra.mxu0 0.0
    %311 = vmatprep.subr.mxu0 0.0
    %312 = vmatpush1.xpose.msra.mxu0 0.0
    %313 = vmatprep.subr.mxu0 0.0
    %314 = vmatpush1.xpose.msra.mxu0 0.0
    %315 = vmatprep.subr.mxu0 0.0
    %316 = vmatpush1.xpose.msra.mxu0 0.0
    %317 = vmatprep.subr.mxu0 0.0
    %318 = vmatpush1.xpose.msra.mxu0 0.0
    %319 = vmatprep.subr.mxu0 0.0
    %320 = vmatpush1.xpose.msra.mxu0 0.0
    %321 = vmatprep.subr.mxu0 0.0
    %322 = vmatpush1.xpose.msra.mxu0 0.0
    %323 = vmatprep.subr.mxu0 0.0
    %324 = vmatpush1.xpose.msra.mxu0 0.0
    %325 = vmatprep.subr.mxu0 0.0
    %326 = vmatpush1.xpose.msra.mxu0 0.0
    %327 = vmatprep.subr.mxu0 0.0
    %328 = vmatpush1.xpose.msra.mxu0 0.0
    %329 = vmatprep.subr.mxu0 0.0
    %330 = vmatpush1.xpose.msra.mxu0 0.0
    %331 = vmatprep.subr.mxu0 0.0
    %332 = vmatpush1.xpose.msra.mxu0 0.0
    %333 = vmatprep.subr.mxu0 0.0
    %334 = vmatpush1.xpose.msra.mxu0 0.0
    %335 = vmatprep.subr.mxu0 0.0
    %336 = vmatpush1.xpose.msra.mxu0 0.0
    %337 = vmatprep.subr.mxu0 0.0
    %338 = vmatpush1.xpose.msra.mxu0 0.0
    %339 = vmatprep.subr.mxu0 0.0
    %340 = vmatpush1.xpose.msra.mxu0 0.0
    %341 = vmatprep.subr.mxu0 0.0
    %342 = vmatpush1.xpose.msra.mxu0 0.0
    %343 = vmatprep.subr.mxu0 0.0
    %344 = vmatpush1.xpose.msra.mxu0 0.0
    %345 = vmatprep.subr.mxu0 0.0
    %346 = vmatpush1.xpose.msra.mxu0 0.0
    %347 = vmatprep.subr.mxu0 0.0
    %348 = vmatpush1.xpose.msra.mxu0 0.0
    %349 = vmatprep.subr.mxu0 0.0
    %350 = vmatpush1.xpose.msra.mxu0 0.0
    %351 = vmatprep.subr.mxu0 0.0
    %352 = vmatpush1.xpose.msra.mxu0 0.0
    %353 = vmatprep.subr.mxu0 0.0
    %354 = vmatpush1.xpose.msra.mxu0 0.0
    %355 = vmatprep.subr.mxu0 0.0
    %356 = vmatpush1.xpose.msra.mxu0 0.0
    %357 = vmatprep.subr.mxu0 0.0
    %358 = vmatpush1.xpose.msra.mxu0 0.0
    %359 = vmatprep.subr.mxu0 0.0
    %360 = vmatpush1.xpose.msra.mxu0 0.0
    %361 = vmatprep.subr.mxu0 0.0
    %362 = vmatpush1.xpose.msra.mxu0 0.0
    %363 = vmatprep.subr.mxu0 0.0
    %364 = vmatpush1.xpose.msra.mxu0 0.0
    %365 = vmatprep.mubr.f32.mxu0 0.0
    %366 = vmatmul.mubr.f32.gmra.mrb[0].mxu0 %v297
    %v367 = vpop.f32.mrb[0].mxu0
    %v368 = vadd.f32 0.0, %v367
    %v369 = vpop.f32.mrb[0].mxu0
    %370 = vdwg.mxu0
    %v371 = vmul.f32 %v368, 0.25
    %v372 = vlaneseq
    %v373 = vshrl.u32 %v372, 7
    %v374 = vsub.s32 0, %v373
    %v375 = vrot.slane %v200, %v374
    %v376 = vadd.f32 %v371, %v375
    %vm377 = vcmask 64512
    %v378 = vsel %vm377, %v376, -inf
    %379 = vmax.xlane.f32.xlu0 %v378
    %v380 = vpop.xlane.xlu0 %379
    %v381 = vsub.f32 %v376, %v380
    %v382 = vmul.f32 %v381, 1.442695
    %v383 = vpow.pop %v382
    %v384 = vsel %vm377, %v383, 0.0
    %385 = vadd.xlane.f32.xlu0 %v384
    %v386 = vpop.xlane.xlu0 %385
    %v387 = vrcp.pop %v386
    %v388 = vmul.f32 %v383, %v387
    %389 = vrot.lane.b32.xlu0 %v285, 64
    %v390 = vpop.permute.xlu0 %389
    %v393 = vsel %vm377, %v388, 0
    %395 = vmatprep.subr.mxu0 0.0
    %396 = vmatpush1.msra.mxu0 %v390
    %397 = vmatprep.subr.mxu0 0.0
    %398 = vmatpush1.msra.mxu0 0.0
    %399 = vmatprep.subr.mxu0 0.0
    %400 = vmatpush1.msra.mxu0 0.0
    %401 = vmatprep.subr.mxu0 0.0
    %402 = vmatpush1.msra.mxu0 0.0
    %403 = vmatprep.subr.mxu0 0.0
    %404 = vmatpush1.msra.mxu0 0.0
    %405 = vmatprep.subr.mxu0 0.0
    %406 = vmatpush1.msra.mxu0 0.0
    %407 = vmatprep.subr.mxu0 0.0
    %408 = vmatpush1.msra.mxu0 0.0
    %409 = vmatprep.subr.mxu0 0.0
    %410 = vmatpush1.msra.mxu0 0.0
    %411 = vmatprep.subr.mxu0 0.0
    %412 = vmatpush1.msra.mxu0 0.0
    %413 = vmatprep.subr.mxu0 0.0
    %414 = vmatpush1.msra.mxu0 0.0
    %415 = vmatprep.subr.mxu0 0.0
    %416 = vmatpush1.msra.mxu0 0.0
    %417 = vmatprep.subr.mxu0 0.0
    %418 = vmatpush1.msra.mxu0 0.0
    %419 = vmatprep.subr.mxu0 0.0
    %420 = vmatpush1.msra.mxu0 0.0
    %421 = vmatprep.subr.mxu0 0.0
    %422 = vmatpush1.msra.mxu0 0.0
    %423 = vmatprep.subr.mxu0 0.0
    %424 = vmatpush1.msra.mxu0 0.0
    %425 = vmatprep.subr.mxu0 0.0
    %426 = vmatpush1.msra.mxu0 0.0
    %427 = vmatprep.subr.mxu0 0.0
    %428 = vmatpush1.msra.mxu0 0.0
    %429 = vmatprep.subr.mxu0 0.0
    %430 = vmatpush1.msra.mxu0 0.0
    %431 = vmatprep.subr.mxu0 0.0
    %432 = vmatpush1.msra.mxu0 0.0
    %433 = vmatprep.subr.mxu0 0.0
    %434 = vmatpush1.msra.mxu0 0.0
    %435 = vmatprep.subr.mxu0 0.0
    %436 = vmatpush1.msra.mxu0 0.0
    %437 = vmatprep.subr.mxu0 0.0
    %438 = vmatpush1.msra.mxu0 0.0
    %439 = vmatprep.subr.mxu0 0.0
    %440 = vmatpush1.msra.mxu0 0.0
    %441 = vmatprep.subr.mxu0 0.0
    %442 = vmatpush1.msra.mxu0 0.0
    %443 = vmatprep.subr.mxu0 0.0
    %444 = vmatpush1.msra.mxu0 0.0
    %445 = vmatprep.subr.mxu0 0.0
    %446 = vmatpush1.msra.mxu0 0.0
    %447 = vmatprep.subr.mxu0 0.0
    %448 = vmatpush1.msra.mxu0 0.0
    %449 = vmatprep.subr.mxu0 0.0
    %450 = vmatpush1.msra.mxu0 0.0
    %451 = vmatprep.subr.mxu0 0.0
    %452 = vmatpush1.msra.mxu0 0.0
    %453 = vmatprep.subr.mxu0 0.0
    %454 = vmatpush1.msra.mxu0 0.0
    %455 = vmatprep.subr.mxu0 0.0
    %456 = vmatpush1.msra.mxu0 0.0
    %457 = vmatprep.subr.mxu0 0.0
    %458 = vmatpush1.msra.mxu0 0.0
    %459 = vmatprep.mubr.f32.mxu0 0.0
    %460 = vmatmul.mubr.f32.gmra.mrb[0].mxu0 %v393
    %v461 = vpop.f32.mrb[0].mxu0
    %v462 = vadd.f32 0.0, %v461
    %v463 = vpop.f32.mrb[0].mxu0
    %464 = vdwg.mxu0
    %465 = vrot.lane.b32.xlu0 %v285, 112
    %v466 = vpop.permute.xlu0 %465
    %467 = vrot.lane.b32.xlu0 %v285, 80
    %v468 = vpop.permute.xlu0 %467
    %v469 = vsel %vm296, %v466, 0
    %v471 = vsel %vm296, %v468, 0
    %473 = vmatprep.subr.mxu0 0.0
    %474 = vmatpush1.xpose.msra.mxu0 %v471
    %475 = vmatprep.subr.mxu0 0.0
    %476 = vmatpush1.xpose.msra.mxu0 0.0
    %477 = vmatprep.subr.mxu0 0.0
    %478 = vmatpush1.xpose.msra.mxu0 0.0
    %479 = vmatprep.subr.mxu0 0.0
    %480 = vmatpush1.xpose.msra.mxu0 0.0
    %481 = vmatprep.subr.mxu0 0.0
    %482 = vmatpush1.xpose.msra.mxu0 0.0
    %483 = vmatprep.subr.mxu0 0.0
    %484 = vmatpush1.xpose.msra.mxu0 0.0
    %485 = vmatprep.subr.mxu0 0.0
    %486 = vmatpush1.xpose.msra.mxu0 0.0
    %487 = vmatprep.subr.mxu0 0.0
    %488 = vmatpush1.xpose.msra.mxu0 0.0
    %489 = vmatprep.subr.mxu0 0.0
    %490 = vmatpush1.xpose.msra.mxu0 0.0
    %491 = vmatprep.subr.mxu0 0.0
    %492 = vmatpush1.xpose.msra.mxu0 0.0
    %493 = vmatprep.subr.mxu0 0.0
    %494 = vmatpush1.xpose.msra.mxu0 0.0
    %495 = vmatprep.subr.mxu0 0.0
    %496 = vmatpush1.xpose.msra.mxu0 0.0
    %497 = vmatprep.subr.mxu0 0.0
    %498 = vmatpush1.xpose.msra.mxu0 0.0
    %499 = vmatprep.subr.mxu0 0.0
    %500 = vmatpush1.xpose.msra.mxu0 0.0
    %501 = vmatprep.subr.mxu0 0.0
    %502 = vmatpush1.xpose.msra.mxu0 0.0
    %503 = vmatprep.subr.mxu0 0.0
    %504 = vmatpush1.xpose.msra.mxu0 0.0
    %505 = vmatprep.subr.mxu0 0.0
    %506 = vmatpush1.xpose.msra.mxu0 0.0
    %507 = vmatprep.subr.mxu0 0.0
    %508 = vmatpush1.xpose.msra.mxu0 0.0
    %509 = vmatprep.subr.mxu0 0.0
    %510 = vmatpush1.xpose.msra.mxu0 0.0
    %511 = vmatprep.subr.mxu0 0.0
    %512 = vmatpush1.xpose.msra.mxu0 0.0
    %513 = vmatprep.subr.mxu0 0.0
    %514 = vmatpush1.xpose.msra.mxu0 0.0
    %515 = vmatprep.subr.mxu0 0.0
    %516 = vmatpush1.xpose.msra.mxu0 0.0
    %517 = vmatprep.subr.mxu0 0.0
    %518 = vmatpush1.xpose.msra.mxu0 0.0
    %519 = vmatprep.subr.mxu0 0.0
    %520 = vmatpush1.xpose.msra.mxu0 0.0
    %521 = vmatprep.subr.mxu0 0.0
    %522 = vmatpush1.xpose.msra.mxu0 0.0
    %523 = vmatprep.subr.mxu0 0.0
    %524 = vmatpush1.xpose.msra.mxu0 0.0
    %525 = vmatprep.subr.mxu0 0.0
    %526 = vmatpush1.xpose.msra.mxu0 0.0
    %527 = vmatprep.subr.mxu0 0.0
    %528 = vmatpush1.xpose.msra.mxu0 0.0
    %529 = vmatprep.subr.mxu0 0.0
    %530 = vmatpush1.xpose.msra.mxu0 0.0
    %531 = vmatprep.subr.mxu0 0.0
    %532 = vmatpush1.xpose.msra.mxu0 0.0
    %533 = vmatprep.subr.mxu0 0.0
    %534 = vmatpush1.xpose.msra.mxu0 0.0
    %535 = vmatprep.subr.mxu0 0.0
    %536 = vmatpush1.xpose.msra.mxu0 0.0
    %537 = vmatprep.mubr.f32.mxu0 0.0
    %538 = vmatmul.mubr.f32.gmra.mrb[0].mxu0 %v469
    %v539 = vpop.f32.mrb[0].mxu0
    %v540 = vadd.f32 0.0, %v539
    %v541 = vpop.f32.mrb[0].mxu0
    %542 = vdwg.mxu0
    %v543 = vmul.f32 %v540, 0.25
    %v544 = vadd.f32 %v543, %v375
    %v545 = vsel %vm377, %v544, -inf
    %546 = vmax.xlane.f32.xlu0 %v545
    %v547 = vpop.xlane.xlu0 %546
    %v548 = vsub.f32 %v544, %v547
    %v549 = vmul.f32 %v548, 1.442695
    %v550 = vpow.pop %v549
    %v551 = vsel %vm377, %v550, 0.0
    %552 = vadd.xlane.f32.xlu0 %v551
    %v553 = vpop.xlane.xlu0 %552
    %v554 = vrcp.pop %v553
    %v555 = vmul.f32 %v550, %v554
    %556 = vrot.lane.b32.xlu0 %v285, 48
    %v557 = vpop.permute.xlu0 %556
    %v560 = vsel %vm377, %v555, 0
    %562 = vmatprep.subr.mxu0 0.0
    %563 = vmatpush1.msra.mxu0 %v557
    %564 = vmatprep.subr.mxu0 0.0
    %565 = vmatpush1.msra.mxu0 0.0
    %566 = vmatprep.subr.mxu0 0.0
    %567 = vmatpush1.msra.mxu0 0.0
    %568 = vmatprep.subr.mxu0 0.0
    %569 = vmatpush1.msra.mxu0 0.0
    %570 = vmatprep.subr.mxu0 0.0
    %571 = vmatpush1.msra.mxu0 0.0
    %572 = vmatprep.subr.mxu0 0.0
    %573 = vmatpush1.msra.mxu0 0.0
    %574 = vmatprep.subr.mxu0 0.0
    %575 = vmatpush1.msra.mxu0 0.0
    %576 = vmatprep.subr.mxu0 0.0
    %577 = vmatpush1.msra.mxu0 0.0
    %578 = vmatprep.subr.mxu0 0.0
    %579 = vmatpush1.msra.mxu0 0.0
    %580 = vmatprep.subr.mxu0 0.0
    %581 = vmatpush1.msra.mxu0 0.0
    %582 = vmatprep.subr.mxu0 0.0
    %583 = vmatpush1.msra.mxu0 0.0
    %584 = vmatprep.subr.mxu0 0.0
    %585 = vmatpush1.msra.mxu0 0.0
    %586 = vmatprep.subr.mxu0 0.0
    %587 = vmatpush1.msra.mxu0 0.0
    %588 = vmatprep.subr.mxu0 0.0
    %589 = vmatpush1.msra.mxu0 0.0
    %590 = vmatprep.subr.mxu0 0.0
    %591 = vmatpush1.msra.mxu0 0.0
    %592 = vmatprep.subr.mxu0 0.0
    %593 = vmatpush1.msra.mxu0 0.0
    %594 = vmatprep.subr.mxu0 0.0
    %595 = vmatpush1.msra.mxu0 0.0
    %596 = vmatprep.subr.mxu0 0.0
    %597 = vmatpush1.msra.mxu0 0.0
    %598 = vmatprep.subr.mxu0 0.0
    %599 = vmatpush1.msra.mxu0 0.0
    %600 = vmatprep.subr.mxu0 0.0
    %601 = vmatpush1.msra.mxu0 0.0
    %602 = vmatprep.subr.mxu0 0.0
    %603 = vmatpush1.msra.mxu0 0.0
    %604 = vmatprep.subr.mxu0 0.0
    %605 = vmatpush1.msra.mxu0 0.0
    %606 = vmatprep.subr.mxu0 0.0
    %607 = vmatpush1.msra.mxu0 0.0
    %608 = vmatprep.subr.mxu0 0.0
    %609 = vmatpush1.msra.mxu0 0.0
    %610 = vmatprep.subr.mxu0 0.0
    %611 = vmatpush1.msra.mxu0 0.0
    %612 = vmatprep.subr.mxu0 0.0
    %613 = vmatpush1.msra.mxu0 0.0
    %614 = vmatprep.subr.mxu0 0.0
    %615 = vmatpush1.msra.mxu0 0.0
    %616 = vmatprep.subr.mxu0 0.0
    %617 = vmatpush1.msra.mxu0 0.0
    %618 = vmatprep.subr.mxu0 0.0
    %619 = vmatpush1.msra.mxu0 0.0
    %620 = vmatprep.subr.mxu0 0.0
    %621 = vmatpush1.msra.mxu0 0.0
    %622 = vmatprep.subr.mxu0 0.0
    %623 = vmatpush1.msra.mxu0 0.0
    %624 = vmatprep.subr.mxu0 0.0
    %625 = vmatpush1.msra.mxu0 0.0
    %626 = vmatprep.mubr.f32.mxu0 0.0
    %627 = vmatmul.mubr.f32.gmra.mrb[0].mxu0 %v560
    %v628 = vpop.f32.mrb[0].mxu0
    %v629 = vadd.f32 0.0, %v628
    %v630 = vpop.f32.mrb[0].mxu0
    %631 = vdwg.mxu0
    %633 = vrot.lane.b32.xlu0 %v629, 16
    %v634 = vpop.permute.xlu0 %633
    %v636 = vsel %vm296, %v462, %v634
    %638 = vrot.lane.b32.xlu0 %v290, 96
    %v639 = vpop.permute.xlu0 %638
    %v640 = vsel %vm296, %v290, 0
    %v642 = vsel %vm296, %v639, 0
    %644 = vmatprep.subr.mxu0 0.0
    %645 = vmatpush1.xpose.msra.mxu0 %v642
    %646 = vmatprep.subr.mxu0 0.0
    %647 = vmatpush1.xpose.msra.mxu0 0.0
    %648 = vmatprep.subr.mxu0 0.0
    %649 = vmatpush1.xpose.msra.mxu0 0.0
    %650 = vmatprep.subr.mxu0 0.0
    %651 = vmatpush1.xpose.msra.mxu0 0.0
    %652 = vmatprep.subr.mxu0 0.0
    %653 = vmatpush1.xpose.msra.mxu0 0.0
    %654 = vmatprep.subr.mxu0 0.0
    %655 = vmatpush1.xpose.msra.mxu0 0.0
    %656 = vmatprep.subr.mxu0 0.0
    %657 = vmatpush1.xpose.msra.mxu0 0.0
    %658 = vmatprep.subr.mxu0 0.0
    %659 = vmatpush1.xpose.msra.mxu0 0.0
    %660 = vmatprep.subr.mxu0 0.0
    %661 = vmatpush1.xpose.msra.mxu0 0.0
    %662 = vmatprep.subr.mxu0 0.0
    %663 = vmatpush1.xpose.msra.mxu0 0.0
    %664 = vmatprep.subr.mxu0 0.0
    %665 = vmatpush1.xpose.msra.mxu0 0.0
    %666 = vmatprep.subr.mxu0 0.0
    %667 = vmatpush1.xpose.msra.mxu0 0.0
    %668 = vmatprep.subr.mxu0 0.0
    %669 = vmatpush1.xpose.msra.mxu0 0.0
    %670 = vmatprep.subr.mxu0 0.0
    %671 = vmatpush1.xpose.msra.mxu0 0.0
    %672 = vmatprep.subr.mxu0 0.0
    %673 = vmatpush1.xpose.msra.mxu0 0.0
    %674 = vmatprep.subr.mxu0 0.0
    %675 = vmatpush1.xpose.msra.mxu0 0.0
    %676 = vmatprep.subr.mxu0 0.0
    %677 = vmatpush1.xpose.msra.mxu0 0.0
    %678 = vmatprep.subr.mxu0 0.0
    %679 = vmatpush1.xpose.msra.mxu0 0.0
    %680 = vmatprep.subr.mxu0 0.0
    %681 = vmatpush1.xpose.msra.mxu0 0.0
    %682 = vmatprep.subr.mxu0 0.0
    %683 = vmatpush1.xpose.msra.mxu0 0.0
    %684 = vmatprep.subr.mxu0 0.0
    %685 = vmatpush1.xpose.msra.mxu0 0.0
    %686 = vmatprep.subr.mxu0 0.0
    %687 = vmatpush1.xpose.msra.mxu0 0.0
    %688 = vmatprep.subr.mxu0 0.0
    %689 = vmatpush1.xpose.msra.mxu0 0.0
    %690 = vmatprep.subr.mxu0 0.0
    %691 = vmatpush1.xpose.msra.mxu0 0.0
    %692 = vmatprep.subr.mxu0 0.0
    %693 = vmatpush1.xpose.msra.mxu0 0.0
    %694 = vmatprep.subr.mxu0 0.0
    %695 = vmatpush1.xpose.msra.mxu0 0.0
    %696 = vmatprep.subr.mxu0 0.0
    %697 = vmatpush1.xpose.msra.mxu0 0.0
    %698 = vmatprep.subr.mxu0 0.0
    %699 = vmatpush1.xpose.msra.mxu0 0.0
    %700 = vmatprep.subr.mxu0 0.0
    %701 = vmatpush1.xpose.msra.mxu0 0.0
    %702 = vmatprep.subr.mxu0 0.0
    %703 = vmatpush1.xpose.msra.mxu0 0.0
    %704 = vmatprep.subr.mxu0 0.0
    %705 = vmatpush1.xpose.msra.mxu0 0.0
    %706 = vmatprep.subr.mxu0 0.0
    %707 = vmatpush1.xpose.msra.mxu0 0.0
    %708 = vmatprep.mubr.f32.mxu0 0.0
    %709 = vmatmul.mubr.f32.gmra.mrb[0].mxu0 %v640
    %v710 = vpop.f32.mrb[0].mxu0
    %v711 = vadd.f32 0.0, %v710
    %v712 = vpop.f32.mrb[0].mxu0
    %713 = vdwg.mxu0
    %v714 = vmul.f32 %v711, 0.25
    %v715 = vlaneseq
    %v716 = vshrl.u32 %v715, 7
    %v717 = vsub.s32 1, %v716
    %v718 = vrot.slane %v200, %v717
    %v719 = vadd.f32 %v714, %v718
    %v720 = vsel %vm377, %v719, -inf
    %721 = vmax.xlane.f32.xlu0 %v720
    %v722 = vpop.xlane.xlu0 %721
    %v723 = vsub.f32 %v719, %v722
    %v724 = vmul.f32 %v723, 1.442695
    %v725 = vpow.pop %v724
    %v726 = vsel %vm377, %v725, 0.0
    %727 = vadd.xlane.f32.xlu0 %v726
    %v728 = vpop.xlane.xlu0 %727
    %v729 = vrcp.pop %v728
    %v730 = vmul.f32 %v725, %v729
    %731 = vrot.lane.b32.xlu0 %v290, 64
    %v732 = vpop.permute.xlu0 %731
    %v735 = vsel %vm377, %v730, 0
    %737 = vmatprep.subr.mxu0 0.0
    %738 = vmatpush1.msra.mxu0 %v732
    %739 = vmatprep.subr.mxu0 0.0
    %740 = vmatpush1.msra.mxu0 0.0
    %741 = vmatprep.subr.mxu0 0.0
    %742 = vmatpush1.msra.mxu0 0.0
    %743 = vmatprep.subr.mxu0 0.0
    %744 = vmatpush1.msra.mxu0 0.0
    %745 = vmatprep.subr.mxu0 0.0
    %746 = vmatpush1.msra.mxu0 0.0
    %747 = vmatprep.subr.mxu0 0.0
    %748 = vmatpush1.msra.mxu0 0.0
    %749 = vmatprep.subr.mxu0 0.0
    %750 = vmatpush1.msra.mxu0 0.0
    %751 = vmatprep.subr.mxu0 0.0
    %752 = vmatpush1.msra.mxu0 0.0
    %753 = vmatprep.subr.mxu0 0.0
    %754 = vmatpush1.msra.mxu0 0.0
    %755 = vmatprep.subr.mxu0 0.0
    %756 = vmatpush1.msra.mxu0 0.0
    %757 = vmatprep.subr.mxu0 0.0
    %758 = vmatpush1.msra.mxu0 0.0
    %759 = vmatprep.subr.mxu0 0.0
    %760 = vmatpush1.msra.mxu0 0.0
    %761 = vmatprep.subr.mxu0 0.0
    %762 = vmatpush1.msra.mxu0 0.0
    %763 = vmatprep.subr.mxu0 0.0
    %764 = vmatpush1.msra.mxu0 0.0
    %765 = vmatprep.subr.mxu0 0.0
    %766 = vmatpush1.msra.mxu0 0.0
    %767 = vmatprep.subr.mxu0 0.0
    %768 = vmatpush1.msra.mxu0 0.0
    %769 = vmatprep.subr.mxu0 0.0
    %770 = vmatpush1.msra.mxu0 0.0
    %771 = vmatprep.subr.mxu0 0.0
    %772 = vmatpush1.msra.mxu0 0.0
    %773 = vmatprep.subr.mxu0 0.0
    %774 = vmatpush1.msra.mxu0 0.0
    %775 = vmatprep.subr.mxu0 0.0
    %776 = vmatpush1.msra.mxu0 0.0
    %777 = vmatprep.subr.mxu0 0.0
    %778 = vmatpush1.msra.mxu0 0.0
    %779 = vmatprep.subr.mxu0 0.0
    %780 = vmatpush1.msra.mxu0 0.0
    %781 = vmatprep.subr.mxu0 0.0
    %782 = vmatpush1.msra.mxu0 0.0
    %783 = vmatprep.subr.mxu0 0.0
    %784 = vmatpush1.msra.mxu0 0.0
    %785 = vmatprep.subr.mxu0 0.0
    %786 = vmatpush1.msra.mxu0 0.0
    %787 = vmatprep.subr.mxu0 0.0
    %788 = vmatpush1.msra.mxu0 0.0
    %789 = vmatprep.subr.mxu0 0.0
    %790 = vmatpush1.msra.mxu0 0.0
    %791 = vmatprep.subr.mxu0 0.0
    %792 = vmatpush1.msra.mxu0 0.0
    %793 = vmatprep.subr.mxu0 0.0
    %794 = vmatpush1.msra.mxu0 0.0
    %795 = vmatprep.subr.mxu0 0.0
    %796 = vmatpush1.msra.mxu0 0.0
    %797 = vmatprep.subr.mxu0 0.0
    %798 = vmatpush1.msra.mxu0 0.0
    %799 = vmatprep.subr.mxu0 0.0
    %800 = vmatpush1.msra.mxu0 0.0
    %801 = vmatprep.mubr.f32.mxu0 0.0
    %802 = vmatmul.mubr.f32.gmra.mrb[0].mxu0 %v735
    %v803 = vpop.f32.mrb[0].mxu0
    %v804 = vadd.f32 0.0, %v803
    %v805 = vpop.f32.mrb[0].mxu0
    %806 = vdwg.mxu0
    %807 = vrot.lane.b32.xlu0 %v290, 112
    %v808 = vpop.permute.xlu0 %807
    %809 = vrot.lane.b32.xlu0 %v290, 80
    %v810 = vpop.permute.xlu0 %809
    %v811 = vsel %vm296, %v808, 0
    %v813 = vsel %vm296, %v810, 0
    %815 = vmatprep.subr.mxu0 0.0
    %816 = vmatpush1.xpose.msra.mxu0 %v813
    %817 = vmatprep.subr.mxu0 0.0
    %818 = vmatpush1.xpose.msra.mxu0 0.0
    %819 = vmatprep.subr.mxu0 0.0
    %820 = vmatpush1.xpose.msra.mxu0 0.0
    %821 = vmatprep.subr.mxu0 0.0
    %822 = vmatpush1.xpose.msra.mxu0 0.0
    %823 = vmatprep.subr.mxu0 0.0
    %824 = vmatpush1.xpose.msra.mxu0 0.0
    %825 = vmatprep.subr.mxu0 0.0
    %826 = vmatpush1.xpose.msra.mxu0 0.0
    %827 = vmatprep.subr.mxu0 0.0
    %828 = vmatpush1.xpose.msra.mxu0 0.0
    %829 = vmatprep.subr.mxu0 0.0
    %830 = vmatpush1.xpose.msra.mxu0 0.0
    %831 = vmatprep.subr.mxu0 0.0
    %832 = vmatpush1.xpose.msra.mxu0 0.0
    %833 = vmatprep.subr.mxu0 0.0
    %834 = vmatpush1.xpose.msra.mxu0 0.0
    %835 = vmatprep.subr.mxu0 0.0
    %836 = vmatpush1.xpose.msra.mxu0 0.0
    %837 = vmatprep.subr.mxu0 0.0
    %838 = vmatpush1.xpose.msra.mxu0 0.0
    %839 = vmatprep.subr.mxu0 0.0
    %840 = vmatpush1.xpose.msra.mxu0 0.0
    %841 = vmatprep.subr.mxu0 0.0
    %842 = vmatpush1.xpose.msra.mxu0 0.0
    %843 = vmatprep.subr.mxu0 0.0
    %844 = vmatpush1.xpose.msra.mxu0 0.0
    %845 = vmatprep.subr.mxu0 0.0
    %846 = vmatpush1.xpose.msra.mxu0 0.0
    %847 = vmatprep.subr.mxu0 0.0
    %848 = vmatpush1.xpose.msra.mxu0 0.0
    %849 = vmatprep.subr.mxu0 0.0
    %850 = vmatpush1.xpose.msra.mxu0 0.0
    %851 = vmatprep.subr.mxu0 0.0
    %852 = vmatpush1.xpose.msra.mxu0 0.0
    %853 = vmatprep.subr.mxu0 0.0
    %854 = vmatpush1.xpose.msra.mxu0 0.0
    %855 = vmatprep.subr.mxu0 0.0
    %856 = vmatpush1.xpose.msra.mxu0 0.0
    %857 = vmatprep.subr.mxu0 0.0
    %858 = vmatpush1.xpose.msra.mxu0 0.0
    %859 = vmatprep.subr.mxu0 0.0
    %860 = vmatpush1.xpose.msra.mxu0 0.0
    %861 = vmatprep.subr.mxu0 0.0
    %862 = vmatpush1.xpose.msra.mxu0 0.0
    %863 = vmatprep.subr.mxu0 0.0
    %864 = vmatpush1.xpose.msra.mxu0 0.0
    %865 = vmatprep.subr.mxu0 0.0
    %866 = vmatpush1.xpose.msra.mxu0 0.0
    %867 = vmatprep.subr.mxu0 0.0
    %868 = vmatpush1.xpose.msra.mxu0 0.0
    %869 = vmatprep.subr.mxu0 0.0
    %870 = vmatpush1.xpose.msra.mxu0 0.0
    %871 = vmatprep.subr.mxu0 0.0
    %872 = vmatpush1.xpose.msra.mxu0 0.0
    %873 = vmatprep.subr.mxu0 0.0
    %874 = vmatpush1.xpose.msra.mxu0 0.0
    %875 = vmatprep.subr.mxu0 0.0
    %876 = vmatpush1.xpose.msra.mxu0 0.0
    %877 = vmatprep.subr.mxu0 0.0
    %878 = vmatpush1.xpose.msra.mxu0 0.0
    %879 = vmatprep.mubr.f32.mxu0 0.0
    %880 = vmatmul.mubr.f32.gmra.mrb[0].mxu0 %v811
    %v881 = vpop.f32.mrb[0].mxu0
    %v882 = vadd.f32 0.0, %v881
    %v883 = vpop.f32.mrb[0].mxu0
    %884 = vdwg.mxu0
    %v885 = vmul.f32 %v882, 0.25
    %v886 = vadd.f32 %v885, %v718
    %v887 = vsel %vm377, %v886, -inf
    %888 = vmax.xlane.f32.xlu0 %v887
    %v889 = vpop.xlane.xlu0 %888
    %v890 = vsub.f32 %v886, %v889
    %v891 = vmul.f32 %v890, 1.442695
    %v892 = vpow.pop %v891
    %v893 = vsel %vm377, %v892, 0.0
    %894 = vadd.xlane.f32.xlu0 %v893
    %v895 = vpop.xlane.xlu0 %894
    %v896 = vrcp.pop %v895
    %v897 = vmul.f32 %v892, %v896
    %898 = vrot.lane.b32.xlu0 %v290, 48
    %v899 = vpop.permute.xlu0 %898
    %v902 = vsel %vm377, %v897, 0
    %904 = vmatprep.subr.mxu0 0.0
    %905 = vmatpush1.msra.mxu0 %v899
    %906 = vmatprep.subr.mxu0 0.0
    %907 = vmatpush1.msra.mxu0 0.0
    %908 = vmatprep.subr.mxu0 0.0
    %909 = vmatpush1.msra.mxu0 0.0
    %910 = vmatprep.subr.mxu0 0.0
    %911 = vmatpush1.msra.mxu0 0.0
    %912 = vmatprep.subr.mxu0 0.0
    %913 = vmatpush1.msra.mxu0 0.0
    %914 = vmatprep.subr.mxu0 0.0
    %915 = vmatpush1.msra.mxu0 0.0
    %916 = vmatprep.subr.mxu0 0.0
    %917 = vmatpush1.msra.mxu0 0.0
    %918 = vmatprep.subr.mxu0 0.0
    %919 = vmatpush1.msra.mxu0 0.0
    %920 = vmatprep.subr.mxu0 0.0
    %921 = vmatpush1.msra.mxu0 0.0
    %922 = vmatprep.subr.mxu0 0.0
    %923 = vmatpush1.msra.mxu0 0.0
    %924 = vmatprep.subr.mxu0 0.0
    %925 = vmatpush1.msra.mxu0 0.0
    %926 = vmatprep.subr.mxu0 0.0
    %927 = vmatpush1.msra.mxu0 0.0
    %928 = vmatprep.subr.mxu0 0.0
    %929 = vmatpush1.msra.mxu0 0.0
    %930 = vmatprep.subr.mxu0 0.0
    %931 = vmatpush1.msra.mxu0 0.0
    %932 = vmatprep.subr.mxu0 0.0
    %933 = vmatpush1.msra.mxu0 0.0
    %934 = vmatprep.subr.mxu0 0.0
    %935 = vmatpush1.msra.mxu0 0.0
    %936 = vmatprep.subr.mxu0 0.0
    %937 = vmatpush1.msra.mxu0 0.0
    %938 = vmatprep.subr.mxu0 0.0
    %939 = vmatpush1.msra.mxu0 0.0
    %940 = vmatprep.subr.mxu0 0.0
    %941 = vmatpush1.msra.mxu0 0.0
    %942 = vmatprep.subr.mxu0 0.0
    %943 = vmatpush1.msra.mxu0 0.0
    %944 = vmatprep.subr.mxu0 0.0
    %945 = vmatpush1.msra.mxu0 0.0
    %946 = vmatprep.subr.mxu0 0.0
    %947 = vmatpush1.msra.mxu0 0.0
    %948 = vmatprep.subr.mxu0 0.0
    %949 = vmatpush1.msra.mxu0 0.0
    %950 = vmatprep.subr.mxu0 0.0
    %951 = vmatpush1.msra.mxu0 0.0
    %952 = vmatprep.subr.mxu0 0.0
    %953 = vmatpush1.msra.mxu0 0.0
    %954 = vmatprep.subr.mxu0 0.0
    %955 = vmatpush1.msra.mxu0 0.0
    %956 = vmatprep.subr.mxu0 0.0
    %957 = vmatpush1.msra.mxu0 0.0
    %958 = vmatprep.subr.mxu0 0.0
    %959 = vmatpush1.msra.mxu0 0.0
    %960 = vmatprep.subr.mxu0 0.0
    %961 = vmatpush1.msra.mxu0 0.0
    %962 = vmatprep.subr.mxu0 0.0
    %963 = vmatpush1.msra.mxu0 0.0
    %964 = vmatprep.subr.mxu0 0.0
    %965 = vmatpush1.msra.mxu0 0.0
    %966 = vmatprep.subr.mxu0 0.0
    %967 = vmatpush1.msra.mxu0 0.0
    %968 = vmatprep.mubr.f32.mxu0 0.0
    %969 = vmatmul.mubr.f32.gmra.mrb[0].mxu0 %v902
    %v970 = vpop.f32.mrb[0].mxu0
    %v971 = vadd.f32 0.0, %v970
    %v972 = vpop.f32.mrb[0].mxu0
    %973 = vdwg.mxu0
    %975 = vrot.lane.b32.xlu0 %v971, 16
    %v976 = vpop.permute.xlu0 %975
    %v978 = vsel %vm296, %v804, %v976
    %v979 = vld [vmem:[%s7] sm:$0xff]
    %v980 = vld [vmem:[%s7 + $0x8] sm:$0xff]
    %v981 = vld [vmem:[%s7 + $0x10] sm:$0xff]
    %v982 = vld [vmem:[%s7 + $0x18] sm:$0xff]
    %v983 = vld [vmem:[#allocation11] sm:$0x1]
    %v985 = vlaneseq
    %v986 = vshrl.u32 %v985, 7
    %v987 = vsub.s32 0, %v986
    %v988 = vrot.slane %v983, %v987
    %v991 = vsel %vm156, %v636, 0
    %v994 = vsel %vm156, %v978, 0
    %996 = vmatprep.subr.mxu0 0.0
    %997 = vmatpush1.msra.mxu0 %v979
    %998 = vmatprep.subr.mxu0 0.0
    %999 = vmatpush1.msra.mxu0 %v980
    %1000 = vmatprep.subr.mxu0 0.0
    %1001 = vmatpush1.msra.mxu0 %v981
    %1002 = vmatprep.subr.mxu0 0.0
    %1003 = vmatpush1.msra.mxu0 %v982
    %1004 = vmatprep.subr.mxu0 0.0
    %1005 = vmatpush1.msra.mxu0 0.0
    %1006 = vmatprep.subr.mxu0 0.0
    %1007 = vmatpush1.msra.mxu0 0.0
    %1008 = vmatprep.subr.mxu0 0.0
    %1009 = vmatpush1.msra.mxu0 0.0
    %1010 = vmatprep.subr.mxu0 0.0
    %1011 = vmatpush1.msra.mxu0 0.0
    %1012 = vmatprep.subr.mxu0 0.0
    %1013 = vmatpush1.msra.mxu0 0.0
    %1014 = vmatprep.subr.mxu0 0.0
    %1015 = vmatpush1.msra.mxu0 0.0
    %1016 = vmatprep.subr.mxu0 0.0
    %1017 = vmatpush1.msra.mxu0 0.0
    %1018 = vmatprep.subr.mxu0 0.0
    %1019 = vmatpush1.msra.mxu0 0.0
    %1020 = vmatprep.subr.mxu0 0.0
    %1021 = vmatpush1.msra.mxu0 0.0
    %1022 = vmatprep.subr.mxu0 0.0
    %1023 = vmatpush1.msra.mxu0 0.0
    %1024 = vmatprep.subr.mxu0 0.0
    %1025 = vmatpush1.msra.mxu0 0.0
    %1026 = vmatprep.subr.mxu0 0.0
    %1027 = vmatpush1.msra.mxu0 0.0
    %1028 = vmatprep.subr.mxu0 0.0
    %1029 = vmatpush1.msra.mxu0 0.0
    %1030 = vmatprep.subr.mxu0 0.0
    %1031 = vmatpush1.msra.mxu0 0.0
    %1032 = vmatprep.subr.mxu0 0.0
    %1033 = vmatpush1.msra.mxu0 0.0
    %1034 = vmatprep.subr.mxu0 0.0
    %1035 = vmatpush1.msra.mxu0 0.0
    %1036 = vmatprep.subr.mxu0 0.0
    %1037 = vmatpush1.msra.mxu0 0.0
    %1038 = vmatprep.subr.mxu0 0.0
    %1039 = vmatpush1.msra.mxu0 0.0
    %1040 = vmatprep.subr.mxu0 0.0
    %1041 = vmatpush1.msra.mxu0 0.0
    %1042 = vmatprep.subr.mxu0 0.0
    %1043 = vmatpush1.msra.mxu0 0.0
    %1044 = vmatprep.subr.mxu0 0.0
    %1045 = vmatpush1.msra.mxu0 0.0
    %1046 = vmatprep.subr.mxu0 0.0
    %1047 = vmatpush1.msra.mxu0 0.0
    %1048 = vmatprep.subr.mxu0 0.0
    %1049 = vmatpush1.msra.mxu0 0.0
    %1050 = vmatprep.subr.mxu0 0.0
    %1051 = vmatpush1.msra.mxu0 0.0
    %1052 = vmatprep.subr.mxu0 0.0
    %1053 = vmatpush1.msra.mxu0 0.0
    %1054 = vmatprep.subr.mxu0 0.0
    %1055 = vmatpush1.msra.mxu0 0.0
    %1056 = vmatprep.subr.mxu0 0.0
    %1057 = vmatpush1.msra.mxu0 0.0
    %1058 = vmatprep.subr.mxu0 0.0
    %1059 = vmatpush1.msra.mxu0 0.0
    %1060 = vmatprep.mubr.f32.mxu0 0.0
    %1061 = vmatmul.mubr.f32.gmra.mrb[0].mxu0 %v991
    %v1062 = vpop.f32.mrb[0].mxu0
    %v1063 = vadd.f32 %v988, %v1062
    %v1064 = vpop.f32.mrb[0].mxu0
    %1065 = vmatprep.mubr.f32.mxu0 0.0
    %1066 = vmatmul.mubr.f32.gmra.mrb[0].mxu0 %v994
    %v1067 = vpop.f32.mrb[0].mxu0
    %v1068 = vadd.f32 %v988, %v1067
    %v1069 = vpop.f32.mrb[0].mxu0
    %1070 = vdwg.mxu0
    %v1071 = vadd.f32 %v198, %v1063
    %v1072 = vadd.f32 %v199, %v1068
    %v1073 = vld [vmem:[#allocation13] sm:$0x1]
    %v1074 = vld [vmem:[%s10] sm:$0x1]
    %v1075 = vsel %vm156, %v1071, 0.0
    %1076 = vadd.xlane.f32.xlu0 %v1075
    %v1077 = vpop.xlane.xlu0 %1076
    %v1078 = vsel %vm156, %v1072, 0.0
    %1079 = vadd.xlane.f32.xlu0 %v1078
    %v1080 = vpop.xlane.xlu0 %1079
    %v1081 = vmul.f32 %v1077, %v163
    %v1082 = vmul.f32 %v1080, %v163
    %v1083 = vsub.f32 %v1071, %v1081
    %v1084 = vsub.f32 %v1072, %v1082
    %v1085 = vmul.f32 %v1083, %v1083
    %v1086 = vmul.f32 %v1084, %v1084
    %v1087 = vsel %vm156, %v1085, 0.0
    %1088 = vadd.xlane.f32.xlu0 %v1087
    %v1089 = vpop.xlane.xlu0 %1088
    %v1090 = vsel %vm156, %v1086, 0.0
    %1091 = vadd.xlane.f32.xlu0 %v1090
    %v1092 = vpop.xlane.xlu0 %1091
    %v1093 = vmul.f32 %v1089, %v163
    %v1094 = vmul.f32 %v1092, %v163
    %v1095 = vadd.f32 %v1093, 1e-12
    %v1096 = vadd.f32 %v1094, 1e-12
    %v1097 = vrsqrt.pop %v1095
    %v1098 = vrsqrt.pop %v1096
    %v1099 = vmul.f32 %v1083, %v1097
    %v1100 = vmul.f32 %v1084, %v1098
    %v1102 = vlaneseq
    %v1103 = vshrl.u32 %v1102, 7
    %v1104 = vsub.s32 0, %v1103
    %v1105 = vrot.slane %v1073, %v1104
    %v1107 = vmul.f32 %v1099, %v1105
    %v1108 = vmul.f32 %v1100, %v1105
    %v1110 = vlaneseq
    %v1111 = vshrl.u32 %v1110, 7
    %v1112 = vsub.s32 0, %v1111
    %v1113 = vrot.slane %v1074, %v1112
    %v1115 = vadd.f32 %v1107, %v1113
    %v1116 = vadd.f32 %v1108, %v1113
    %v1117 = vld [vmem:[%s11] sm:$0xff]
    %v1118 = vld [vmem:[%s11 + $0x8] sm:$0xff]
    %v1119 = vld [vmem:[%s11 + $0x10] sm:$0xff]
    %v1120 = vld [vmem:[%s11 + $0x18] sm:$0xff]
    %v1121 = vld [vmem:[%s12] sm:$0x1]
    %v1123 = vlaneseq
    %v1124 = vshrl.u32 %v1123, 7
    %v1125 = vsub.s32 0, %v1124
    %v1126 = vrot.slane %v1121, %v1125
    %v1129 = vsel %vm156, %v1115, 0
    %v1132 = vsel %vm156, %v1116, 0
    %1134 = vmatprep.subr.mxu0 0.0
    %1135 = vmatpush1.msra.mxu0 %v1117
    %1136 = vmatprep.subr.mxu0 0.0
    %1137 = vmatpush1.msra.mxu0 %v1118
    %1138 = vmatprep.subr.mxu0 0.0
    %1139 = vmatpush1.msra.mxu0 %v1119
    %1140 = vmatprep.subr.mxu0 0.0
    %1141 = vmatpush1.msra.mxu0 %v1120
    %1142 = vmatprep.subr.mxu0 0.0
    %1143 = vmatpush1.msra.mxu0 0.0
    %1144 = vmatprep.subr.mxu0 0.0
    %1145 = vmatpush1.msra.mxu0 0.0
    %1146 = vmatprep.subr.mxu0 0.0
    %1147 = vmatpush1.msra.mxu0 0.0
    %1148 = vmatprep.subr.mxu0 0.0
    %1149 = vmatpush1.msra.mxu0 0.0
    %1150 = vmatprep.subr.mxu0 0.0
    %1151 = vmatpush1.msra.mxu0 0.0
    %1152 = vmatprep.subr.mxu0 0.0
    %1153 = vmatpush1.msra.mxu0 0.0
    %1154 = vmatprep.subr.mxu0 0.0
    %1155 = vmatpush1.msra.mxu0 0.0
    %1156 = vmatprep.subr.mxu0 0.0
    %1157 = vmatpush1.msra.mxu0 0.0
    %1158 = vmatprep.subr.mxu0 0.0
    %1159 = vmatpush1.msra.mxu0 0.0
    %1160 = vmatprep.subr.mxu0 0.0
    %1161 = vmatpush1.msra.mxu0 0.0
    %1162 = vmatprep.subr.mxu0 0.0
    %1163 = vmatpush1.msra.mxu0 0.0
    %1164 = vmatprep.subr.mxu0 0.0
    %1165 = vmatpush1.msra.mxu0 0.0
    %1166 = vmatprep.subr.mxu0 0.0
    %1167 = vmatpush1.msra.mxu0 0.0
    %1168 = vmatprep.subr.mxu0 0.0
    %1169 = vmatpush1.msra.mxu0 0.0
    %1170 = vmatprep.subr.mxu0 0.0
    %1171 = vmatpush1.msra.mxu0 0.0
    %1172 = vmatprep.subr.mxu0 0.0
    %1173 = vmatpush1.msra.mxu0 0.0
    %1174 = vmatprep.subr.mxu0 0.0
    %1175 = vmatpush1.msra.mxu0 0.0
    %1176 = vmatprep.subr.mxu0 0.0
    %1177 = vmatpush1.msra.mxu0 0.0
    %1178 = vmatprep.subr.mxu0 0.0
    %1179 = vmatpush1.msra.mxu0 0.0
    %1180 = vmatprep.subr.mxu0 0.0
    %1181 = vmatpush1.msra.mxu0 0.0
    %1182 = vmatprep.subr.mxu0 0.0
    %1183 = vmatpush1.msra.mxu0 0.0
    %1184 = vmatprep.subr.mxu0 0.0
    %1185 = vmatpush1.msra.mxu0 0.0
    %1186 = vmatprep.subr.mxu0 0.0
    %1187 = vmatpush1.msra.mxu0 0.0
    %1188 = vmatprep.subr.mxu0 0.0
    %1189 = vmatpush1.msra.mxu0 0.0
    %1190 = vmatprep.subr.mxu0 0.0
    %1191 = vmatpush1.msra.mxu0 0.0
    %1192 = vmatprep.subr.mxu0 0.0
    %1193 = vmatpush1.msra.mxu0 0.0
    %1194 = vmatprep.subr.mxu0 0.0
    %1195 = vmatpush1.msra.mxu0 0.0
    %1196 = vmatprep.subr.mxu0 0.0
    %1197 = vmatpush1.msra.mxu0 0.0
    %1198 = vmatprep.mubr.f32.mxu0 0.0
    %1199 = vmatmul.mubr.f32.gmra.mrb[0].mxu0 %v1129
    %v1200 = vpop.f32.mrb[0].mxu0
    %v1201 = vadd.f32 %v1126, %v1200
    %v1202 = vpop.f32.mrb[0].mxu0
    %1203 = vmatprep.mubr.f32.mxu0 0.0
    %1204 = vmatmul.mubr.f32.gmra.mrb[0].mxu0 %v1132
    %v1205 = vpop.f32.mrb[0].mxu0
    %v1206 = vadd.f32 %v1126, %v1205
    %v1207 = vpop.f32.mrb[0].mxu0
    %1208 = vdwg.mxu0
    %v1209 = vmul.f32 %v1201, 0.5
    %v1210 = vmul.f32 %v1206, 0.5
    %v1211 = vmul.f32 %v1201, 0.044715
    %v1212 = vmul.f32 %v1206, 0.044715
    %v1213 = vmul.f32 %v1211, %v1201
    %v1214 = vmul.f32 %v1212, %v1206
    %v1215 = vmul.f32 %v1213, %v1201
    %v1216 = vmul.f32 %v1214, %v1206
    %v1217 = vadd.f32 %v1201, %v1215
    %v1218 = vadd.f32 %v1206, %v1216
    %v1219 = vmul.f32 %v1217, 0.7978846
    %v1220 = vmul.f32 %v1218, 0.7978846
    %v1221 = vtanh.pop %v1219
    %v1222 = vtanh.pop %v1220
    %v1223 = vadd.f32 %v1221, 1.0
    %v1224 = vadd.f32 %v1222, 1.0
    %v1225 = vmul.f32 %v1209, %v1223
    %v1226 = vmul.f32 %v1210, %v1224
    %v1227 = vld [vmem:[%s13] sm:$0xff]
    %v1228 = vld [vmem:[%s13 + $0x8] sm:$0xff]
    %v1229 = vld [vmem:[%s13 + $0x10] sm:$0xff]
    %v1230 = vld [vmem:[%s13 + $0x18] sm:$0xff]
    %v1231 = vld [vmem:[%s13 + $0x20] sm:$0xff]
    %v1232 = vld [vmem:[%s13 + $0x28] sm:$0xff]
    %v1233 = vld [vmem:[%s13 + $0x30] sm:$0xff]
    %v1234 = vld [vmem:[%s13 + $0x38] sm:$0xff]
    %v1235 = vld [vmem:[%s14] sm:$0x1]
    %v1237 = vlaneseq
    %v1238 = vshrl.u32 %v1237, 7
    %v1239 = vsub.s32 0, %v1238
    %v1240 = vrot.slane %v1235, %v1239
    %vm1242 = vcmask 523264
    %v1244 = vsel %vm1242, %v1225, 0
    %v1247 = vsel %vm1242, %v1226, 0
    %1249 = vmatprep.subr.mxu0 0.0
    %1250 = vmatpush1.msra.mxu0 %v1227
    %1251 = vmatprep.subr.mxu0 0.0
    %1252 = vmatpush1.msra.mxu0 %v1228
    %1253 = vmatprep.subr.mxu0 0.0
    %1254 = vmatpush1.msra.mxu0 %v1229
    %1255 = vmatprep.subr.mxu0 0.0
    %1256 = vmatpush1.msra.mxu0 %v1230
    %1257 = vmatprep.subr.mxu0 0.0
    %1258 = vmatpush1.msra.mxu0 %v1231
    %1259 = vmatprep.subr.mxu0 0.0
    %1260 = vmatpush1.msra.mxu0 %v1232
    %1261 = vmatprep.subr.mxu0 0.0
    %1262 = vmatpush1.msra.mxu0 %v1233
    %1263 = vmatprep.subr.mxu0 0.0
    %1264 = vmatpush1.msra.mxu0 %v1234
    %1265 = vmatprep.subr.mxu0 0.0
    %1266 = vmatpush1.msra.mxu0 0.0
    %1267 = vmatprep.subr.mxu0 0.0
    %1268 = vmatpush1.msra.mxu0 0.0
    %1269 = vmatprep.subr.mxu0 0.0
    %1270 = vmatpush1.msra.mxu0 0.0
    %1271 = vmatprep.subr.mxu0 0.0
    %1272 = vmatpush1.msra.mxu0 0.0
    %1273 = vmatprep.subr.mxu0 0.0
    %1274 = vmatpush1.msra.mxu0 0.0
    %1275 = vmatprep.subr.mxu0 0.0
    %1276 = vmatpush1.msra.mxu0 0.0
    %1277 = vmatprep.subr.mxu0 0.0
    %1278 = vmatpush1.msra.mxu0 0.0
    %1279 = vmatprep.subr.mxu0 0.0
    %1280 = vmatpush1.msra.mxu0 0.0
    %1281 = vmatprep.subr.mxu0 0.0
    %1282 = vmatpush1.msra.mxu0 0.0
    %1283 = vmatprep.subr.mxu0 0.0
    %1284 = vmatpush1.msra.mxu0 0.0
    %1285 = vmatprep.subr.mxu0 0.0
    %1286 = vmatpush1.msra.mxu0 0.0
    %1287 = vmatprep.subr.mxu0 0.0
    %1288 = vmatpush1.msra.mxu0 0.0
    %1289 = vmatprep.subr.mxu0 0.0
    %1290 = vmatpush1.msra.mxu0 0.0
    %1291 = vmatprep.subr.mxu0 0.0
    %1292 = vmatpush1.msra.mxu0 0.0
    %1293 = vmatprep.subr.mxu0 0.0
    %1294 = vmatpush1.msra.mxu0 0.0
    %1295 = vmatprep.subr.mxu0 0.0
    %1296 = vmatpush1.msra.mxu0 0.0
    %1297 = vmatprep.subr.mxu0 0.0
    %1298 = vmatpush1.msra.mxu0 0.0
    %1299 = vmatprep.subr.mxu0 0.0
    %1300 = vmatpush1.msra.mxu0 0.0
    %1301 = vmatprep.subr.mxu0 0.0
    %1302 = vmatpush1.msra.mxu0 0.0
    %1303 = vmatprep.subr.mxu0 0.0
    %1304 = vmatpush1.msra.mxu0 0.0
    %1305 = vmatprep.subr.mxu0 0.0
    %1306 = vmatpush1.msra.mxu0 0.0
    %1307 = vmatprep.subr.mxu0 0.0
    %1308 = vmatpush1.msra.mxu0 0.0
    %1309 = vmatprep.subr.mxu0 0.0
    %1310 = vmatpush1.msra.mxu0 0.0
    %1311 = vmatprep.subr.mxu0 0.0
    %1312 = vmatpush1.msra.mxu0 0.0
    %1313 = vmatprep.mubr.f32.mxu0 0.0
    %1314 = vmatmul.mubr.f32.gmra.mrb[0].mxu0 %v1244
    %v1315 = vpop.f32.mrb[0].mxu0
    %v1316 = vadd.f32 %v1240, %v1315
    %v1317 = vpop.f32.mrb[0].mxu0
    %1318 = vmatprep.mubr.f32.mxu0 0.0
    %1319 = vmatmul.mubr.f32.gmra.mrb[0].mxu0 %v1247
    %v1320 = vpop.f32.mrb[0].mxu0
    %v1321 = vadd.f32 %v1240, %v1320
    %v1322 = vpop.f32.mrb[0].mxu0
    %1323 = vdwg.mxu0
    %v1324 = vadd.f32 %v1115, %v1316
    %v1325 = vadd.f32 %v1116, %v1321
    %v1326 = vld [vmem:[%s15] sm:$0x1]
    %v1327 = vld [vmem:[%s16] sm:$0x1]
    %v1328 = vsel %vm156, %v1324, 0.0
    %1329 = vadd.xlane.f32.xlu0 %v1328
    %v1330 = vpop.xlane.xlu0 %1329
    %v1331 = vsel %vm156, %v1325, 0.0
    %1332 = vadd.xlane.f32.xlu0 %v1331
    %v1333 = vpop.xlane.xlu0 %1332
    %v1334 = vmul.f32 %v1330, %v163
    %v1335 = vmul.f32 %v1333, %v163
    %v1336 = vsub.f32 %v1324, %v1334
    %v1337 = vsub.f32 %v1325, %v1335
    %v1338 = vmul.f32 %v1336, %v1336
    %v1339 = vmul.f32 %v1337, %v1337
    %v1340 = vsel %vm156, %v1338, 0.0
    %1341 = vadd.xlane.f32.xlu0 %v1340
    %v1342 = vpop.xlane.xlu0 %1341
    %v1343 = vsel %vm156, %v1339, 0.0
    %1344 = vadd.xlane.f32.xlu0 %v1343
    %v1345 = vpop.xlane.xlu0 %1344
    %v1346 = vmul.f32 %v1342, %v163
    %v1347 = vmul.f32 %v1345, %v163
    %v1348 = vadd.f32 %v1346, 1e-12
    %v1349 = vadd.f32 %v1347, 1e-12
    %v1350 = vrsqrt.pop %v1348
    %v1351 = vrsqrt.pop %v1349
    %v1352 = vmul.f32 %v1336, %v1350
    %v1353 = vmul.f32 %v1337, %v1351
    %v1355 = vlaneseq
    %v1356 = vshrl.u32 %v1355, 7
    %v1357 = vsub.s32 0, %v1356
    %v1358 = vrot.slane %v1326, %v1357
    %v1360 = vmul.f32 %v1352, %v1358
    %v1361 = vmul.f32 %v1353, %v1358
    %v1363 = vlaneseq
    %v1364 = vshrl.u32 %v1363, 7
    %v1365 = vsub.s32 0, %v1364
    %v1366 = vrot.slane %v1327, %v1365
    %v1368 = vadd.f32 %v1360, %v1366
    %v1369 = vadd.f32 %v1361, %v1366
    %s1370 = scalar_lea.vmem %s5, 32
    %v1371 = vld [vmem:[%s1370] sm:$0xff]
    %v1372 = vld [vmem:[%s1370 + $0x8] sm:$0xff]
    %v1373 = vld [vmem:[%s1370 + $0x10] sm:$0xff]
    %v1374 = vld [vmem:[%s1370 + $0x18] sm:$0xff]
    %s1375 = scalar_lea.vmem [#allocation10], 1
    %v1376 = vld [vmem:[%s1375] sm:$0x1]
    %v1378 = vlaneseq
    %v1379 = vshrl.u32 %v1378, 7
    %v1380 = vsub.s32 0, %v1379
    %v1381 = vrot.slane %v1376, %v1380
    %v1384 = vsel %vm156, %v1368, 0
    %v1387 = vsel %vm156, %v1369, 0
    %1389 = vmatprep.subr.mxu0 0.0
    %1390 = vmatpush1.msra.mxu0 %v1371
    %1391 = vmatprep.subr.mxu0 0.0
    %1392 = vmatpush1.msra.mxu0 %v1372
    %1393 = vmatprep.subr.mxu0 0.0
    %1394 = vmatpush1.msra.mxu0 %v1373
    %1395 = vmatprep.subr.mxu0 0.0
    %1396 = vmatpush1.msra.mxu0 %v1374
    %1397 = vmatprep.subr.mxu0 0.0
    %1398 = vmatpush1.msra.mxu0 0.0
    %1399 = vmatprep.subr.mxu0 0.0
    %1400 = vmatpush1.msra.mxu0 0.0
    %1401 = vmatprep.subr.mxu0 0.0
    %1402 = vmatpush1.msra.mxu0 0.0
    %1403 = vmatprep.subr.mxu0 0.0
    %1404 = vmatpush1.msra.mxu0 0.0
    %1405 = vmatprep.subr.mxu0 0.0
    %1406 = vmatpush1.msra.mxu0 0.0
    %1407 = vmatprep.subr.mxu0 0.0
    %1408 = vmatpush1.msra.mxu0 0.0
    %1409 = vmatprep.subr.mxu0 0.0
    %1410 = vmatpush1.msra.mxu0 0.0
    %1411 = vmatprep.subr.mxu0 0.0
    %1412 = vmatpush1.msra.mxu0 0.0
    %1413 = vmatprep.subr.mxu0 0.0
    %1414 = vmatpush1.msra.mxu0 0.0
    %1415 = vmatprep.subr.mxu0 0.0
    %1416 = vmatpush1.msra.mxu0 0.0
    %1417 = vmatprep.subr.mxu0 0.0
    %1418 = vmatpush1.msra.mxu0 0.0
    %1419 = vmatprep.subr.mxu0 0.0
    %1420 = vmatpush1.msra.mxu0 0.0
    %1421 = vmatprep.subr.mxu0 0.0
    %1422 = vmatpush1.msra.mxu0 0.0
    %1423 = vmatprep.subr.mxu0 0.0
    %1424 = vmatpush1.msra.mxu0 0.0
    %1425 = vmatprep.subr.mxu0 0.0
    %1426 = vmatpush1.msra.mxu0 0.0
    %1427 = vmatprep.subr.mxu0 0.0
    %1428 = vmatpush1.msra.mxu0 0.0
    %1429 = vmatprep.subr.mxu0 0.0
    %1430 = vmatpush1.msra.mxu0 0.0
    %1431 = vmatprep.subr.mxu0 0.0
    %1432 = vmatpush1.msra.mxu0 0.0
    %1433 = vmatprep.subr.mxu0 0.0
    %1434 = vmatpush1.msra.mxu0 0.0
    %1435 = vmatprep.subr.mxu0 0.0
    %1436 = vmatpush1.msra.mxu0 0.0
    %1437 = vmatprep.subr.mxu0 0.0
    %1438 = vmatpush1.msra.mxu0 0.0
    %1439 = vmatprep.subr.mxu0 0.0
    %1440 = vmatpush1.msra.mxu0 0.0
    %1441 = vmatprep.subr.mxu0 0.0
    %1442 = vmatpush1.msra.mxu0 0.0
    %1443 = vmatprep.subr.mxu0 0.0
    %1444 = vmatpush1.msra.mxu0 0.0
    %1445 = vmatprep.subr.mxu0 0.0
    %1446 = vmatpush1.msra.mxu0 0.0
    %1447 = vmatprep.subr.mxu0 0.0
    %1448 = vmatpush1.msra.mxu0 0.0
    %1449 = vmatprep.subr.mxu0 0.0
    %1450 = vmatpush1.msra.mxu0 0.0
    %1451 = vmatprep.subr.mxu0 0.0
    %1452 = vmatpush1.msra.mxu0 0.0
    %1453 = vmatprep.mubr.f32.mxu0 0.0
    %1454 = vmatmul.mubr.f32.gmra.mrb[0].mxu0 %v1384
    %v1455 = vpop.f32.mrb[0].mxu0
    %v1456 = vadd.f32 %v1381, %v1455
    %v1457 = vpop.f32.mrb[0].mxu0
    %1458 = vmatprep.mubr.f32.mxu0 0.0
    %1459 = vmatmul.mubr.f32.gmra.mrb[0].mxu0 %v1387
    %v1460 = vpop.f32.mrb[0].mxu0
    %v1461 = vadd.f32 %v1381, %v1460
    %v1462 = vpop.f32.mrb[0].mxu0
    %1463 = vdwg.mxu0
    %1465 = vrot.lane.b32.xlu0 %v1456, 96
    %v1466 = vpop.permute.xlu0 %1465
    %v1467 = vsel %vm296, %v1456, 0
    %v1469 = vsel %vm296, %v1466, 0
    %1471 = vmatprep.subr.mxu0 0.0
    %1472 = vmatpush1.xpose.msra.mxu0 %v1469
    %1473 = vmatprep.subr.mxu0 0.0
    %1474 = vmatpush1.xpose.msra.mxu0 0.0
    %1475 = vmatprep.subr.mxu0 0.0
    %1476 = vmatpush1.xpose.msra.mxu0 0.0
    %1477 = vmatprep.subr.mxu0 0.0
    %1478 = vmatpush1.xpose.msra.mxu0 0.0
    %1479 = vmatprep.subr.mxu0 0.0
    %1480 = vmatpush1.xpose.msra.mxu0 0.0
    %1481 = vmatprep.subr.mxu0 0.0
    %1482 = vmatpush1.xpose.msra.mxu0 0.0
    %1483 = vmatprep.subr.mxu0 0.0
    %1484 = vmatpush1.xpose.msra.mxu0 0.0
    %1485 = vmatprep.subr.mxu0 0.0
    %1486 = vmatpush1.xpose.msra.mxu0 0.0
    %1487 = vmatprep.subr.mxu0 0.0
    %1488 = vmatpush1.xpose.msra.mxu0 0.0
    %1489 = vmatprep.subr.mxu0 0.0
    %1490 = vmatpush1.xpose.msra.mxu0 0.0
    %1491 = vmatprep.subr.mxu0 0.0
    %1492 = vmatpush1.xpose.msra.mxu0 0.0
    %1493 = vmatprep.subr.mxu0 0.0
    %1494 = vmatpush1.xpose.msra.mxu0 0.0
    %1495 = vmatprep.subr.mxu0 0.0
    %1496 = vmatpush1.xpose.msra.mxu0 0.0
    %1497 = vmatprep.subr.mxu0 0.0
    %1498 = vmatpush1.xpose.msra.mxu0 0.0
    %1499 = vmatprep.subr.mxu0 0.0
    %1500 = vmatpush1.xpose.msra.mxu0 0.0
    %1501 = vmatprep.subr.mxu0 0.0
    %1502 = vmatpush1.xpose.msra.mxu0 0.0
    %1503 = vmatprep.subr.mxu0 0.0
    %1504 = vmatpush1.xpose.msra.mxu0 0.0
    %1505 = vmatprep.subr.mxu0 0.0
    %1506 = vmatpush1.xpose.msra.mxu0 0.0
    %1507 = vmatprep.subr.mxu0 0.0
    %1508 = vmatpush1.xpose.msra.mxu0 0.0
    %1509 = vmatprep.subr.mxu0 0.0
    %1510 = vmatpush1.xpose.msra.mxu0 0.0
    %1511 = vmatprep.subr.mxu0 0.0
    %1512 = vmatpush1.xpose.msra.mxu0 0.0
    %1513 = vmatprep.subr.mxu0 0.0
    %1514 = vmatpush1.xpose.msra.mxu0 0.0
    %1515 = vmatprep.subr.mxu0 0.0
    %1516 = vmatpush1.xpose.msra.mxu0 0.0
    %1517 = vmatprep.subr.mxu0 0.0
    %1518 = vmatpush1.xpose.msra.mxu0 0.0
    %1519 = vmatprep.subr.mxu0 0.0
    %1520 = vmatpush1.xpose.msra.mxu0 0.0
    %1521 = vmatprep.subr.mxu0 0.0
    %1522 = vmatpush1.xpose.msra.mxu0 0.0
    %1523 = vmatprep.subr.mxu0 0.0
    %1524 = vmatpush1.xpose.msra.mxu0 0.0
    %1525 = vmatprep.subr.mxu0 0.0
    %1526 = vmatpush1.xpose.msra.mxu0 0.0
    %1527 = vmatprep.subr.mxu0 0.0
    %1528 = vmatpush1.xpose.msra.mxu0 0.0
    %1529 = vmatprep.subr.mxu0 0.0
    %1530 = vmatpush1.xpose.msra.mxu0 0.0
    %1531 = vmatprep.subr.mxu0 0.0
    %1532 = vmatpush1.xpose.msra.mxu0 0.0
    %1533 = vmatprep.subr.mxu0 0.0
    %1534 = vmatpush1.xpose.msra.mxu0 0.0
    %1535 = vmatprep.mubr.f32.mxu0 0.0
    %1536 = vmatmul.mubr.f32.gmra.mrb[0].mxu0 %v1467
    %v1537 = vpop.f32.mrb[0].mxu0
    %v1538 = vadd.f32 0.0, %v1537
    %v1539 = vpop.f32.mrb[0].mxu0
    %1540 = vdwg.mxu0
    %v1541 = vmul.f32 %v1538, 0.25
    %v1542 = vadd.f32 %v1541, %v375
    %v1543 = vsel %vm377, %v1542, -inf
    %1544 = vmax.xlane.f32.xlu0 %v1543
    %v1545 = vpop.xlane.xlu0 %1544
    %v1546 = vsub.f32 %v1542, %v1545
    %v1547 = vmul.f32 %v1546, 1.442695
    %v1548 = vpow.pop %v1547
    %v1549 = vsel %vm377, %v1548, 0.0
    %1550 = vadd.xlane.f32.xlu0 %v1549
    %v1551 = vpop.xlane.xlu0 %1550
    %v1552 = vrcp.pop %v1551
    %v1553 = vmul.f32 %v1548, %v1552
    %1554 = vrot.lane.b32.xlu0 %v1456, 64
    %v1555 = vpop.permute.xlu0 %1554
    %v1558 = vsel %vm377, %v1553, 0
    %1560 = vmatprep.subr.mxu0 0.0
    %1561 = vmatpush1.msra.mxu0 %v1555
    %1562 = vmatprep.subr.mxu0 0.0
    %1563 = vmatpush1.msra.mxu0 0.0
    %1564 = vmatprep.subr.mxu0 0.0
    %1565 = vmatpush1.msra.mxu0 0.0
    %1566 = vmatprep.subr.mxu0 0.0
    %1567 = vmatpush1.msra.mxu0 0.0
    %1568 = vmatprep.subr.mxu0 0.0
    %1569 = vmatpush1.msra.mxu0 0.0
    %1570 = vmatprep.subr.mxu0 0.0
    %1571 = vmatpush1.msra.mxu0 0.0
    %1572 = vmatprep.subr.mxu0 0.0
    %1573 = vmatpush1.msra.mxu0 0.0
    %1574 = vmatprep.subr.mxu0 0.0
    %1575 = vmatpush1.msra.mxu0 0.0
    %1576 = vmatprep.subr.mxu0 0.0
    %1577 = vmatpush1.msra.mxu0 0.0
    %1578 = vmatprep.subr.mxu0 0.0
    %1579 = vmatpush1.msra.mxu0 0.0
    %1580 = vmatprep.subr.mxu0 0.0
    %1581 = vmatpush1.msra.mxu0 0.0
    %1582 = vmatprep.subr.mxu0 0.0
    %1583 = vmatpush1.msra.mxu0 0.0
    %1584 = vmatprep.subr.mxu0 0.0
    %1585 = vmatpush1.msra.mxu0 0.0
    %1586 = vmatprep.subr.mxu0 0.0
    %1587 = vmatpush1.msra.mxu0 0.0
    %1588 = vmatprep.subr.mxu0 0.0
    %1589 = vmatpush1.msra.mxu0 0.0
    %1590 = vmatprep.subr.mxu0 0.0
    %1591 = vmatpush1.msra.mxu0 0.0
    %1592 = vmatprep.subr.mxu0 0.0
    %1593 = vmatpush1.msra.mxu0 0.0
    %1594 = vmatprep.subr.mxu0 0.0
    %1595 = vmatpush1.msra.mxu0 0.0
    %1596 = vmatprep.subr.mxu0 0.0
    %1597 = vmatpush1.msra.mxu0 0.0
    %1598 = vmatprep.subr.mxu0 0.0
    %1599 = vmatpush1.msra.mxu0 0.0
    %1600 = vmatprep.subr.mxu0 0.0
    %1601 = vmatpush1.msra.mxu0 0.0
    %1602 = vmatprep.subr.mxu0 0.0
    %1603 = vmatpush1.msra.mxu0 0.0
    %1604 = vmatprep.subr.mxu0 0.0
    %1605 = vmatpush1.msra.mxu0 0.0
    %1606 = vmatprep.subr.mxu0 0.0
    %1607 = vmatpush1.msra.mxu0 0.0
    %1608 = vmatprep.subr.mxu0 0.0
    %1609 = vmatpush1.msra.mxu0 0.0
    %1610 = vmatprep.subr.mxu0 0.0
    %1611 = vmatpush1.msra.mxu0 0.0
    %1612 = vmatprep.subr.mxu0 0.0
    %1613 = vmatpush1.msra.mxu0 0.0
    %1614 = vmatprep.subr.mxu0 0.0
    %1615 = vmatpush1.msra.mxu0 0.0
    %1616 = vmatprep.subr.mxu0 0.0
    %1617 = vmatpush1.msra.mxu0 0.0
    %1618 = vmatprep.subr.mxu0 0.0
    %1619 = vmatpush1.msra.mxu0 0.0
    %1620 = vmatprep.subr.mxu0 0.0
    %1621 = vmatpush1.msra.mxu0 0.0
    %1622 = vmatprep.subr.mxu0 0.0
    %1623 = vmatpush1.msra.mxu0 0.0
    %1624 = vmatprep.mubr.f32.mxu0 0.0
    %1625 = vmatmul.mubr.f32.gmra.mrb[0].mxu0 %v1558
    %v1626 = vpop.f32.mrb[0].mxu0
    %v1627 = vadd.f32 0.0, %v1626
    %v1628 = vpop.f32.mrb[0].mxu0
    %1629 = vdwg.mxu0
    %1630 = vrot.lane.b32.xlu0 %v1456, 112
    %v1631 = vpop.permute.xlu0 %1630
    %1632 = vrot.lane.b32.xlu0 %v1456, 80
    %v1633 = vpop.permute.xlu0 %1632
    %v1634 = vsel %vm296, %v1631, 0
    %v1636 = vsel %vm296, %v1633, 0
    %1638 = vmatprep.subr.mxu0 0.0
    %1639 = vmatpush1.xpose.msra.mxu0 %v1636
    %1640 = vmatprep.subr.mxu0 0.0
    %1641 = vmatpush1.xpose.msra.mxu0 0.0
    %1642 = vmatprep.subr.mxu0 0.0
    %1643 = vmatpush1.xpose.msra.mxu0 0.0
    %1644 = vmatprep.subr.mxu0 0.0
    %1645 = vmatpush1.xpose.msra.mxu0 0.0
    %1646 = vmatprep.subr.mxu0 0.0
    %1647 = vmatpush1.xpose.msra.mxu0 0.0
    %1648 = vmatprep.subr.mxu0 0.0
    %1649 = vmatpush1.xpose.msra.mxu0 0.0
    %1650 = vmatprep.subr.mxu0 0.0
    %1651 = vmatpush1.xpose.msra.mxu0 0.0
    %1652 = vmatprep.subr.mxu0 0.0
    %1653 = vmatpush1.xpose.msra.mxu0 0.0
    %1654 = vmatprep.subr.mxu0 0.0
    %1655 = vmatpush1.xpose.msra.mxu0 0.0
    %1656 = vmatprep.subr.mxu0 0.0
    %1657 = vmatpush1.xpose.msra.mxu0 0.0
    %1658 = vmatprep.subr.mxu0 0.0
    %1659 = vmatpush1.xpose.msra.mxu0 0.0
    %1660 = vmatprep.subr.mxu0 0.0
    %1661 = vmatpush1.xpose.msra.mxu0 0.0
    %1662 = vmatprep.subr.mxu0 0.0
    %1663 = vmatpush1.xpose.msra.mxu0 0.0
    %1664 = vmatprep.subr.mxu0 0.0
    %1665 = vmatpush1.xpose.msra.mxu0 0.0
    %1666 = vmatprep.subr.mxu0 0.0
    %1667 = vmatpush1.xpose.msra.mxu0 0.0
    %1668 = vmatprep.subr.mxu0 0.0
    %1669 = vmatpush1.xpose.msra.mxu0 0.0
    %1670 = vmatprep.subr.mxu0 0.0
    %1671 = vmatpush1.xpose.msra.mxu0 0.0
    %1672 = vmatprep.subr.mxu0 0.0
    %1673 = vmatpush1.xpose.msra.mxu0 0.0
    %1674 = vmatprep.subr.mxu0 0.0
    %1675 = vmatpush1.xpose.msra.mxu0 0.0
    %1676 = vmatprep.subr.mxu0 0.0
    %1677 = vmatpush1.xpose.msra.mxu0 0.0
    %1678 = vmatprep.subr.mxu0 0.0
    %1679 = vmatpush1.xpose.msra.mxu0 0.0
    %1680 = vmatprep.subr.mxu0 0.0
    %1681 = vmatpush1.xpose.msra.mxu0 0.0
    %1682 = vmatprep.subr.mxu0 0.0
    %1683 = vmatpush1.xpose.msra.mxu0 0.0
    %1684 = vmatprep.subr.mxu0 0.0
    %1685 = vmatpush1.xpose.msra.mxu0 0.0
    %1686 = vmatprep.subr.mxu0 0.0
    %1687 = vmatpush1.xpose.msra.mxu0 0.0
    %1688 = vmatprep.subr.mxu0 0.0
    %1689 = vmatpush1.xpose.msra.mxu0 0.0
    %1690 = vmatprep.subr.mxu0 0.0
    %1691 = vmatpush1.xpose.msra.mxu0 0.0
    %1692 = vmatprep.subr.mxu0 0.0
    %1693 = vmatpush1.xpose.msra.mxu0 0.0
    %1694 = vmatprep.subr.mxu0 0.0
    %1695 = vmatpush1.xpose.msra.mxu0 0.0
    %1696 = vmatprep.subr.mxu0 0.0
    %1697 = vmatpush1.xpose.msra.mxu0 0.0
    %1698 = vmatprep.subr.mxu0 0.0
    %1699 = vmatpush1.xpose.msra.mxu0 0.0
    %1700 = vmatprep.subr.mxu0 0.0
    %1701 = vmatpush1.xpose.msra.mxu0 0.0
    %1702 = vmatprep.mubr.f32.mxu0 0.0
    %1703 = vmatmul.mubr.f32.gmra.mrb[0].mxu0 %v1634
    %v1704 = vpop.f32.mrb[0].mxu0
    %v1705 = vadd.f32 0.0, %v1704
    %v1706 = vpop.f32.mrb[0].mxu0
    %1707 = vdwg.mxu0
    %v1708 = vmul.f32 %v1705, 0.25
    %v1709 = vadd.f32 %v1708, %v375
    %v1710 = vsel %vm377, %v1709, -inf
    %1711 = vmax.xlane.f32.xlu0 %v1710
    %v1712 = vpop.xlane.xlu0 %1711
    %v1713 = vsub.f32 %v1709, %v1712
    %v1714 = vmul.f32 %v1713, 1.442695
    %v1715 = vpow.pop %v1714
    %v1716 = vsel %vm377, %v1715, 0.0
    %1717 = vadd.xlane.f32.xlu0 %v1716
    %v1718 = vpop.xlane.xlu0 %1717
    %v1719 = vrcp.pop %v1718
    %v1720 = vmul.f32 %v1715, %v1719
    %1721 = vrot.lane.b32.xlu0 %v1456, 48
    %v1722 = vpop.permute.xlu0 %1721
    %v1725 = vsel %vm377, %v1720, 0
    %1727 = vmatprep.subr.mxu0 0.0
    %1728 = vmatpush1.msra.mxu0 %v1722
    %1729 = vmatprep.subr.mxu0 0.0
    %1730 = vmatpush1.msra.mxu0 0.0
    %1731 = vmatprep.subr.mxu0 0.0
    %1732 = vmatpush1.msra.mxu0 0.0
    %1733 = vmatprep.subr.mxu0 0.0
    %1734 = vmatpush1.msra.mxu0 0.0
    %1735 = vmatprep.subr.mxu0 0.0
    %1736 = vmatpush1.msra.mxu0 0.0
    %1737 = vmatprep.subr.mxu0 0.0
    %1738 = vmatpush1.msra.mxu0 0.0
    %1739 = vmatprep.subr.mxu0 0.0
    %1740 = vmatpush1.msra.mxu0 0.0
    %1741 = vmatprep.subr.mxu0 0.0
    %1742 = vmatpush1.msra.mxu0 0.0
    %1743 = vmatprep.subr.mxu0 0.0
    %1744 = vmatpush1.msra.mxu0 0.0
    %1745 = vmatprep.subr.mxu0 0.0
    %1746 = vmatpush1.msra.mxu0 0.0
    %1747 = vmatprep.subr.mxu0 0.0
    %1748 = vmatpush1.msra.mxu0 0.0
    %1749 = vmatprep.subr.mxu0 0.0
    %1750 = vmatpush1.msra.mxu0 0.0
    %1751 = vmatprep.subr.mxu0 0.0
    %1752 = vmatpush1.msra.mxu0 0.0
    %1753 = vmatprep.subr.mxu0 0.0
    %1754 = vmatpush1.msra.mxu0 0.0
    %1755 = vmatprep.subr.mxu0 0.0
    %1756 = vmatpush1.msra.mxu0 0.0
    %1757 = vmatprep.subr.mxu0 0.0
    %1758 = vmatpush1.msra.mxu0 0.0
    %1759 = vmatprep.subr.mxu0 0.0
    %1760 = vmatpush1.msra.mxu0 0.0
    %1761 = vmatprep.subr.mxu0 0.0
    %1762 = vmatpush1.msra.mxu0 0.0
    %1763 = vmatprep.subr.mxu0 0.0
    %1764 = vmatpush1.msra.mxu0 0.0
    %1765 = vmatprep.subr.mxu0 0.0
    %1766 = vmatpush1.msra.mxu0 0.0
    %1767 = vmatprep.subr.mxu0 0.0
    %1768 = vmatpush1.msra.mxu0 0.0
    %1769 = vmatprep.subr.mxu0 0.0
    %1770 = vmatpush1.msra.mxu0 0.0
    %1771 = vmatprep.subr.mxu0 0.0
    %1772 = vmatpush1.msra.mxu0 0.0
    %1773 = vmatprep.subr.mxu0 0.0
    %1774 = vmatpush1.msra.mxu0 0.0
    %1775 = vmatprep.subr.mxu0 0.0
    %1776 = vmatpush1.msra.mxu0 0.0
    %1777 = vmatprep.subr.mxu0 0.0
    %1778 = vmatpush1.msra.mxu0 0.0
    %1779 = vmatprep.subr.mxu0 0.0
    %1780 = vmatpush1.msra.mxu0 0.0
    %1781 = vmatprep.subr.mxu0 0.0
    %1782 = vmatpush1.msra.mxu0 0.0
    %1783 = vmatprep.subr.mxu0 0.0
    %1784 = vmatpush1.msra.mxu0 0.0
    %1785 = vmatprep.subr.mxu0 0.0
    %1786 = vmatpush1.msra.mxu0 0.0
    %1787 = vmatprep.subr.mxu0 0.0
    %1788 = vmatpush1.msra.mxu0 0.0
    %1789 = vmatprep.subr.mxu0 0.0
    %1790 = vmatpush1.msra.mxu0 0.0
    %1791 = vmatprep.mubr.f32.mxu0 0.0
    %1792 = vmatmul.mubr.f32.gmra.mrb[0].mxu0 %v1725
    %v1793 = vpop.f32.mrb[0].mxu0
    %v1794 = vadd.f32 0.0, %v1793
    %v1795 = vpop.f32.mrb[0].mxu0
    %1796 = vdwg.mxu0
    %1798 = vrot.lane.b32.xlu0 %v1794, 16
    %v1799 = vpop.permute.xlu0 %1798
    %v1801 = vsel %vm296, %v1627, %v1799
    %1803 = vrot.lane.b32.xlu0 %v1461, 96
    %v1804 = vpop.permute.xlu0 %1803
    %v1805 = vsel %vm296, %v1461, 0
    %v1807 = vsel %vm296, %v1804, 0
    %1809 = vmatprep.subr.mxu0 0.0
    %1810 = vmatpush1.xpose.msra.mxu0 %v1807
    %1811 = vmatprep.subr.mxu0 0.0
    %1812 = vmatpush1.xpose.msra.mxu0 0.0
    %1813 = vmatprep.subr.mxu0 0.0
    %1814 = vmatpush1.xpose.msra.mxu0 0.0
    %1815 = vmatprep.subr.mxu0 0.0
    %1816 = vmatpush1.xpose.msra.mxu0 0.0
    %1817 = vmatprep.subr.mxu0 0.0
    %1818 = vmatpush1.xpose.msra.mxu0 0.0
    %1819 = vmatprep.subr.mxu0 0.0
    %1820 = vmatpush1.xpose.msra.mxu0 0.0
    %1821 = vmatprep.subr.mxu0 0.0
    %1822 = vmatpush1.xpose.msra.mxu0 0.0
    %1823 = vmatprep.subr.mxu0 0.0
    %1824 = vmatpush1.xpose.msra.mxu0 0.0
    %1825 = vmatprep.subr.mxu0 0.0
    %1826 = vmatpush1.xpose.msra.mxu0 0.0
    %1827 = vmatprep.subr.mxu0 0.0
    %1828 = vmatpush1.xpose.msra.mxu0 0.0
    %1829 = vmatprep.subr.mxu0 0.0
    %1830 = vmatpush1.xpose.msra.mxu0 0.0
    %1831 = vmatprep.subr.mxu0 0.0
    %1832 = vmatpush1.xpose.msra.mxu0 0.0
    %1833 = vmatprep.subr.mxu0 0.0
    %1834 = vmatpush1.xpose.msra.mxu0 0.0
    %1835 = vmatprep.subr.mxu0 0.0
    %1836 = vmatpush1.xpose.msra.mxu0 0.0
    %1837 = vmatprep.subr.mxu0 0.0
    %1838 = vmatpush1.xpose.msra.mxu0 0.0
    %1839 = vmatprep.subr.mxu0 0.0
    %1840 = vmatpush1.xpose.msra.mxu0 0.0
    %1841 = vmatprep.subr.mxu0 0.0
    %1842 = vmatpush1.xpose.msra.mxu0 0.0
    %1843 = vmatprep.subr.mxu0 0.0
    %1844 = vmatpush1.xpose.msra.mxu0 0.0
    %1845 = vmatprep.subr.mxu0 0.0
    %1846 = vmatpush1.xpose.msra.mxu0 0.0
    %1847 = vmatprep.subr.mxu0 0.0
    %1848 = vmatpush1.xpose.msra.mxu0 0.0
    %1849 = vmatprep.subr.mxu0 0.0
    %1850 = vmatpush1.xpose.msra.mxu0 0.0
    %1851 = vmatprep.subr.mxu0 0.0
    %1852 = vmatpush1.xpose.msra.mxu0 0.0
    %1853 = vmatprep.subr.mxu0 0.0
    %1854 = vmatpush1.xpose.msra.mxu0 0.0
    %1855 = vmatprep.subr.mxu0 0.0
    %1856 = vmatpush1.xpose.msra.mxu0 0.0
    %1857 = vmatprep.subr.mxu0 0.0
    %1858 = vmatpush1.xpose.msra.mxu0 0.0
    %1859 = vmatprep.subr.mxu0 0.0
    %1860 = vmatpush1.xpose.msra.mxu0 0.0
    %1861 = vmatprep.subr.mxu0 0.0
    %1862 = vmatpush1.xpose.msra.mxu0 0.0
    %1863 = vmatprep.subr.mxu0 0.0
    %1864 = vmatpush1.xpose.msra.mxu0 0.0
    %1865 = vmatprep.subr.mxu0 0.0
    %1866 = vmatpush1.xpose.msra.mxu0 0.0
    %1867 = vmatprep.subr.mxu0 0.0
    %1868 = vmatpush1.xpose.msra.mxu0 0.0
    %1869 = vmatprep.subr.mxu0 0.0
    %1870 = vmatpush1.xpose.msra.mxu0 0.0
    %1871 = vmatprep.subr.mxu0 0.0
    %1872 = vmatpush1.xpose.msra.mxu0 0.0
    %1873 = vmatprep.mubr.f32.mxu0 0.0
    %1874 = vmatmul.mubr.f32.gmra.mrb[0].mxu0 %v1805
    %v1875 = vpop.f32.mrb[0].mxu0
    %v1876 = vadd.f32 0.0, %v1875
    %v1877 = vpop.f32.mrb[0].mxu0
    %1878 = vdwg.mxu0
    %v1879 = vmul.f32 %v1876, 0.25
    %v1880 = vadd.f32 %v1879, %v718
    %v1881 = vsel %vm377, %v1880, -inf
    %1882 = vmax.xlane.f32.xlu0 %v1881
    %v1883 = vpop.xlane.xlu0 %1882
    %v1884 = vsub.f32 %v1880, %v1883
    %v1885 = vmul.f32 %v1884, 1.442695
    %v1886 = vpow.pop %v1885
    %v1887 = vsel %vm377, %v1886, 0.0
    %1888 = vadd.xlane.f32.xlu0 %v1887
    %v1889 = vpop.xlane.xlu0 %1888
    %v1890 = vrcp.pop %v1889
    %v1891 = vmul.f32 %v1886, %v1890
    %1892 = vrot.lane.b32.xlu0 %v1461, 64
    %v1893 = vpop.permute.xlu0 %1892
    %v1896 = vsel %vm377, %v1891, 0
    %1898 = vmatprep.subr.mxu0 0.0
    %1899 = vmatpush1.msra.mxu0 %v1893
    %1900 = vmatprep.subr.mxu0 0.0
    %1901 = vmatpush1.msra.mxu0 0.0
    %1902 = vmatprep.subr.mxu0 0.0
    %1903 = vmatpush1.msra.mxu0 0.0
    %1904 = vmatprep.subr.mxu0 0.0
    %1905 = vmatpush1.msra.mxu0 0.0
    %1906 = vmatprep.subr.mxu0 0.0
    %1907 = vmatpush1.msra.mxu0 0.0
    %1908 = vmatprep.subr.mxu0 0.0
    %1909 = vmatpush1.msra.mxu0 0.0
    %1910 = vmatprep.subr.mxu0 0.0
    %1911 = vmatpush1.msra.mxu0 0.0
    %1912 = vmatprep.subr.mxu0 0.0
    %1913 = vmatpush1.msra.mxu0 0.0
    %1914 = vmatprep.subr.mxu0 0.0
    %1915 = vmatpush1.msra.mxu0 0.0
    %1916 = vmatprep.subr.mxu0 0.0
    %1917 = vmatpush1.msra.mxu0 0.0
    %1918 = vmatprep.subr.mxu0 0.0
    %1919 = vmatpush1.msra.mxu0 0.0
    %1920 = vmatprep.subr.mxu0 0.0
    %1921 = vmatpush1.msra.mxu0 0.0
    %1922 = vmatprep.subr.mxu0 0.0
    %1923 = vmatpush1.msra.mxu0 0.0
    %1924 = vmatprep.subr.mxu0 0.0
    %1925 = vmatpush1.msra.mxu0 0.0
    %1926 = vmatprep.subr.mxu0 0.0
    %1927 = vmatpush1.msra.mxu0 0.0
    %1928 = vmatprep.subr.mxu0 0.0
    %1929 = vmatpush1.msra.mxu0 0.0
    %1930 = vmatprep.subr.mxu0 0.0
    %1931 = vmatpush1.msra.mxu0 0.0
    %1932 = vmatprep.subr.mxu0 0.0
    %1933 = vmatpush1.msra.mxu0 0.0
    %1934 = vmatprep.subr.mxu0 0.0
    %1935 = vmatpush1.msra.mxu0 0.0
    %1936 = vmatprep.subr.mxu0 0.0
    %1937 = vmatpush1.msra.mxu0 0.0
    %1938 = vmatprep.subr.mxu0 0.0
    %1939 = vmatpush1.msra.mxu0 0.0
    %1940 = vmatprep.subr.mxu0 0.0
    %1941 = vmatpush1.msra.mxu0 0.0
    %1942 = vmatprep.subr.mxu0 0.0
    %1943 = vmatpush1.msra.mxu0 0.0
    %1944 = vmatprep.subr.mxu0 0.0
    %1945 = vmatpush1.msra.mxu0 0.0
    %1946 = vmatprep.subr.mxu0 0.0
    %1947 = vmatpush1.msra.mxu0 0.0
    %1948 = vmatprep.subr.mxu0 0.0
    %1949 = vmatpush1.msra.mxu0 0.0
    %1950 = vmatprep.subr.mxu0 0.0
    %1951 = vmatpush1.msra.mxu0 0.0
    %1952 = vmatprep.subr.mxu0 0.0
    %1953 = vmatpush1.msra.mxu0 0.0
    %1954 = vmatprep.subr.mxu0 0.0
    %1955 = vmatpush1.msra.mxu0 0.0
    %1956 = vmatprep.subr.mxu0 0.0
    %1957 = vmatpush1.msra.mxu0 0.0
    %1958 = vmatprep.subr.mxu0 0.0
    %1959 = vmatpush1.msra.mxu0 0.0
    %1960 = vmatprep.subr.mxu0 0.0
    %1961 = vmatpush1.msra.mxu0 0.0
    %1962 = vmatprep.mubr.f32.mxu0 0.0
    %1963 = vmatmul.mubr.f32.gmra.mrb[0].mxu0 %v1896
    %v1964 = vpop.f32.mrb[0].mxu0
    %v1965 = vadd.f32 0.0, %v1964
    %v1966 = vpop.f32.mrb[0].mxu0
    %1967 = vdwg.mxu0
    %1968 = vrot.lane.b32.xlu0 %v1461, 112
    %v1969 = vpop.permute.xlu0 %1968
    %1970 = vrot.lane.b32.xlu0 %v1461, 80
    %v1971 = vpop.permute.xlu0 %1970
    %v1972 = vsel %vm296, %v1969, 0
    %v1974 = vsel %vm296, %v1971, 0
    %1976 = vmatprep.subr.mxu0 0.0
    %1977 = vmatpush1.xpose.msra.mxu0 %v1974
    %1978 = vmatprep.subr.mxu0 0.0
    %1979 = vmatpush1.xpose.msra.mxu0 0.0
    %1980 = vmatprep.subr.mxu0 0.0
    %1981 = vmatpush1.xpose.msra.mxu0 0.0
    %1982 = vmatprep.subr.mxu0 0.0
    %1983 = vmatpush1.xpose.msra.mxu0 0.0
    %1984 = vmatprep.subr.mxu0 0.0
    %1985 = vmatpush1.xpose.msra.mxu0 0.0
    %1986 = vmatprep.subr.mxu0 0.0
    %1987 = vmatpush1.xpose.msra.mxu0 0.0
    %1988 = vmatprep.subr.mxu0 0.0
    %1989 = vmatpush1.xpose.msra.mxu0 0.0
    %1990 = vmatprep.subr.mxu0 0.0
    %1991 = vmatpush1.xpose.msra.mxu0 0.0
    %1992 = vmatprep.subr.mxu0 0.0
    %1993 = vmatpush1.xpose.msra.mxu0 0.0
    %1994 = vmatprep.subr.mxu0 0.0
    %1995 = vmatpush1.xpose.msra.mxu0 0.0
    %1996 = vmatprep.subr.mxu0 0.0
    %1997 = vmatpush1.xpose.msra.mxu0 0.0
    %1998 = vmatprep.subr.mxu0 0.0
    %1999 = vmatpush1.xpose.msra.mxu0 0.0
    %2000 = vmatprep.subr.mxu0 0.0
    %2001 = vmatpush1.xpose.msra.mxu0 0.0
    %2002 = vmatprep.subr.mxu0 0.0
    %2003 = vmatpush1.xpose.msra.mxu0 0.0
    %2004 = vmatprep.subr.mxu0 0.0
    %2005 = vmatpush1.xpose.msra.mxu0 0.0
    %2006 = vmatprep.subr.mxu0 0.0
    %2007 = vmatpush1.xpose.msra.mxu0 0.0
    %2008 = vmatprep.subr.mxu0 0.0
    %2009 = vmatpush1.xpose.msra.mxu0 0.0
    %2010 = vmatprep.subr.mxu0 0.0
    %2011 = vmatpush1.xpose.msra.mxu0 0.0
    %2012 = vmatprep.subr.mxu0 0.0
    %2013 = vmatpush1.xpose.msra.mxu0 0.0
    %2014 = vmatprep.subr.mxu0 0.0
    %2015 = vmatpush1.xpose.msra.mxu0 0.0
    %2016 = vmatprep.subr.mxu0 0.0
    %2017 = vmatpush1.xpose.msra.mxu0 0.0
    %2018 = vmatprep.subr.mxu0 0.0
    %2019 = vmatpush1.xpose.msra.mxu0 0.0
    %2020 = vmatprep.subr.mxu0 0.0
    %2021 = vmatpush1.xpose.msra.mxu0 0.0
    %2022 = vmatprep.subr.mxu0 0.0
    %2023 = vmatpush1.xpose.msra.mxu0 0.0
    %2024 = vmatprep.subr.mxu0 0.0
    %2025 = vmatpush1.xpose.msra.mxu0 0.0
    %2026 = vmatprep.subr.mxu0 0.0
    %2027 = vmatpush1.xpose.msra.mxu0 0.0
    %2028 = vmatprep.subr.mxu0 0.0
    %2029 = vmatpush1.xpose.msra.mxu0 0.0
    %2030 = vmatprep.subr.mxu0 0.0
    %2031 = vmatpush1.xpose.msra.mxu0 0.0
    %2032 = vmatprep.subr.mxu0 0.0
    %2033 = vmatpush1.xpose.msra.mxu0 0.0
    %2034 = vmatprep.subr.mxu0 0.0
    %2035 = vmatpush1.xpose.msra.mxu0 0.0
    %2036 = vmatprep.subr.mxu0 0.0
    %2037 = vmatpush1.xpose.msra.mxu0 0.0
    %2038 = vmatprep.subr.mxu0 0.0
    %2039 = vmatpush1.xpose.msra.mxu0 0.0
    %2040 = vmatprep.mubr.f32.mxu0 0.0
    %2041 = vmatmul.mubr.f32.gmra.mrb[0].mxu0 %v1972
    %v2042 = vpop.f32.mrb[0].mxu0
    %v2043 = vadd.f32 0.0, %v2042
    %v2044 = vpop.f32.mrb[0].mxu0
    %2045 = vdwg.mxu0
    %v2046 = vmul.f32 %v2043, 0.25
    %v2047 = vadd.f32 %v2046, %v718
    %v2048 = vsel %vm377, %v2047, -inf
    %2049 = vmax.xlane.f32.xlu0 %v2048
    %v2050 = vpop.xlane.xlu0 %2049
    %v2051 = vsub.f32 %v2047, %v2050
    %v2052 = vmul.f32 %v2051, 1.442695
    %v2053 = vpow.pop %v2052
    %v2054 = vsel %vm377, %v2053, 0.0
    %2055 = vadd.xlane.f32.xlu0 %v2054
    %v2056 = vpop.xlane.xlu0 %2055
    %v2057 = vrcp.pop %v2056
    %v2058 = vmul.f32 %v2053, %v2057
    %2059 = vrot.lane.b32.xlu0 %v1461, 48
    %v2060 = vpop.permute.xlu0 %2059
    %v2063 = vsel %vm377, %v2058, 0
    %2065 = vmatprep.subr.mxu0 0.0
    %2066 = vmatpush1.msra.mxu0 %v2060
    %2067 = vmatprep.subr.mxu0 0.0
    %2068 = vmatpush1.msra.mxu0 0.0
    %2069 = vmatprep.subr.mxu0 0.0
    %2070 = vmatpush1.msra.mxu0 0.0
    %2071 = vmatprep.subr.mxu0 0.0
    %2072 = vmatpush1.msra.mxu0 0.0
    %2073 = vmatprep.subr.mxu0 0.0
    %2074 = vmatpush1.msra.mxu0 0.0
    %2075 = vmatprep.subr.mxu0 0.0
    %2076 = vmatpush1.msra.mxu0 0.0
    %2077 = vmatprep.subr.mxu0 0.0
    %2078 = vmatpush1.msra.mxu0 0.0
    %2079 = vmatprep.subr.mxu0 0.0
    %2080 = vmatpush1.msra.mxu0 0.0
    %2081 = vmatprep.subr.mxu0 0.0
    %2082 = vmatpush1.msra.mxu0 0.0
    %2083 = vmatprep.subr.mxu0 0.0
    %2084 = vmatpush1.msra.mxu0 0.0
    %2085 = vmatprep.subr.mxu0 0.0
    %2086 = vmatpush1.msra.mxu0 0.0
    %2087 = vmatprep.subr.mxu0 0.0
    %2088 = vmatpush1.msra.mxu0 0.0
    %2089 = vmatprep.subr.mxu0 0.0
    %2090 = vmatpush1.msra.mxu0 0.0
    %2091 = vmatprep.subr.mxu0 0.0
    %2092 = vmatpush1.msra.mxu0 0.0
    %2093 = vmatprep.subr.mxu0 0.0
    %2094 = vmatpush1.msra.mxu0 0.0
    %2095 = vmatprep.subr.mxu0 0.0
    %2096 = vmatpush1.msra.mxu0 0.0
    %2097 = vmatprep.subr.mxu0 0.0
    %2098 = vmatpush1.msra.mxu0 0.0
    %2099 = vmatprep.subr.mxu0 0.0
    %2100 = vmatpush1.msra.mxu0 0.0
    %2101 = vmatprep.subr.mxu0 0.0
    %2102 = vmatpush1.msra.mxu0 0.0
    %2103 = vmatprep.subr.mxu0 0.0
    %2104 = vmatpush1.msra.mxu0 0.0
    %2105 = vmatprep.subr.mxu0 0.0
    %2106 = vmatpush1.msra.mxu0 0.0
    %2107 = vmatprep.subr.mxu0 0.0
    %2108 = vmatpush1.msra.mxu0 0.0
    %2109 = vmatprep.subr.mxu0 0.0
    %2110 = vmatpush1.msra.mxu0 0.0
    %2111 = vmatprep.subr.mxu0 0.0
    %2112 = vmatpush1.msra.mxu0 0.0
    %2113 = vmatprep.subr.mxu0 0.0
    %2114 = vmatpush1.msra.mxu0 0.0
    %2115 = vmatprep.subr.mxu0 0.0
    %2116 = vmatpush1.msra.mxu0 0.0
    %2117 = vmatprep.subr.mxu0 0.0
    %2118 = vmatpush1.msra.mxu0 0.0
    %2119 = vmatprep.subr.mxu0 0.0
    %2120 = vmatpush1.msra.mxu0 0.0
    %2121 = vmatprep.subr.mxu0 0.0
    %2122 = vmatpush1.msra.mxu0 0.0
    %2123 = vmatprep.subr.mxu0 0.0
    %2124 = vmatpush1.msra.mxu0 0.0
    %2125 = vmatprep.subr.mxu0 0.0
    %2126 = vmatpush1.msra.mxu0 0.0
    %2127 = vmatprep.subr.mxu0 0.0
    %2128 = vmatpush1.msra.mxu0 0.0
    %2129 = vmatprep.mubr.f32.mxu0 0.0
    %2130 = vmatmul.mubr.f32.gmra.mrb[0].mxu0 %v2063
    %v2131 = vpop.f32.mrb[0].mxu0
    %v2132 = vadd.f32 0.0, %v2131
    %v2133 = vpop.f32.mrb[0].mxu0
    %2134 = vdwg.mxu0
    %2136 = vrot.lane.b32.xlu0 %v2132, 16
    %v2137 = vpop.permute.xlu0 %2136
    %v2139 = vsel %vm296, %v1965, %v2137
    %s2140 = scalar_lea.vmem %s7, 32
    %v2141 = vld [vmem:[%s2140] sm:$0xff]
    %v2142 = vld [vmem:[%s2140 + $0x8] sm:$0xff]
    %v2143 = vld [vmem:[%s2140 + $0x10] sm:$0xff]
    %v2144 = vld [vmem:[%s2140 + $0x18] sm:$0xff]
    %s2145 = scalar_lea.vmem [#allocation11], 1
    %v2146 = vld [vmem:[%s2145] sm:$0x1]
    %v2148 = vlaneseq
    %v2149 = vshrl.u32 %v2148, 7
    %v2150 = vsub.s32 0, %v2149
    %v2151 = vrot.slane %v2146, %v2150
    %v2154 = vsel %vm156, %v1801, 0
    %v2157 = vsel %vm156, %v2139, 0
    %2159 = vmatprep.subr.mxu0 0.0
    %2160 = vmatpush1.msra.mxu0 %v2141
    %2161 = vmatprep.subr.mxu0 0.0
    %2162 = vmatpush1.msra.mxu0 %v2142
    %2163 = vmatprep.subr.mxu0 0.0
    %2164 = vmatpush1.msra.mxu0 %v2143
    %2165 = vmatprep.subr.mxu0 0.0
    %2166 = vmatpush1.msra.mxu0 %v2144
    %2167 = vmatprep.subr.mxu0 0.0
    %2168 = vmatpush1.msra.mxu0 0.0
    %2169 = vmatprep.subr.mxu0 0.0
    %2170 = vmatpush1.msra.mxu0 0.0
    %2171 = vmatprep.subr.mxu0 0.0
    %2172 = vmatpush1.msra.mxu0 0.0
    %2173 = vmatprep.subr.mxu0 0.0
    %2174 = vmatpush1.msra.mxu0 0.0
    %2175 = vmatprep.subr.mxu0 0.0
    %2176 = vmatpush1.msra.mxu0 0.0
    %2177 = vmatprep.subr.mxu0 0.0
    %2178 = vmatpush1.msra.mxu0 0.0
    %2179 = vmatprep.subr.mxu0 0.0
    %2180 = vmatpush1.msra.mxu0 0.0
    %2181 = vmatprep.subr.mxu0 0.0
    %2182 = vmatpush1.msra.mxu0 0.0
    %2183 = vmatprep.subr.mxu0 0.0
    %2184 = vmatpush1.msra.mxu0 0.0
    %2185 = vmatprep.subr.mxu0 0.0
    %2186 = vmatpush1.msra.mxu0 0.0
    %2187 = vmatprep.subr.mxu0 0.0
    %2188 = vmatpush1.msra.mxu0 0.0
    %2189 = vmatprep.subr.mxu0 0.0
    %2190 = vmatpush1.msra.mxu0 0.0
    %2191 = vmatprep.subr.mxu0 0.0
    %2192 = vmatpush1.msra.mxu0 0.0
    %2193 = vmatprep.subr.mxu0 0.0
    %2194 = vmatpush1.msra.mxu0 0.0
    %2195 = vmatprep.subr.mxu0 0.0
    %2196 = vmatpush1.msra.mxu0 0.0
    %2197 = vmatprep.subr.mxu0 0.0
    %2198 = vmatpush1.msra.mxu0 0.0
    %2199 = vmatprep.subr.mxu0 0.0
    %2200 = vmatpush1.msra.mxu0 0.0
    %2201 = vmatprep.subr.mxu0 0.0
    %2202 = vmatpush1.msra.mxu0 0.0
    %2203 = vmatprep.subr.mxu0 0.0
    %2204 = vmatpush1.msra.mxu0 0.0
    %2205 = vmatprep.subr.mxu0 0.0
    %2206 = vmatpush1.msra.mxu0 0.0
    %2207 = vmatprep.subr.mxu0 0.0
    %2208 = vmatpush1.msra.mxu0 0.0
    %2209 = vmatprep.subr.mxu0 0.0
    %2210 = vmatpush1.msra.mxu0 0.0
    %2211 = vmatprep.subr.mxu0 0.0
    %2212 = vmatpush1.msra.mxu0 0.0
    %2213 = vmatprep.subr.mxu0 0.0
    %2214 = vmatpush1.msra.mxu0 0.0
    %2215 = vmatprep.subr.mxu0 0.0
    %2216 = vmatpush1.msra.mxu0 0.0
    %2217 = vmatprep.subr.mxu0 0.0
    %2218 = vmatpush1.msra.mxu0 0.0
    %2219 = vmatprep.subr.mxu0 0.0
    %2220 = vmatpush1.msra.mxu0 0.0
    %2221 = vmatprep.subr.mxu0 0.0
    %2222 = vmatpush1.msra.mxu0 0.0
    %2223 = vmatprep.mubr.f32.mxu0 0.0
    %2224 = vmatmul.mubr.f32.gmra.mrb[0].mxu0 %v2154
    %v2225 = vpop.f32.mrb[0].mxu0
    %v2226 = vadd.f32 %v2151, %v2225
    %v2227 = vpop.f32.mrb[0].mxu0
    %2228 = vmatprep.mubr.f32.mxu0 0.0
    %2229 = vmatmul.mubr.f32.gmra.mrb[0].mxu0 %v2157
    %v2230 = vpop.f32.mrb[0].mxu0
    %v2231 = vadd.f32 %v2151, %v2230
    %v2232 = vpop.f32.mrb[0].mxu0
    %2233 = vdwg.mxu0
    %v2234 = vadd.f32 %v1368, %v2226
    %v2235 = vadd.f32 %v1369, %v2231
    %s2236 = scalar_lea.vmem [#allocation13], 1
    %v2237 = vld [vmem:[%s2236] sm:$0x1]
    %s2238 = scalar_lea.vmem %s10, 1
    %v2239 = vld [vmem:[%s2238] sm:$0x1]
    %v2240 = vsel %vm156, %v2234, 0.0
    %2241 = vadd.xlane.f32.xlu0 %v2240
    %v2242 = vpop.xlane.xlu0 %2241
    %v2243 = vsel %vm156, %v2235, 0.0
    %2244 = vadd.xlane.f32.xlu0 %v2243
    %v2245 = vpop.xlane.xlu0 %2244
    %v2246 = vmul.f32 %v2242, %v163
    %v2247 = vmul.f32 %v2245, %v163
    %v2248 = vsub.f32 %v2234, %v2246
    %v2249 = vsub.f32 %v2235, %v2247
    %v2250 = vmul.f32 %v2248, %v2248
    %v2251 = vmul.f32 %v2249, %v2249
    %v2252 = vsel %vm156, %v2250, 0.0
    %2253 = vadd.xlane.f32.xlu0 %v2252
    %v2254 = vpop.xlane.xlu0 %2253
    %v2255 = vsel %vm156, %v2251, 0.0
    %2256 = vadd.xlane.f32.xlu0 %v2255
    %v2257 = vpop.xlane.xlu0 %2256
    %v2258 = vmul.f32 %v2254, %v163
    %v2259 = vmul.f32 %v2257, %v163
    %v2260 = vadd.f32 %v2258, 1e-12
    %v2261 = vadd.f32 %v2259, 1e-12
    %v2262 = vrsqrt.pop %v2260
    %v2263 = vrsqrt.pop %v2261
    %v2264 = vmul.f32 %v2248, %v2262
    %v2265 = vmul.f32 %v2249, %v2263
    %v2267 = vlaneseq
    %v2268 = vshrl.u32 %v2267, 7
    %v2269 = vsub.s32 0, %v2268
    %v2270 = vrot.slane %v2237, %v2269
    %v2272 = vmul.f32 %v2264, %v2270
    %v2273 = vmul.f32 %v2265, %v2270
    %v2275 = vlaneseq
    %v2276 = vshrl.u32 %v2275, 7
    %v2277 = vsub.s32 0, %v2276
    %v2278 = vrot.slane %v2239, %v2277
    %v2280 = vadd.f32 %v2272, %v2278
    %v2281 = vadd.f32 %v2273, %v2278
    %s2282 = scalar_lea.vmem %s11, 32
    %v2283 = vld [vmem:[%s2282] sm:$0xff]
    %v2284 = vld [vmem:[%s2282 + $0x8] sm:$0xff]
    %v2285 = vld [vmem:[%s2282 + $0x10] sm:$0xff]
    %v2286 = vld [vmem:[%s2282 + $0x18] sm:$0xff]
    %s2287 = scalar_lea.vmem %s12, 1
    %v2288 = vld [vmem:[%s2287] sm:$0x1]
    %v2290 = vlaneseq
    %v2291 = vshrl.u32 %v2290, 7
    %v2292 = vsub.s32 0, %v2291
    %v2293 = vrot.slane %v2288, %v2292
    %v2296 = vsel %vm156, %v2280, 0
    %v2299 = vsel %vm156, %v2281, 0
    %2301 = vmatprep.subr.mxu0 0.0
    %2302 = vmatpush1.msra.mxu0 %v2283
    %2303 = vmatprep.subr.mxu0 0.0
    %2304 = vmatpush1.msra.mxu0 %v2284
    %2305 = vmatprep.subr.mxu0 0.0
    %2306 = vmatpush1.msra.mxu0 %v2285
    %2307 = vmatprep.subr.mxu0 0.0
    %2308 = vmatpush1.msra.mxu0 %v2286
    %2309 = vmatprep.subr.mxu0 0.0
    %2310 = vmatpush1.msra.mxu0 0.0
    %2311 = vmatprep.subr.mxu0 0.0
    %2312 = vmatpush1.msra.mxu0 0.0
    %2313 = vmatprep.subr.mxu0 0.0
    %2314 = vmatpush1.msra.mxu0 0.0
    %2315 = vmatprep.subr.mxu0 0.0
    %2316 = vmatpush1.msra.mxu0 0.0
    %2317 = vmatprep.subr.mxu0 0.0
    %2318 = vmatpush1.msra.mxu0 0.0
    %2319 = vmatprep.subr.mxu0 0.0
    %2320 = vmatpush1.msra.mxu0 0.0
    %2321 = vmatprep.subr.mxu0 0.0
    %2322 = vmatpush1.msra.mxu0 0.0
    %2323 = vmatprep.subr.mxu0 0.0
    %2324 = vmatpush1.msra.mxu0 0.0
    %2325 = vmatprep.subr.mxu0 0.0
    %2326 = vmatpush1.msra.mxu0 0.0
    %2327 = vmatprep.subr.mxu0 0.0
    %2328 = vmatpush1.msra.mxu0 0.0
    %2329 = vmatprep.subr.mxu0 0.0
    %2330 = vmatpush1.msra.mxu0 0.0
    %2331 = vmatprep.subr.mxu0 0.0
    %2332 = vmatpush1.msra.mxu0 0.0
    %2333 = vmatprep.subr.mxu0 0.0
    %2334 = vmatpush1.msra.mxu0 0.0
    %2335 = vmatprep.subr.mxu0 0.0
    %2336 = vmatpush1.msra.mxu0 0.0
    %2337 = vmatprep.subr.mxu0 0.0
    %2338 = vmatpush1.msra.mxu0 0.0
    %2339 = vmatprep.subr.mxu0 0.0
    %2340 = vmatpush1.msra.mxu0 0.0
    %2341 = vmatprep.subr.mxu0 0.0
    %2342 = vmatpush1.msra.mxu0 0.0
    %2343 = vmatprep.subr.mxu0 0.0
    %2344 = vmatpush1.msra.mxu0 0.0
    %2345 = vmatprep.subr.mxu0 0.0
    %2346 = vmatpush1.msra.mxu0 0.0
    %2347 = vmatprep.subr.mxu0 0.0
    %2348 = vmatpush1.msra.mxu0 0.0
    %2349 = vmatprep.subr.mxu0 0.0
    %2350 = vmatpush1.msra.mxu0 0.0
    %2351 = vmatprep.subr.mxu0 0.0
    %2352 = vmatpush1.msra.mxu0 0.0
    %2353 = vmatprep.subr.mxu0 0.0
    %2354 = vmatpush1.msra.mxu0 0.0
    %2355 = vmatprep.subr.mxu0 0.0
    %2356 = vmatpush1.msra.mxu0 0.0
    %2357 = vmatprep.subr.mxu0 0.0
    %2358 = vmatpush1.msra.mxu0 0.0
    %2359 = vmatprep.subr.mxu0 0.0
    %2360 = vmatpush1.msra.mxu0 0.0
    %2361 = vmatprep.subr.mxu0 0.0
    %2362 = vmatpush1.msra.mxu0 0.0
    %2363 = vmatprep.subr.mxu0 0.0
    %2364 = vmatpush1.msra.mxu0 0.0
    %2365 = vmatprep.mubr.f32.mxu0 0.0
    %2366 = vmatmul.mubr.f32.gmra.mrb[0].mxu0 %v2296
    %v2367 = vpop.f32.mrb[0].mxu0
    %v2368 = vadd.f32 %v2293, %v2367
    %v2369 = vpop.f32.mrb[0].mxu0
    %2370 = vmatprep.mubr.f32.mxu0 0.0
    %2371 = vmatmul.mubr.f32.gmra.mrb[0].mxu0 %v2299
    %v2372 = vpop.f32.mrb[0].mxu0
    %v2373 = vadd.f32 %v2293, %v2372
    %v2374 = vpop.f32.mrb[0].mxu0
    %2375 = vdwg.mxu0
    %v2376 = vmul.f32 %v2368, 0.5
    %v2377 = vmul.f32 %v2373, 0.5
    %v2378 = vmul.f32 %v2368, 0.044715
    %v2379 = vmul.f32 %v2373, 0.044715
    %v2380 = vmul.f32 %v2378, %v2368
    %v2381 = vmul.f32 %v2379, %v2373
    %v2382 = vmul.f32 %v2380, %v2368
    %v2383 = vmul.f32 %v2381, %v2373
    %v2384 = vadd.f32 %v2368, %v2382
    %v2385 = vadd.f32 %v2373, %v2383
    %v2386 = vmul.f32 %v2384, 0.7978846
    %v2387 = vmul.f32 %v2385, 0.7978846
    %v2388 = vtanh.pop %v2386
    %v2389 = vtanh.pop %v2387
    %v2390 = vadd.f32 %v2388, 1.0
    %v2391 = vadd.f32 %v2389, 1.0
    %v2392 = vmul.f32 %v2376, %v2390
    %v2393 = vmul.f32 %v2377, %v2391
    %s2394 = scalar_lea.vmem %s13, 64
    %v2395 = vld [vmem:[%s2394] sm:$0xff]
    %v2396 = vld [vmem:[%s2394 + $0x8] sm:$0xff]
    %v2397 = vld [vmem:[%s2394 + $0x10] sm:$0xff]
    %v2398 = vld [vmem:[%s2394 + $0x18] sm:$0xff]
    %v2399 = vld [vmem:[%s2394 + $0x20] sm:$0xff]
    %v2400 = vld [vmem:[%s2394 + $0x28] sm:$0xff]
    %v2401 = vld [vmem:[%s2394 + $0x30] sm:$0xff]
    %v2402 = vld [vmem:[%s2394 + $0x38] sm:$0xff]
    %s2403 = scalar_lea.vmem %s14, 1
    %v2404 = vld [vmem:[%s2403] sm:$0x1]
    %v2406 = vlaneseq
    %v2407 = vshrl.u32 %v2406, 7
    %v2408 = vsub.s32 0, %v2407
    %v2409 = vrot.slane %v2404, %v2408
    %v2412 = vsel %vm1242, %v2392, 0
    %v2415 = vsel %vm1242, %v2393, 0
    %2417 = vmatprep.subr.mxu0 0.0
    %2418 = vmatpush1.msra.mxu0 %v2395
    %2419 = vmatprep.subr.mxu0 0.0
    %2420 = vmatpush1.msra.mxu0 %v2396
    %2421 = vmatprep.subr.mxu0 0.0
    %2422 = vmatpush1.msra.mxu0 %v2397
    %2423 = vmatprep.subr.mxu0 0.0
    %2424 = vmatpush1.msra.mxu0 %v2398
    %2425 = vmatprep.subr.mxu0 0.0
    %2426 = vmatpush1.msra.mxu0 %v2399
    %2427 = vmatprep.subr.mxu0 0.0
    %2428 = vmatpush1.msra.mxu0 %v2400
    %2429 = vmatprep.subr.mxu0 0.0
    %2430 = vmatpush1.msra.mxu0 %v2401
    %2431 = vmatprep.subr.mxu0 0.0
    %2432 = vmatpush1.msra.mxu0 %v2402
    %2433 = vmatprep.subr.mxu0 0.0
    %2434 = vmatpush1.msra.mxu0 0.0
    %2435 = vmatprep.subr.mxu0 0.0
    %2436 = vmatpush1.msra.mxu0 0.0
    %2437 = vmatprep.subr.mxu0 0.0
    %2438 = vmatpush1.msra.mxu0 0.0
    %2439 = vmatprep.subr.mxu0 0.0
    %2440 = vmatpush1.msra.mxu0 0.0
    %2441 = vmatprep.subr.mxu0 0.0
    %2442 = vmatpush1.msra.mxu0 0.0
    %2443 = vmatprep.subr.mxu0 0.0
    %2444 = vmatpush1.msra.mxu0 0.0
    %2445 = vmatprep.subr.mxu0 0.0
    %2446 = vmatpush1.msra.mxu0 0.0
    %2447 = vmatprep.subr.mxu0 0.0
    %2448 = vmatpush1.msra.mxu0 0.0
    %2449 = vmatprep.subr.mxu0 0.0
    %2450 = vmatpush1.msra.mxu0 0.0
    %2451 = vmatprep.subr.mxu0 0.0
    %2452 = vmatpush1.msra.mxu0 0.0
    %2453 = vmatprep.subr.mxu0 0.0
    %2454 = vmatpush1.msra.mxu0 0.0
    %2455 = vmatprep.subr.mxu0 0.0
    %2456 = vmatpush1.msra.mxu0 0.0
    %2457 = vmatprep.subr.mxu0 0.0
    %2458 = vmatpush1.msra.mxu0 0.0
    %2459 = vmatprep.subr.mxu0 0.0
    %2460 = vmatpush1.msra.mxu0 0.0
    %2461 = vmatprep.subr.mxu0 0.0
    %2462 = vmatpush1.msra.mxu0 0.0
    %2463 = vmatprep.subr.mxu0 0.0
    %2464 = vmatpush1.msra.mxu0 0.0
    %2465 = vmatprep.subr.mxu0 0.0
    %2466 = vmatpush1.msra.mxu0 0.0
    %2467 = vmatprep.subr.mxu0 0.0
    %2468 = vmatpush1.msra.mxu0 0.0
    %2469 = vmatprep.subr.mxu0 0.0
    %2470 = vmatpush1.msra.mxu0 0.0
    %2471 = vmatprep.subr.mxu0 0.0
    %2472 = vmatpush1.msra.mxu0 0.0
    %2473 = vmatprep.subr.mxu0 0.0
    %2474 = vmatpush1.msra.mxu0 0.0
    %2475 = vmatprep.subr.mxu0 0.0
    %2476 = vmatpush1.msra.mxu0 0.0
    %2477 = vmatprep.subr.mxu0 0.0
    %2478 = vmatpush1.msra.mxu0 0.0
    %2479 = vmatprep.subr.mxu0 0.0
    %2480 = vmatpush1.msra.mxu0 0.0
    %2481 = vmatprep.mubr.f32.mxu0 0.0
    %2482 = vmatmul.mubr.f32.gmra.mrb[0].mxu0 %v2412
    %v2483 = vpop.f32.mrb[0].mxu0
    %v2484 = vadd.f32 %v2409, %v2483
    %v2485 = vpop.f32.mrb[0].mxu0
    %2486 = vmatprep.mubr.f32.mxu0 0.0
    %2487 = vmatmul.mubr.f32.gmra.mrb[0].mxu0 %v2415
    %v2488 = vpop.f32.mrb[0].mxu0
    %v2489 = vadd.f32 %v2409, %v2488
    %v2490 = vpop.f32.mrb[0].mxu0
    %2491 = vdwg.mxu0
    %v2492 = vadd.f32 %v2280, %v2484
    %v2493 = vadd.f32 %v2281, %v2489
    %s2494 = scalar_lea.vmem %s15, 1
    %v2495 = vld [vmem:[%s2494] sm:$0x1]
    %s2496 = scalar_lea.vmem %s16, 1
    %v2497 = vld [vmem:[%s2496] sm:$0x1]
    %v2498 = vsel %vm156, %v2492, 0.0
    %2499 = vadd.xlane.f32.xlu0 %v2498
    %v2500 = vpop.xlane.xlu0 %2499
    %v2501 = vsel %vm156, %v2493, 0.0
    %2502 = vadd.xlane.f32.xlu0 %v2501
    %v2503 = vpop.xlane.xlu0 %2502
    %v2504 = vmul.f32 %v2500, %v163
    %v2505 = vmul.f32 %v2503, %v163
    %v2506 = vsub.f32 %v2492, %v2504
    %v2507 = vsub.f32 %v2493, %v2505
    %v2508 = vmul.f32 %v2506, %v2506
    %v2509 = vmul.f32 %v2507, %v2507
    %v2510 = vsel %vm156, %v2508, 0.0
    %2511 = vadd.xlane.f32.xlu0 %v2510
    %v2512 = vpop.xlane.xlu0 %2511
    %v2513 = vsel %vm156, %v2509, 0.0
    %2514 = vadd.xlane.f32.xlu0 %v2513
    %v2515 = vpop.xlane.xlu0 %2514
    %v2516 = vmul.f32 %v2512, %v163
    %v2517 = vmul.f32 %v2515, %v163
    %v2518 = vadd.f32 %v2516, 1e-12
    %v2519 = vadd.f32 %v2517, 1e-12
    %v2520 = vrsqrt.pop %v2518
    %v2521 = vrsqrt.pop %v2519
    %v2522 = vmul.f32 %v2506, %v2520
    %v2523 = vmul.f32 %v2507, %v2521
    %v2525 = vlaneseq
    %v2526 = vshrl.u32 %v2525, 7
    %v2527 = vsub.s32 0, %v2526
    %v2528 = vrot.slane %v2495, %v2527
    %v2530 = vmul.f32 %v2522, %v2528
    %v2531 = vmul.f32 %v2523, %v2528
    %v2533 = vlaneseq
    %v2534 = vshrl.u32 %v2533, 7
    %v2535 = vsub.s32 0, %v2534
    %v2536 = vrot.slane %v2497, %v2535
    %v2538 = vadd.f32 %v2530, %v2536
    %v2539 = vadd.f32 %v2531, %v2536
    %v2541 = vrot.slane %v2539, 7
    %vm2543 = vcmask 1040384
    %v2544 = vsel %vm2543, %v2538, %v2541
    %v2545 = vld [vmem:[%s17] sm:$0xff]
    %v2546 = vld [vmem:[%s17 + $0x8] sm:$0xff]
    %v2547 = vld [vmem:[%s17 + $0x10] sm:$0xff]
    %v2548 = vld [vmem:[%s17 + $0x18] sm:$0xff]
    %v2549 = vld [vmem:[%s18] sm:$0x1]
    %v2551 = vlaneseq
    %v2552 = vshrl.u32 %v2551, 7
    %v2553 = vsub.s32 0, %v2552
    %v2554 = vrot.slane %v2549, %v2553
    %v2557 = vsel %vm156, %v2544, 0
    %2559 = vmatprep.subr.mxu0 0.0
    %2560 = vmatpush1.msra.mxu0 %v2545
    %2561 = vmatprep.subr.mxu0 0.0
    %2562 = vmatpush1.msra.mxu0 %v2546
    %2563 = vmatprep.subr.mxu0 0.0
    %2564 = vmatpush1.msra.mxu0 %v2547
    %2565 = vmatprep.subr.mxu0 0.0
    %2566 = vmatpush1.msra.mxu0 %v2548
    %2567 = vmatprep.subr.mxu0 0.0
    %2568 = vmatpush1.msra.mxu0 0.0
    %2569 = vmatprep.subr.mxu0 0.0
    %2570 = vmatpush1.msra.mxu0 0.0
    %2571 = vmatprep.subr.mxu0 0.0
    %2572 = vmatpush1.msra.mxu0 0.0
    %2573 = vmatprep.subr.mxu0 0.0
    %2574 = vmatpush1.msra.mxu0 0.0
    %2575 = vmatprep.subr.mxu0 0.0
    %2576 = vmatpush1.msra.mxu0 0.0
    %2577 = vmatprep.subr.mxu0 0.0
    %2578 = vmatpush1.msra.mxu0 0.0
    %2579 = vmatprep.subr.mxu0 0.0
    %2580 = vmatpush1.msra.mxu0 0.0
    %2581 = vmatprep.subr.mxu0 0.0
    %2582 = vmatpush1.msra.mxu0 0.0
    %2583 = vmatprep.subr.mxu0 0.0
    %2584 = vmatpush1.msra.mxu0 0.0
    %2585 = vmatprep.subr.mxu0 0.0
    %2586 = vmatpush1.msra.mxu0 0.0
    %2587 = vmatprep.subr.mxu0 0.0
    %2588 = vmatpush1.msra.mxu0 0.0
    %2589 = vmatprep.subr.mxu0 0.0
    %2590 = vmatpush1.msra.mxu0 0.0
    %2591 = vmatprep.subr.mxu0 0.0
    %2592 = vmatpush1.msra.mxu0 0.0
    %2593 = vmatprep.subr.mxu0 0.0
    %2594 = vmatpush1.msra.mxu0 0.0
    %2595 = vmatprep.subr.mxu0 0.0
    %2596 = vmatpush1.msra.mxu0 0.0
    %2597 = vmatprep.subr.mxu0 0.0
    %2598 = vmatpush1.msra.mxu0 0.0
    %2599 = vmatprep.subr.mxu0 0.0
    %2600 = vmatpush1.msra.mxu0 0.0
    %2601 = vmatprep.subr.mxu0 0.0
    %2602 = vmatpush1.msra.mxu0 0.0
    %2603 = vmatprep.subr.mxu0 0.0
    %2604 = vmatpush1.msra.mxu0 0.0
    %2605 = vmatprep.subr.mxu0 0.0
    %2606 = vmatpush1.msra.mxu0 0.0
    %2607 = vmatprep.subr.mxu0 0.0
    %2608 = vmatpush1.msra.mxu0 0.0
    %2609 = vmatprep.subr.mxu0 0.0
    %2610 = vmatpush1.msra.mxu0 0.0
    %2611 = vmatprep.subr.mxu0 0.0
    %2612 = vmatpush1.msra.mxu0 0.0
    %2613 = vmatprep.subr.mxu0 0.0
    %2614 = vmatpush1.msra.mxu0 0.0
    %2615 = vmatprep.subr.mxu0 0.0
    %2616 = vmatpush1.msra.mxu0 0.0
    %2617 = vmatprep.subr.mxu0 0.0
    %2618 = vmatpush1.msra.mxu0 0.0
    %2619 = vmatprep.subr.mxu0 0.0
    %2620 = vmatpush1.msra.mxu0 0.0
    %2621 = vmatprep.subr.mxu0 0.0
    %2622 = vmatpush1.msra.mxu0 0.0
    %2623 = vmatprep.mubr.f32.mxu0 0.0
    %2624 = vmatmul.mubr.f32.gmra.mrb[0].mxu0 %v2557
    %v2625 = vpop.f32.mrb[0].mxu0
    %v2626 = vadd.f32 %v2554, %v2625
    %v2627 = vpop.f32.mrb[0].mxu0
    %2628 = vdwg.mxu0
    %v2629 = vtanh.pop %v2626
    %v2630 = vld [vmem:[#allocation5] sm:$0x3]
    %v2631 = vmul.f32 %v2629, %v2630
    %vm2632 = vcmask 254976
    %2633 = vst.msk [vmem:[#allocation14] sm:$0x3] %vm2632, %v2631
    // Predicated region
    $region106: #{tpu_custom_call.1} parent=1 // pred_check
      _
    $region107: #{tpu_custom_call.1} parent=1 // pred_check_branch
      %2635 = sbr.rel (0) target = $region109
    $region108: #{tpu_custom_call.1} parent=1 // pred_region
      %s2637 = ssub.s32 32, 32
      %2638 = vsyncadd [#allocation4], %s2637
      %s2640 = sshll.u32 [#allocation14], 4
      %s2641 = int_to_ptr.vmem [resolvable:$true] %s2640
      %2643 = dma.vmem_to_hbm [thread:$0]  %s2641, 32, %s19, [#allocation4]
    $region109: #{tpu_custom_call.1} parent=1 // pred_fallthru
      _
    // Predicated region
    $region110: #{tpu_custom_call.1} parent=1 // pred_check
      _
    $region111: #{tpu_custom_call.1} parent=1 // pred_check_branch
      %2645 = sbr.rel (0) target = $region113
    $region112: #{tpu_custom_call.1} parent=1 // pred_region
      %2646 = dma.done [#allocation4], 32
    $region113: #{tpu_custom_call.1} parent=1 // pred_fallthru
      _
    %2647 = vsyncpa [#allocation3], 1
    %2648 = vsyncpa [#allocation6], 1
    %2649 = vsyncpa [#allocation9], 1
    %2650 = vsyncpa [#allocation12], 1
    %2651 = vsyncpa [#allocation4], 1

</llo_original>
